<compile_context>
chip_gen: v5e
topology: v5e:2x2
jax: 0.10.0
libtpu: 0.0.40
codegen_flags: <defaults>
</compile_context>

<pallas_src>
import jax
import jax.numpy as jnp
from jax import lax
from jax.experimental import pallas as pl
from jax.experimental.pallas import tpu as pltpu

EPS = 1e-5  # nn.InstanceNorm2d default eps


def _round_up(n, m):
    return ((n + m - 1) // m) * m


def _pick_vmem_limit():
    # v5e/v6e have 128 MiB physical VMEM (defaults of 16/32 MiB are too small for
    # whole-image blocks); v7x only has 64 MiB, so cap relative to reported capacity.
    try:
        cap = int(pltpu.get_tpu_info().vmem_capacity_bytes)
    except Exception:
        cap = 128 * 1024 * 1024
    return min(100 * 1024 * 1024, (cap * 7) // 8)


def resblock_kernel(xp_ref, x_ref, w1_ref, w2_ref, o_ref, acc_ref):
    H, W, C = x_ref.shape[1], x_ref.shape[2], x_ref.shape[3]
    Wp_al = _round_up(W + 2, 8)          # padded row pitch (8-sublane aligned)
    Hp_al = xp_ref.shape[1] // Wp_al     # padded flat height (>= H + 3)
    L = H * Wp_al                        # flat length of the conv-output frame
    Lk = (H + 2) * Wp_al                 # flat length covering all 3 row-shifted taps
    cdt = xp_ref.dtype                   # compute (matmul) dtype: bf16
    inv_n = 1.0 / float(H * W)
    # columns >= W in the padded-width frame hold conv garbage (alignment / row wrap)
    col_valid = lax.broadcasted_iota(jnp.int32, (1, Wp_al, 1), 1) < W

    def conv3x3_instnorm(pf, w_ref):
        """pf: flat padded image (>= Lk + 2 rows, C), cdt.  Returns (H, Wp_al, C) f32."""
        # lane-concat the three kw taps once (1 aligned + 2 sublane-shifted copies);
        # every per-kh tap below is then an 8-aligned slice feeding a K=3C matmul.
        taps = jnp.concatenate([pf[kw:kw + Lk, :] for kw in range(3)], axis=-1)
        acc_ref[...] = jnp.dot(taps[0:L], w_ref[0],
                               preferred_element_type=jnp.float32)
        acc_ref[...] += jnp.dot(taps[Wp_al:Wp_al + L], w_ref[1],
                                preferred_element_type=jnp.float32)
        acc_ref[...] += jnp.dot(taps[2 * Wp_al:2 * Wp_al + L], w_ref[2],
                                preferred_element_type=jnp.float32)
        conv = acc_ref[...].reshape(H, Wp_al, C)   # layout no-op (Wp_al % 8 == 0)

        # masked single-pass InstanceNorm statistics (no bias -> small means, so the
        # E[y^2] - mean^2 form stays well conditioned; clamp guards roundoff)
        cm = jnp.where(col_valid, conv, 0.0)
        s1 = jnp.sum(cm, axis=(0, 1), keepdims=True)
        s2 = jnp.sum(cm * conv, axis=(0, 1), keepdims=True)
        mean = s1 * inv_n
        var = jnp.maximum(s2 * inv_n - mean * mean, 0.0)
        return (conv - mean) * lax.rsqrt(var + EPS)

    def repad(yf):
        """Reflect-pad(1) the valid region of the padded-width frame (H, Wp_al, C) and
        return the flat (Hp_al*Wp_al, C) layout for the stage-2 conv."""
        pieces_w = [yf[:, 1:2, :], yf[:, 0:W, :], yf[:, W - 2:W - 1, :]]
        if Wp_al > W + 2:
            pieces_w.append(jnp.zeros((H, Wp_al - (W + 2), C), yf.dtype))
        t = jnp.concatenate(pieces_w, axis=1)                      # (H, Wp_al, C)
        pieces_h = [t[1:2], t, t[H - 2:H - 1]]
        if Hp_al > H + 2:
            pieces_h.append(jnp.zeros((Hp_al - (H + 2), Wp_al, C), yf.dtype))
        return jnp.concatenate(pieces_h, axis=0).reshape(Hp_al * Wp_al, C)

    # stage 1: (pad done in wrapper) -> conv1 -> IN -> ReLU -> bf16 for the next matmul
    z1 = conv3x3_instnorm(xp_ref[0], w1_ref)
    y = jnp.maximum(z1, 0.0).astype(cdt)

    # stage 2: rpad -> conv2 -> IN
    z2 = conv3x3_instnorm(repad(y), w2_ref)

    # residual add in f32 on the valid window
    o_ref[0] = (x_ref[0].astype(jnp.float32) + z2[:, :W, :]).astype(o_ref.dtype)


def resblock_pallas(x_nhwc, w1, w2):
    B, H, W, C = x_nhwc.shape
    assert H >= 2 and W >= 2, "ReflectionPad2d(1) needs spatial dims >= 2"
    compute_dtype = jnp.bfloat16  # MXU fast path on every TPU generation

    Wp_al = _round_up(W + 2, 8)
    Hp_al = _round_up(H + 3, 8)   # +1 row so all row-shifted tap views stay in bounds
    Np = Hp_al * Wp_al
    L = H * Wp_al

    # stage-1 reflect + alignment padding hoisted out of the kernel (extra HBM bytes
    # are hidden by the pipeline; two full-image concat sweeps leave the TC loop)
    xp = jnp.pad(x_nhwc, ((0, 0), (1, 1), (1, 1), (0, 0)), mode="reflect")
    xp = jnp.pad(xp, ((0, 0), (0, Hp_al - (H + 2)), (0, Wp_al - (W + 2)), (0, 0)))
    xp = xp.reshape(B, Np, C).astype(compute_dtype)

    # conv bias dropped: InstanceNorm(affine=False) cancels it exactly.
    # weights HWIO (3,3,Cin,Cout) -> (3, 3*Cin, Cout): the three kw taps of each kernel
    # row collapse into a single K=3*Cin matmul.
    w1r = w1.reshape(3, 3 * C, C).astype(compute_dtype)
    w2r = w2.reshape(3, 3 * C, C).astype(compute_dtype)

    x_itemsize = jnp.dtype(x_nhwc.dtype).itemsize
    cost = pl.CostEstimate(
        flops=2 * 2 * 9 * B * H * W * C * C,            # two 3x3 convs
        transcendentals=2 * B * C,                      # rsqrt per channel per stage
        bytes_accessed=B * Np * C * 2                   # padded bf16 input
        + 2 * B * H * W * C * x_itemsize                # residual in + out
        + 2 * 9 * C * C * 2,                            # bf16 weights
    )

    return pl.pallas_call(
        resblock_kernel,
        out_shape=jax.ShapeDtypeStruct((B, H, W, C), x_nhwc.dtype),
        grid_spec=pltpu.PrefetchScalarGridSpec(
            num_scalar_prefetch=0,
            grid=(B,),
            in_specs=[
                pl.BlockSpec((1, Np, C), lambda b: (b, 0, 0)),       # padded flat x (bf16)
                pl.BlockSpec((1, H, W, C), lambda b: (b, 0, 0, 0)),  # x for the residual
                # TODO(synk): pipeline_mode=pl.Buffered(1) on the constant-index weight
                # specs would drop their double-buffer (~2.25 MB at C=256); omitted for
                # lowering robustness.
                pl.BlockSpec((3, 3 * C, C), lambda b: (0, 0, 0)),
                pl.BlockSpec((3, 3 * C, C), lambda b: (0, 0, 0)),
            ],
            out_specs=pl.BlockSpec((1, H, W, C), lambda b: (b, 0, 0, 0)),
            scratch_shapes=[pltpu.VMEM((L, C), jnp.float32)],        # shared f32 conv acc
        ),
        compiler_params=pltpu.CompilerParams(
            dimension_semantics=("parallel",),
            vmem_limit_bytes=_pick_vmem_limit(),
        ),
        cost_estimate=cost,
    )(xp, x_nhwc, w1r, w2r)


def resblock_forward(x_nchw, w1, b1, w2, b2):
    # PyTorch NCHW compatibility wrapper.  b1/b2 accepted for interface parity but
    # unused: InstanceNorm2d(affine=False) right after each conv cancels the bias.
    del b1, b2
    x_nhwc = jnp.transpose(x_nchw, (0, 2, 3, 1))
    out = resblock_pallas(x_nhwc, w1, w2)
    return jnp.transpose(out, (0, 3, 1, 2))


# -------- pure-JAX reference (for correctness check) --------
def resblock_ref(x_nchw, w1, b1, w2, b2, matmul_dtype=None):
    x = jnp.transpose(x_nchw, (0, 2, 3, 1))  # NHWC

    def block(t, w, b):
        tp = jnp.pad(t, ((0, 0), (1, 1), (1, 1), (0, 0)), mode="reflect")
        if matmul_dtype is not None:
            tp = tp.astype(matmul_dtype)
            w = w.astype(matmul_dtype)
        y = lax.conv_general_dilated(
            tp, w, window_strides=(1, 1), padding="VALID",
            dimension_numbers=("NHWC", "HWIO", "NHWC"),
            preferred_element_type=jnp.float32) + b
        mean = jnp.mean(y, axis=(1, 2), keepdims=True)
        var = jnp.mean((y - mean) ** 2, axis=(1, 2), keepdims=True)
        return (y - mean) * lax.rsqrt(var + EPS)

    y = jnp.maximum(block(x, w1, b1), 0.0)
    if matmul_dtype is not None:
        y = y.astype(matmul_dtype).astype(jnp.float32)  # mirror the kernel's inter-stage cast
    z = block(y, w2, b2)
    return jnp.transpose(x + z, (0, 3, 1, 2))


if __name__ == "__main__":
    B, C, H, W = 2, 4, 16, 16
    key = jax.random.PRNGKey(0)
    kx, kw1, kb1, kw2, kb2 = jax.random.split(key, 5)

    x = jax.random.normal(kx, (B, C, H, W), jnp.float32)
    # deterministic synthetic weights (HWIO)
    w1 = jax.random.normal(kw1, (3, 3, C, C), jnp.float32) * 0.1
    b1 = jax.random.normal(kb1, (C,), jnp.float32) * 0.1
    w2 = jax.random.normal(kw2, (3, 3, C, C), jnp.float32) * 0.1
    b2 = jax.random.normal(kb2, (C,), jnp.float32) * 0.1

    out = jax.block_until_ready(resblock_forward(x, w1, b1, w2, b2))
    # reference with matching bf16 matmul operands (the bias in the reference is
    # cancelled by InstanceNorm, so dropping it in the kernel is exact)
    ref = jax.block_until_ready(
        resblock_ref(x, w1, b1, w2, b2, matmul_dtype=jnp.bfloat16))

    assert out.shape == (B, C, H, W)
    err = float(jnp.max(jnp.abs(out - ref)))
    assert err < 5e-2, f"mismatch vs reference: {err}"
    print("KERNEL_OK")
</pallas_src>

<mosaic_0001>
module attributes {stable_mosaic.version = 11 : i64} {
  func.func @resblock_kernel(%arg0: i32, %arg1: memref<1x576x4xbf16, #tpu.memory_space<vmem>>, %arg2: memref<1x16x16x4xf32, #tpu.memory_space<vmem>>, %arg3: memref<3x12x4xbf16, #tpu.memory_space<vmem>>, %arg4: memref<3x12x4xbf16, #tpu.memory_space<vmem>>, %arg5: memref<1x16x16x4xf32, #tpu.memory_space<vmem>>, %arg6: memref<384x4xf32, #tpu.memory_space<vmem>>) attributes {dimension_semantics = [#tpu.dimension_semantics<parallel>], iteration_bounds = array<i64: 2>, scalar_prefetch = 0 : i64, scratch_operands = 1 : i64, tpu.core_type = #tpu.core_type<tc>, window_params = [{transform_indices = @transform_0, window_bounds = array<i64: 1, 576, 4>}, {transform_indices = @transform_1, window_bounds = array<i64: 1, 16, 16, 4>}, {pipeline_mode = #tpu.pipeline_mode<synchronous>, transform_indices = @transform_2, window_bounds = array<i64: 3, 12, 4>}, {pipeline_mode = #tpu.pipeline_mode<synchronous>, transform_indices = @transform_3, window_bounds = array<i64: 3, 12, 4>}, {transform_indices = @transform_4, window_bounds = array<i64: 1, 16, 16, 4>}]} {
    %0 = tpu.iota {dimensions = array<i32: 1>} : vector<1x24x1xi32>
    %c16_i32 = arith.constant 16 : i32
    %1 = vector.broadcast %c16_i32 : i32 to vector<1x24x1xi32>
    %2 = arith.cmpi slt, %0, %1 : vector<1x24x1xi32>
    %c0 = arith.constant 0 : index
    %c0_0 = arith.constant 0 : index
    %c0_1 = arith.constant 0 : index
    %3 = vector.load %arg1[%c0, %c0_0, %c0_1] : memref<1x576x4xbf16, #tpu.memory_space<vmem>>, vector<1x576x4xbf16>
    %4 = vector.shape_cast %3 : vector<1x576x4xbf16> to vector<576x4xbf16>
    %5 = vector.extract_strided_slice %4 {offsets = [0, 0], sizes = [432, 4], strides = [1, 1]} : vector<576x4xbf16> to vector<432x4xbf16>
    %6 = vector.extract_strided_slice %4 {offsets = [1, 0], sizes = [432, 4], strides = [1, 1]} : vector<576x4xbf16> to vector<432x4xbf16>
    %7 = vector.extract_strided_slice %4 {offsets = [2, 0], sizes = [432, 4], strides = [1, 1]} : vector<576x4xbf16> to vector<432x4xbf16>
    %8 = tpu.concatenate %5, %6, %7 in 1 : vector<432x4xbf16>, vector<432x4xbf16>, vector<432x4xbf16> -> vector<432x12xbf16>
    %9 = vector.extract_strided_slice %8 {offsets = [0, 0], sizes = [384, 12], strides = [1, 1]} : vector<432x12xbf16> to vector<384x12xbf16>
    %c0_2 = arith.constant 0 : index
    %c0_3 = arith.constant 0 : index
    %c0_4 = arith.constant 0 : index
    %10 = vector.load %arg3[%c0_2, %c0_3, %c0_4] : memref<3x12x4xbf16, #tpu.memory_space<vmem>>, vector<1x12x4xbf16>
    %11 = vector.shape_cast %10 : vector<1x12x4xbf16> to vector<12x4xbf16>
    %cst = arith.constant dense<0.000000e+00> : vector<384x4xf32>
    %12 = tpu.matmul %9, %11, %cst {dimension_numbers = #tpu.dot_dimension_numbers<[1], [0], [0], [1], [0, 0, 1, 1], [], []>} : vector<384x12xbf16>, vector<12x4xbf16>, vector<384x4xf32> -> vector<384x4xf32>
    %c0_5 = arith.constant 0 : index
    %c0_6 = arith.constant 0 : index
    %13 = vector.load %arg6[%c0_5, %c0_6] : memref<384x4xf32, #tpu.memory_space<vmem>>, vector<384x4xf32>
    tpu.vector_store %arg6[%c0_5, %c0_6], %12 {strides = array<i32>} : memref<384x4xf32, #tpu.memory_space<vmem>>, vector<384x4xf32>,
    %c0_7 = arith.constant 0 : index
    %c0_8 = arith.constant 0 : index
    %14 = vector.load %arg6[%c0_7, %c0_8] : memref<384x4xf32, #tpu.memory_space<vmem>>, vector<384x4xf32>
    %15 = vector.extract_strided_slice %8 {offsets = [24, 0], sizes = [384, 12], strides = [1, 1]} : vector<432x12xbf16> to vector<384x12xbf16>
    %c1 = arith.constant 1 : index
    %c0_9 = arith.constant 0 : index
    %c0_10 = arith.constant 0 : index
    %16 = vector.load %arg3[%c1, %c0_9, %c0_10] : memref<3x12x4xbf16, #tpu.memory_space<vmem>>, vector<1x12x4xbf16>
    %17 = vector.shape_cast %16 : vector<1x12x4xbf16> to vector<12x4xbf16>
    %cst_11 = arith.constant dense<0.000000e+00> : vector<384x4xf32>
    %18 = tpu.matmul %15, %17, %cst_11 {dimension_numbers = #tpu.dot_dimension_numbers<[1], [0], [0], [1], [0, 0, 1, 1], [], []>} : vector<384x12xbf16>, vector<12x4xbf16>, vector<384x4xf32> -> vector<384x4xf32>
    %19 = arith.addf %14, %18 : vector<384x4xf32>
    %c0_12 = arith.constant 0 : index
    %c0_13 = arith.constant 0 : index
    %20 = vector.load %arg6[%c0_12, %c0_13] : memref<384x4xf32, #tpu.memory_space<vmem>>, vector<384x4xf32>
    tpu.vector_store %arg6[%c0_12, %c0_13], %19 {strides = array<i32>} : memref<384x4xf32, #tpu.memory_space<vmem>>, vector<384x4xf32>,
    %c0_14 = arith.constant 0 : index
    %c0_15 = arith.constant 0 : index
    %21 = vector.load %arg6[%c0_14, %c0_15] : memref<384x4xf32, #tpu.memory_space<vmem>>, vector<384x4xf32>
    %22 = vector.extract_strided_slice %8 {offsets = [48, 0], sizes = [384, 12], strides = [1, 1]} : vector<432x12xbf16> to vector<384x12xbf16>
    %c2 = arith.constant 2 : index
    %c0_16 = arith.constant 0 : index
    %c0_17 = arith.constant 0 : index
    %23 = vector.load %arg3[%c2, %c0_16, %c0_17] : memref<3x12x4xbf16, #tpu.memory_space<vmem>>, vector<1x12x4xbf16>
    %24 = vector.shape_cast %23 : vector<1x12x4xbf16> to vector<12x4xbf16>
    %cst_18 = arith.constant dense<0.000000e+00> : vector<384x4xf32>
    %25 = tpu.matmul %22, %24, %cst_18 {dimension_numbers = #tpu.dot_dimension_numbers<[1], [0], [0], [1], [0, 0, 1, 1], [], []>} : vector<384x12xbf16>, vector<12x4xbf16>, vector<384x4xf32> -> vector<384x4xf32>
    %26 = arith.addf %21, %25 : vector<384x4xf32>
    %c0_19 = arith.constant 0 : index
    %c0_20 = arith.constant 0 : index
    %27 = vector.load %arg6[%c0_19, %c0_20] : memref<384x4xf32, #tpu.memory_space<vmem>>, vector<384x4xf32>
    tpu.vector_store %arg6[%c0_19, %c0_20], %26 {strides = array<i32>} : memref<384x4xf32, #tpu.memory_space<vmem>>, vector<384x4xf32>,
    %c0_21 = arith.constant 0 : index
    %c0_22 = arith.constant 0 : index
    %28 = vector.load %arg6[%c0_21, %c0_22] : memref<384x4xf32, #tpu.memory_space<vmem>>, vector<384x4xf32>
    %29 = vector.shape_cast %28 : vector<384x4xf32> to vector<16x24x4xf32>
    %cst_23 = arith.constant 0.000000e+00 : f32
    %30 = vector.shape_cast %2 : vector<1x24x1xi1> to vector<1x24x1xi1>
    %31 = vector.broadcast %30 : vector<1x24x1xi1> to vector<16x24x4xi1>
    %32 = vector.broadcast %cst_23 : f32 to vector<16x24x4xf32>
    %33 = arith.select %31, %29, %32 : vector<16x24x4xi1>, vector<16x24x4xf32>
    %cst_24 = arith.constant dense<0.000000e+00> : vector<4xf32>
    %34 = vector.multi_reduction <add>, %33, %cst_24 [0, 1] : vector<16x24x4xf32> to vector<4xf32>
    %35 = vector.shape_cast %34 : vector<4xf32> to vector<1x1x4xf32>
    %36 = arith.mulf %33, %29 : vector<16x24x4xf32>
    %cst_25 = arith.constant dense<0.000000e+00> : vector<4xf32>
    %37 = vector.multi_reduction <add>, %36, %cst_25 [0, 1] : vector<16x24x4xf32> to vector<4xf32>
    %38 = vector.shape_cast %37 : vector<4xf32> to vector<1x1x4xf32>
    %cst_26 = arith.constant 3.906250e-03 : f32
    %39 = vector.broadcast %cst_26 : f32 to vector<1x1x4xf32>
    %40 = arith.mulf %35, %39 : vector<1x1x4xf32>
    %cst_27 = arith.constant 3.906250e-03 : f32
    %41 = vector.broadcast %cst_27 : f32 to vector<1x1x4xf32>
    %42 = arith.mulf %38, %41 : vector<1x1x4xf32>
    %43 = arith.mulf %40, %40 : vector<1x1x4xf32>
    %44 = arith.subf %42, %43 : vector<1x1x4xf32>
    %cst_28 = arith.constant 0.000000e+00 : f32
    %45 = vector.broadcast %cst_28 : f32 to vector<1x1x4xf32>
    %46 = arith.maximumf %44, %45 : vector<1x1x4xf32>
    %47 = vector.broadcast %40 : vector<1x1x4xf32> to vector<16x24x4xf32>
    %48 = arith.subf %29, %47 : vector<16x24x4xf32>
    %cst_29 = arith.constant 9.99999974E-6 : f32
    %49 = vector.broadcast %cst_29 : f32 to vector<1x1x4xf32>
    %50 = arith.addf %46, %49 : vector<1x1x4xf32>
    %51 = math.rsqrt %50 : vector<1x1x4xf32>
    %52 = vector.broadcast %51 : vector<1x1x4xf32> to vector<16x24x4xf32>
    %53 = arith.mulf %48, %52 : vector<16x24x4xf32>
    %cst_30 = arith.constant 0.000000e+00 : f32
    %54 = vector.broadcast %cst_30 : f32 to vector<16x24x4xf32>
    %55 = arith.maximumf %53, %54 : vector<16x24x4xf32>
    %56 = arith.truncf %55 : vector<16x24x4xf32> to vector<16x24x4xbf16>
    %57 = vector.extract_strided_slice %56 {offsets = [0, 1, 0], sizes = [16, 1, 4], strides = [1, 1, 1]} : vector<16x24x4xbf16> to vector<16x1x4xbf16>
    %58 = vector.extract_strided_slice %56 {offsets = [0, 0, 0], sizes = [16, 16, 4], strides = [1, 1, 1]} : vector<16x24x4xbf16> to vector<16x16x4xbf16>
    %59 = vector.extract_strided_slice %56 {offsets = [0, 14, 0], sizes = [16, 1, 4], strides = [1, 1, 1]} : vector<16x24x4xbf16> to vector<16x1x4xbf16>
    %cst_31 = arith.constant 0.000000e+00 : bf16
    %60 = vector.broadcast %cst_31 : bf16 to vector<16x6x4xbf16>
    %61 = tpu.concatenate %57, %58, %59, %60 in 1 : vector<16x1x4xbf16>, vector<16x16x4xbf16>, vector<16x1x4xbf16>, vector<16x6x4xbf16> -> vector<16x24x4xbf16>
    %62 = vector.extract_strided_slice %61 {offsets = [1, 0, 0], sizes = [1, 24, 4], strides = [1, 1, 1]} : vector<16x24x4xbf16> to vector<1x24x4xbf16>
    %63 = vector.extract_strided_slice %61 {offsets = [14, 0, 0], sizes = [1, 24, 4], strides = [1, 1, 1]} : vector<16x24x4xbf16> to vector<1x24x4xbf16>
    %cst_32 = arith.constant 0.000000e+00 : bf16
    %64 = vector.broadcast %cst_32 : bf16 to vector<6x24x4xbf16>
    %65 = tpu.concatenate %62, %61, %63, %64 in 0 : vector<1x24x4xbf16>, vector<16x24x4xbf16>, vector<1x24x4xbf16>, vector<6x24x4xbf16> -> vector<24x24x4xbf16>
    %66 = vector.shape_cast %65 : vector<24x24x4xbf16> to vector<576x4xbf16>
    %67 = vector.extract_strided_slice %66 {offsets = [0, 0], sizes = [432, 4], strides = [1, 1]} : vector<576x4xbf16> to vector<432x4xbf16>
    %68 = vector.extract_strided_slice %66 {offsets = [1, 0], sizes = [432, 4], strides = [1, 1]} : vector<576x4xbf16> to vector<432x4xbf16>
    %69 = vector.extract_strided_slice %66 {offsets = [2, 0], sizes = [432, 4], strides = [1, 1]} : vector<576x4xbf16> to vector<432x4xbf16>
    %70 = tpu.concatenate %67, %68, %69 in 1 : vector<432x4xbf16>, vector<432x4xbf16>, vector<432x4xbf16> -> vector<432x12xbf16>
    %71 = vector.extract_strided_slice %70 {offsets = [0, 0], sizes = [384, 12], strides = [1, 1]} : vector<432x12xbf16> to vector<384x12xbf16>
    %c0_33 = arith.constant 0 : index
    %c0_34 = arith.constant 0 : index
    %c0_35 = arith.constant 0 : index
    %72 = vector.load %arg4[%c0_33, %c0_34, %c0_35] : memref<3x12x4xbf16, #tpu.memory_space<vmem>>, vector<1x12x4xbf16>
    %73 = vector.shape_cast %72 : vector<1x12x4xbf16> to vector<12x4xbf16>
    %cst_36 = arith.constant dense<0.000000e+00> : vector<384x4xf32>
    %74 = tpu.matmul %71, %73, %cst_36 {dimension_numbers = #tpu.dot_dimension_numbers<[1], [0], [0], [1], [0, 0, 1, 1], [], []>} : vector<384x12xbf16>, vector<12x4xbf16>, vector<384x4xf32> -> vector<384x4xf32>
    %c0_37 = arith.constant 0 : index
    %c0_38 = arith.constant 0 : index
    %75 = vector.load %arg6[%c0_37, %c0_38] : memref<384x4xf32, #tpu.memory_space<vmem>>, vector<384x4xf32>
    tpu.vector_store %arg6[%c0_37, %c0_38], %74 {strides = array<i32>} : memref<384x4xf32, #tpu.memory_space<vmem>>, vector<384x4xf32>,
    %c0_39 = arith.constant 0 : index
    %c0_40 = arith.constant 0 : index
    %76 = vector.load %arg6[%c0_39, %c0_40] : memref<384x4xf32, #tpu.memory_space<vmem>>, vector<384x4xf32>
    %77 = vector.extract_strided_slice %70 {offsets = [24, 0], sizes = [384, 12], strides = [1, 1]} : vector<432x12xbf16> to vector<384x12xbf16>
    %c1_41 = arith.constant 1 : index
    %c0_42 = arith.constant 0 : index
    %c0_43 = arith.constant 0 : index
    %78 = vector.load %arg4[%c1_41, %c0_42, %c0_43] : memref<3x12x4xbf16, #tpu.memory_space<vmem>>, vector<1x12x4xbf16>
    %79 = vector.shape_cast %78 : vector<1x12x4xbf16> to vector<12x4xbf16>
    %cst_44 = arith.constant dense<0.000000e+00> : vector<384x4xf32>
    %80 = tpu.matmul %77, %79, %cst_44 {dimension_numbers = #tpu.dot_dimension_numbers<[1], [0], [0], [1], [0, 0, 1, 1], [], []>} : vector<384x12xbf16>, vector<12x4xbf16>, vector<384x4xf32> -> vector<384x4xf32>
    %81 = arith.addf %76, %80 : vector<384x4xf32>
    %c0_45 = arith.constant 0 : index
    %c0_46 = arith.constant 0 : index
    %82 = vector.load %arg6[%c0_45, %c0_46] : memref<384x4xf32, #tpu.memory_space<vmem>>, vector<384x4xf32>
    tpu.vector_store %arg6[%c0_45, %c0_46], %81 {strides = array<i32>} : memref<384x4xf32, #tpu.memory_space<vmem>>, vector<384x4xf32>,
    %c0_47 = arith.constant 0 : index
    %c0_48 = arith.constant 0 : index
    %83 = vector.load %arg6[%c0_47, %c0_48] : memref<384x4xf32, #tpu.memory_space<vmem>>, vector<384x4xf32>
    %84 = vector.extract_strided_slice %70 {offsets = [48, 0], sizes = [384, 12], strides = [1, 1]} : vector<432x12xbf16> to vector<384x12xbf16>
    %c2_49 = arith.constant 2 : index
    %c0_50 = arith.constant 0 : index
    %c0_51 = arith.constant 0 : index
    %85 = vector.load %arg4[%c2_49, %c0_50, %c0_51] : memref<3x12x4xbf16, #tpu.memory_space<vmem>>, vector<1x12x4xbf16>
    %86 = vector.shape_cast %85 : vector<1x12x4xbf16> to vector<12x4xbf16>
    %cst_52 = arith.constant dense<0.000000e+00> : vector<384x4xf32>
    %87 = tpu.matmul %84, %86, %cst_52 {dimension_numbers = #tpu.dot_dimension_numbers<[1], [0], [0], [1], [0, 0, 1, 1], [], []>} : vector<384x12xbf16>, vector<12x4xbf16>, vector<384x4xf32> -> vector<384x4xf32>
    %88 = arith.addf %83, %87 : vector<384x4xf32>
    %c0_53 = arith.constant 0 : index
    %c0_54 = arith.constant 0 : index
    %89 = vector.load %arg6[%c0_53, %c0_54] : memref<384x4xf32, #tpu.memory_space<vmem>>, vector<384x4xf32>
    tpu.vector_store %arg6[%c0_53, %c0_54], %88 {strides = array<i32>} : memref<384x4xf32, #tpu.memory_space<vmem>>, vector<384x4xf32>,
    %c0_55 = arith.constant 0 : index
    %c0_56 = arith.constant 0 : index
    %90 = vector.load %arg6[%c0_55, %c0_56] : memref<384x4xf32, #tpu.memory_space<vmem>>, vector<384x4xf32>
    %91 = vector.shape_cast %90 : vector<384x4xf32> to vector<16x24x4xf32>
    %cst_57 = arith.constant 0.000000e+00 : f32
    %92 = vector.shape_cast %2 : vector<1x24x1xi1> to vector<1x24x1xi1>
    %93 = vector.broadcast %92 : vector<1x24x1xi1> to vector<16x24x4xi1>
    %94 = vector.broadcast %cst_57 : f32 to vector<16x24x4xf32>
    %95 = arith.select %93, %91, %94 : vector<16x24x4xi1>, vector<16x24x4xf32>
    %cst_58 = arith.constant dense<0.000000e+00> : vector<4xf32>
    %96 = vector.multi_reduction <add>, %95, %cst_58 [0, 1] : vector<16x24x4xf32> to vector<4xf32>
    %97 = vector.shape_cast %96 : vector<4xf32> to vector<1x1x4xf32>
    %98 = arith.mulf %95, %91 : vector<16x24x4xf32>
    %cst_59 = arith.constant dense<0.000000e+00> : vector<4xf32>
    %99 = vector.multi_reduction <add>, %98, %cst_59 [0, 1] : vector<16x24x4xf32> to vector<4xf32>
    %100 = vector.shape_cast %99 : vector<4xf32> to vector<1x1x4xf32>
    %cst_60 = arith.constant 3.906250e-03 : f32
    %101 = vector.broadcast %cst_60 : f32 to vector<1x1x4xf32>
    %102 = arith.mulf %97, %101 : vector<1x1x4xf32>
    %cst_61 = arith.constant 3.906250e-03 : f32
    %103 = vector.broadcast %cst_61 : f32 to vector<1x1x4xf32>
    %104 = arith.mulf %100, %103 : vector<1x1x4xf32>
    %105 = arith.mulf %102, %102 : vector<1x1x4xf32>
    %106 = arith.subf %104, %105 : vector<1x1x4xf32>
    %cst_62 = arith.constant 0.000000e+00 : f32
    %107 = vector.broadcast %cst_62 : f32 to vector<1x1x4xf32>
    %108 = arith.maximumf %106, %107 : vector<1x1x4xf32>
    %109 = vector.broadcast %102 : vector<1x1x4xf32> to vector<16x24x4xf32>
    %110 = arith.subf %91, %109 : vector<16x24x4xf32>
    %cst_63 = arith.constant 9.99999974E-6 : f32
    %111 = vector.broadcast %cst_63 : f32 to vector<1x1x4xf32>
    %112 = arith.addf %108, %111 : vector<1x1x4xf32>
    %113 = math.rsqrt %112 : vector<1x1x4xf32>
    %114 = vector.broadcast %113 : vector<1x1x4xf32> to vector<16x24x4xf32>
    %115 = arith.mulf %110, %114 : vector<16x24x4xf32>
    %c0_64 = arith.constant 0 : index
    %c0_65 = arith.constant 0 : index
    %c0_66 = arith.constant 0 : index
    %c0_67 = arith.constant 0 : index
    %116 = vector.load %arg2[%c0_64, %c0_65, %c0_66, %c0_67] : memref<1x16x16x4xf32, #tpu.memory_space<vmem>>, vector<1x16x16x4xf32>
    %117 = vector.shape_cast %116 : vector<1x16x16x4xf32> to vector<16x16x4xf32>
    %118 = vector.extract_strided_slice %115 {offsets = [0, 0, 0], sizes = [16, 16, 4], strides = [1, 1, 1]} : vector<16x24x4xf32> to vector<16x16x4xf32>
    %119 = arith.addf %117, %118 : vector<16x16x4xf32>
    %c0_68 = arith.constant 0 : index
    %c0_69 = arith.constant 0 : index
    %c0_70 = arith.constant 0 : index
    %c0_71 = arith.constant 0 : index
    %120 = vector.load %arg5[%c0_68, %c0_69, %c0_70, %c0_71] : memref<1x16x16x4xf32, #tpu.memory_space<vmem>>, vector<1x16x16x4xf32>
    %121 = vector.shape_cast %120 : vector<1x16x16x4xf32> to vector<16x16x4xf32>
    %122 = vector.shape_cast %119 : vector<16x16x4xf32> to vector<1x16x16x4xf32>
    tpu.vector_store %arg5[%c0_68, %c0_69, %c0_70, %c0_71], %122 {strides = array<i32>} : memref<1x16x16x4xf32, #tpu.memory_space<vmem>>, vector<1x16x16x4xf32>,
    return
  }
  func.func @transform_0(%arg0: i32) -> (i32, i32, i32) {
    %c0_i32 = arith.constant 0 : i32
    %c0_i32_0 = arith.constant 0 : i32
    %c0_i32_1 = arith.constant 0 : i32
    return %arg0, %c0_i32, %c0_i32_0 : i32, i32, i32
  }
  func.func @transform_1(%arg0: i32) -> (i32, i32, i32, i32) {
    %c0_i32 = arith.constant 0 : i32
    %c0_i32_0 = arith.constant 0 : i32
    %c0_i32_1 = arith.constant 0 : i32
    %c0_i32_2 = arith.constant 0 : i32
    return %arg0, %c0_i32, %c0_i32_0, %c0_i32_1 : i32, i32, i32, i32
  }
  func.func @transform_2(%arg0: i32) -> (i32, i32, i32) {
    %c0_i32 = arith.constant 0 : i32
    %c0_i32_0 = arith.constant 0 : i32
    %c0_i32_1 = arith.constant 0 : i32
    %c0_i32_2 = arith.constant 0 : i32
    return %c0_i32, %c0_i32_0, %c0_i32_1 : i32, i32, i32
  }
  func.func @transform_3(%arg0: i32) -> (i32, i32, i32) {
    %c0_i32 = arith.constant 0 : i32
    %c0_i32_0 = arith.constant 0 : i32
    %c0_i32_1 = arith.constant 0 : i32
    %c0_i32_2 = arith.constant 0 : i32
    return %c0_i32, %c0_i32_0, %c0_i32_1 : i32, i32, i32
  }
  func.func @transform_4(%arg0: i32) -> (i32, i32, i32, i32) {
    %c0_i32 = arith.constant 0 : i32
    %c0_i32_0 = arith.constant 0 : i32
    %c0_i32_1 = arith.constant 0 : i32
    %c0_i32_2 = arith.constant 0 : i32
    return %arg0, %c0_i32, %c0_i32_0, %c0_i32_1 : i32, i32, i32, i32
  }
}

</mosaic_0001>

<llo_original>
// kernel: tpu_custom_call.1
$region0: #{tpu_custom_call.1}
  #allocation0 [shape = 'u32[]', space=smem, size = 0x4, offset = 0x4, fixed_abs, tag = 'smem constant byte address 0x4 - core index']
  #allocation1 [shape = 'u32[72,128]{1,0:T(1,128)}', space=vmem, size = 0x9000, scoped, tag = 'internal scratch']
  #allocation2 [shape = 'f32[384,4]{1,0:T(8,128)}', space=vmem, size = 0x30000, scoped, tag = 'scratch operand']
  %s0 = inlined_call_operand.vmem [shape: bf16[2,576,4], index: 0, kind: input, shape index: {}]
  %s1 = inlined_call_operand.vmem [shape: f32[2,16,16,4], index: 1, kind: input, shape index: {}]
  %s2 = inlined_call_operand.vmem [shape: bf16[3,12,4], index: 2, kind: input, shape index: {}]
  %s3 = inlined_call_operand.vmem [shape: bf16[3,12,4], index: 3, kind: input, shape index: {}]
  %s4 = inlined_call_operand.vmem [shape: f32[2,16,16,4], index: 4, kind: output, shape index: {}]
  %s5 = sld [smem:[#allocation0]]
  $region49: #{tpu_custom_call.1} parent=0
    _
  %s7 = ssub.s32 1, %s5
  %s8 = scalar_select 0, %s7, %s5
  loop: start=0, step=1, limit=4
  $region2: #{tpu_custom_call.1} parent=0 // loop_pre_header
    _
  $region3: #{tpu_custom_call.1} parent=0 // loop_header
    %s10 = sphi 0, %s14
    %p11 = scmp.ge.s32.totalorder %s10, 4
    %s20 = sphi 0, %s22
    %s23 = sphi 0, %s20
    %s24 = sphi 0, %s23
    %s40 = sphi 0, %s24
    %s46 = sphi 0, %s48
    %s49 = sphi 0, %s46
    %s50 = sphi 0, %s49
    %s66 = sphi 0, %s50
    %s70 = sphi 0, %s70
    %s72 = sphi 0, %s70
    %s73 = sphi 0, %s72
    %s87 = sphi 0, %s73
    %s91 = sphi 0, %s91
    %s93 = sphi 0, %s91
    %s94 = sphi 0, %s93
    %s108 = sphi 0, %s94
    %s114 = sphi 0, %s116
    %s117 = sphi 0, %s114
    %s118 = sphi 0, %s117
    %s134 = sphi 0, %s118
  $region4: #{tpu_custom_call.1} parent=0 // loop_header_branch
    %13 = sbr.rel (%p11) target = $region8
  $region5: #{tpu_custom_call.1} parent=0 // loop_body
    %s15 = ssub.s32 %s10, 1
    %s16 = ssub.s32 %s10, 2
    %s17 = sadd.s32 %s10, 1
    %s18 = ssub.s32 %s10, %s17
    %p19 = scmp.eq.s32.totalorder %s18, 0
    %s21 = sadd.s32 %s20, 1
    %s22 = scalar_select %p19, %s20, %s21
    %p25 = pneg %p19
    %p26 = scmp.eq.s32.totalorder %s10, 1
    %p27 = por %p25, %p26
    %p28 = scmp.ne.s32.totalorder %s20, %s23
    %p29 = scmp.eq.s32.totalorder %s10, 0
    %p30 = por %p28, %p29
    %p31 = scmp.ne.s32.totalorder %s20, %s23
    %p32 = scmp.eq.s32.totalorder %s15, 1
    %p33 = por %p31, %p32
    %p34 = scmp.ne.s32.totalorder %s23, %s24
    %p35 = scmp.eq.s32.totalorder %s15, 0
    %p36 = por %p34, %p35
    %p37 = scmp.ne.s32.totalorder %s23, %s24
    %p38 = scmp.eq.s32.totalorder %s16, 1
    %p39 = por %p37, %p38
    %p41 = scmp.ne.s32.totalorder %s24, %s40
    %p42 = scmp.eq.s32.totalorder %s16, 0
    %p43 = por %p41, %p42
    %s44 = ssub.s32 %s10, %s17
    %p45 = scmp.eq.s32.totalorder %s44, 0
    %s47 = sadd.s32 %s46, 1
    %s48 = scalar_select %p45, %s46, %s47
    %p51 = pneg %p45
    %p52 = scmp.eq.s32.totalorder %s10, 1
    %p53 = por %p51, %p52
    %p54 = scmp.ne.s32.totalorder %s46, %s49
    %p55 = scmp.eq.s32.totalorder %s10, 0
    %p56 = por %p54, %p55
    %p57 = scmp.ne.s32.totalorder %s46, %s49
    %p58 = scmp.eq.s32.totalorder %s15, 1
    %p59 = por %p57, %p58
    %p60 = scmp.ne.s32.totalorder %s49, %s50
    %p61 = scmp.eq.s32.totalorder %s15, 0
    %p62 = por %p60, %p61
    %p63 = scmp.ne.s32.totalorder %s49, %s50
    %p64 = scmp.eq.s32.totalorder %s16, 1
    %p65 = por %p63, %p64
    %p67 = scmp.ne.s32.totalorder %s50, %s66
    %p68 = scmp.eq.s32.totalorder %s16, 0
    %p69 = por %p67, %p68
    %s71 = sadd.s32 %s70, 1
    %p74 = scmp.eq.s32.totalorder %s10, 1
    %p75 = scmp.ne.s32.totalorder %s70, %s72
    %p76 = scmp.eq.s32.totalorder %s10, 0
    %p77 = por %p75, %p76
    %p78 = scmp.ne.s32.totalorder %s70, %s72
    %p79 = scmp.eq.s32.totalorder %s15, 1
    %p80 = por %p78, %p79
    %p81 = scmp.ne.s32.totalorder %s72, %s73
    %p82 = scmp.eq.s32.totalorder %s15, 0
    %p83 = por %p81, %p82
    %p84 = scmp.ne.s32.totalorder %s72, %s73
    %p85 = scmp.eq.s32.totalorder %s16, 1
    %p86 = por %p84, %p85
    %p88 = scmp.ne.s32.totalorder %s73, %s87
    %p89 = scmp.eq.s32.totalorder %s16, 0
    %p90 = por %p88, %p89
    %s92 = sadd.s32 %s91, 1
    %p95 = scmp.eq.s32.totalorder %s10, 1
    %p96 = scmp.ne.s32.totalorder %s91, %s93
    %p97 = scmp.eq.s32.totalorder %s10, 0
    %p98 = por %p96, %p97
    %p99 = scmp.ne.s32.totalorder %s91, %s93
    %p100 = scmp.eq.s32.totalorder %s15, 1
    %p101 = por %p99, %p100
    %p102 = scmp.ne.s32.totalorder %s93, %s94
    %p103 = scmp.eq.s32.totalorder %s15, 0
    %p104 = por %p102, %p103
    %p105 = scmp.ne.s32.totalorder %s93, %s94
    %p106 = scmp.eq.s32.totalorder %s16, 1
    %p107 = por %p105, %p106
    %p109 = scmp.ne.s32.totalorder %s94, %s108
    %p110 = scmp.eq.s32.totalorder %s16, 0
    %p111 = por %p109, %p110
    %s112 = ssub.s32 %s10, %s17
    %p113 = scmp.eq.s32.totalorder %s112, 0
    %s115 = sadd.s32 %s114, 1
    %s116 = scalar_select %p113, %s114, %s115
    %p119 = pneg %p113
    %p120 = scmp.eq.s32.totalorder %s10, 1
    %p121 = por %p119, %p120
    %p122 = scmp.ne.s32.totalorder %s114, %s117
    %p123 = scmp.eq.s32.totalorder %s10, 0
    %p124 = por %p122, %p123
    %p125 = scmp.ne.s32.totalorder %s114, %s117
    %p126 = scmp.eq.s32.totalorder %s15, 1
    %p127 = por %p125, %p126
    %p128 = scmp.ne.s32.totalorder %s117, %s118
    %p129 = scmp.eq.s32.totalorder %s15, 0
    %p130 = por %p128, %p129
    %p131 = scmp.ne.s32.totalorder %s117, %s118
    %p132 = scmp.eq.s32.totalorder %s16, 1
    %p133 = por %p131, %p132
    %p135 = scmp.ne.s32.totalorder %s118, %s134
    %p136 = scmp.eq.s32.totalorder %s16, 0
    %p137 = por %p135, %p136
    %p138 = scmp.le.s32.totalorder 1, %s10
    %p139 = scmp.lt.s32.totalorder %s10, 3
    %p140 = pnand %p138, %p139
    %p141 = pneg %p140
    // Predicated region
    $region9: #{tpu_custom_call.1} parent=5 // pred_check
      _
    $region10: #{tpu_custom_call.1} parent=5 // pred_check_branch
      %143 = sbr.rel (%p140) target = $region12
    $region11: #{tpu_custom_call.1} parent=5 // pred_region
      %s144 = ssub.s32 %s10, 1
      // Predicated region
      $region13: #{tpu_custom_call.1} parent=11 // pred_check
        %p145 = pneg %p83
      $region14: #{tpu_custom_call.1} parent=11 // pred_check_branch
        %147 = sbr.rel (%p145) target = $region16
      $region15: #{tpu_custom_call.1} parent=11 // pred_region
        _
      $region16: #{tpu_custom_call.1} parent=11 // pred_fallthru
        _
      // Predicated region
      $region17: #{tpu_custom_call.1} parent=11 // pred_check
        %p148 = pneg %p104
      $region18: #{tpu_custom_call.1} parent=11 // pred_check_branch
        %150 = sbr.rel (%p148) target = $region20
      $region19: #{tpu_custom_call.1} parent=11 // pred_region
        _
      $region20: #{tpu_custom_call.1} parent=11 // pred_fallthru
        _
    $region12: #{tpu_custom_call.1} parent=5 // pred_fallthru
      _
    %p151 = scmp.lt.s32.totalorder %s10, 2
    // Predicated region
    $region21: #{tpu_custom_call.1} parent=5 // pred_check
      %p152 = pneg %p151
    $region22: #{tpu_custom_call.1} parent=5 // pred_check_branch
      %154 = sbr.rel (%p152) target = $region24
    $region23: #{tpu_custom_call.1} parent=5 // pred_region
      // Predicated region
      $region25: #{tpu_custom_call.1} parent=23 // pred_check
        %p155 = pneg %p30
      $region26: #{tpu_custom_call.1} parent=23 // pred_check_branch
        %157 = sbr.rel (%p155) target = $region28
      $region27: #{tpu_custom_call.1} parent=23 // pred_region
        %p158 = scmp.lt.s32.totalorder %s10, 1
        %s159 = scalar_select %p158, %s10, 1
        %s160 = smul.addr %s159, 72
        %s161 = smul.addr %s160, 4
        %s162 = scalar_lea.vmem %s0, %s161
      $region28: #{tpu_custom_call.1} parent=23 // pred_fallthru
        _
      // Predicated region
      $region29: #{tpu_custom_call.1} parent=23 // pred_check
        %p163 = pneg %p56
      $region30: #{tpu_custom_call.1} parent=23 // pred_check_branch
        %165 = sbr.rel (%p163) target = $region32
      $region31: #{tpu_custom_call.1} parent=23 // pred_region
        %p166 = scmp.lt.s32.totalorder %s10, 1
        %s167 = scalar_select %p166, %s10, 1
        %s168 = smul.addr %s167, 32
        %s169 = smul.addr %s168, 8
        %s170 = scalar_lea.vmem %s1, %s169
      $region32: #{tpu_custom_call.1} parent=23 // pred_fallthru
        _
    $region24: #{tpu_custom_call.1} parent=5 // pred_fallthru
      _
    %p171 = scmp.le.s32.totalorder 1, %s10
    %p172 = scmp.lt.s32.totalorder %s10, 3
    %p173 = pnand %p171, %p172
    %p174 = pneg %p173
    // Predicated region
    $region33: #{tpu_custom_call.1} parent=5 // pred_check
      _
    $region34: #{tpu_custom_call.1} parent=5 // pred_check_branch
      %176 = sbr.rel (%p173) target = $region36
    $region35: #{tpu_custom_call.1} parent=5 // pred_region
      %s177 = ssub.s32 %s10, 1
      %p178 = scmp.lt.s32.totalorder %s15, 1
      %s179 = scalar_select %p178, %s15, 1
      %s180 = smul.addr %s179, 72
      %s181 = smul.addr %s180, 4
      %s182 = scalar_lea.vmem %s0, %s181
      %p183 = pneg %p36
      %p184 = pneg %p33
      %p185 = scmp.lt.s32.totalorder %s15, 1
      %s186 = scalar_select %p185, %s15, 1
      %s187 = smul.addr %s186, 32
      %s188 = smul.addr %s187, 8
      %s189 = scalar_lea.vmem %s1, %s188
      %p190 = pneg %p62
      %p191 = pneg %p59
      %p192 = pneg %p83
      %p193 = pneg %p80
      %p194 = pneg %p104
      %p195 = pneg %p101
      %p196 = pneg %p130
      %p197 = pneg %p127
      %p198 = scmp.lt.s32.totalorder %s15, 1
      %s199 = scalar_select %p198, %s15, 1
      %s200 = smul.addr %s199, 32
      %s201 = smul.addr %s200, 8
      %s202 = scalar_lea.vmem %s4, %s201
      %p203 = scmp.lt.s32.totalorder %s15, 1
      %s204 = scalar_select %p203, %s15, 1
      %s205 = smul.addr %s204, 72
      %s206 = smul.addr %s205, 4
      %s207 = scalar_lea.vmem %s0, %s206
      %p208 = scmp.lt.s32.totalorder %s15, 1
      %s209 = scalar_select %p208, %s15, 1
      %s210 = smul.addr %s209, 32
      %s211 = smul.addr %s210, 8
      %s212 = scalar_lea.vmem %s1, %s211
      %p213 = scmp.lt.s32.totalorder %s15, 1
      %s214 = scalar_select %p213, %s15, 1
      %s215 = smul.addr %s214, 32
      %s216 = smul.addr %s215, 8
      %s217 = scalar_lea.vmem %s4, %s216
      %v219 = vlaneseq
      %v220 = vshrl.u32 %v219, 7
      %v221 = vadd.s32 %v220, 8
      %v222 = vadd.s32 %v220, 16
      %vm223 = vcmp.lt.s32.totalorder %v220, 16
      %vm224 = vcmp.lt.s32.totalorder %v221, 16
      %vm225 = vcmp.lt.s32.totalorder %v222, 16
      %v226 = vld [vmem:[%s207] sm:$0xf]
      %v227 = vld [vmem:[%s207 + $0x4] sm:$0xf]
      %v228 = vld [vmem:[%s207 + $0x8] sm:$0xf]
      %v229 = vld [vmem:[%s207 + $0xc] sm:$0xf]
      %v230 = vld [vmem:[%s207 + $0x10] sm:$0xf]
      %v231 = vld [vmem:[%s207 + $0x14] sm:$0xf]
      %v232 = vld [vmem:[%s207 + $0x18] sm:$0xf]
      %v233 = vld [vmem:[%s207 + $0x1c] sm:$0xf]
      %v234 = vld [vmem:[%s207 + $0x20] sm:$0xf]
      %v235 = vld [vmem:[%s207 + $0x24] sm:$0xf]
      %v236 = vld [vmem:[%s207 + $0x28] sm:$0xf]
      %v237 = vld [vmem:[%s207 + $0x2c] sm:$0xf]
      %v238 = vld [vmem:[%s207 + $0x30] sm:$0xf]
      %v239 = vld [vmem:[%s207 + $0x34] sm:$0xf]
      %v240 = vld [vmem:[%s207 + $0x38] sm:$0xf]
      %v241 = vld [vmem:[%s207 + $0x3c] sm:$0xf]
      %v242 = vld [vmem:[%s207 + $0x40] sm:$0xf]
      %v243 = vld [vmem:[%s207 + $0x44] sm:$0xf]
      %v244 = vld [vmem:[%s207 + $0x48] sm:$0xf]
      %v245 = vld [vmem:[%s207 + $0x4c] sm:$0xf]
      %v246 = vld [vmem:[%s207 + $0x50] sm:$0xf]
      %v247 = vld [vmem:[%s207 + $0x54] sm:$0xf]
      %v248 = vld [vmem:[%s207 + $0x58] sm:$0xf]
      %v249 = vld [vmem:[%s207 + $0x5c] sm:$0xf]
      %v250 = vld [vmem:[%s207 + $0x60] sm:$0xf]
      %v251 = vld [vmem:[%s207 + $0x64] sm:$0xf]
      %v252 = vld [vmem:[%s207 + $0x68] sm:$0xf]
      %v253 = vld [vmem:[%s207 + $0x6c] sm:$0xf]
      %v254 = vld [vmem:[%s207 + $0x70] sm:$0xf]
      %v255 = vld [vmem:[%s207 + $0x74] sm:$0xf]
      %v256 = vld [vmem:[%s207 + $0x78] sm:$0xf]
      %v257 = vld [vmem:[%s207 + $0x7c] sm:$0xf]
      %v258 = vld [vmem:[%s207 + $0x80] sm:$0xf]
      %v259 = vld [vmem:[%s207 + $0x84] sm:$0xf]
      %v260 = vld [vmem:[%s207 + $0x88] sm:$0xf]
      %v261 = vld [vmem:[%s207 + $0x8c] sm:$0xf]
      %v262 = vld [vmem:[%s207 + $0x90] sm:$0xf]
      %v263 = vld [vmem:[%s207 + $0x94] sm:$0xf]
      %v264 = vld [vmem:[%s207 + $0x98] sm:$0xf]
      %v265 = vld [vmem:[%s207 + $0x9c] sm:$0xf]
      %v266 = vld [vmem:[%s207 + $0xa0] sm:$0xf]
      %v267 = vld [vmem:[%s207 + $0xa4] sm:$0xf]
      %v268 = vld [vmem:[%s207 + $0xa8] sm:$0xf]
      %v269 = vld [vmem:[%s207 + $0xac] sm:$0xf]
      %v270 = vld [vmem:[%s207 + $0xb0] sm:$0xf]
      %v271 = vld [vmem:[%s207 + $0xb4] sm:$0xf]
      %v272 = vld [vmem:[%s207 + $0xb8] sm:$0xf]
      %v273 = vld [vmem:[%s207 + $0xbc] sm:$0xf]
      %v274 = vld [vmem:[%s207 + $0xc0] sm:$0xf]
      %v275 = vld [vmem:[%s207 + $0xc4] sm:$0xf]
      %v276 = vld [vmem:[%s207 + $0xc8] sm:$0xf]
      %v277 = vld [vmem:[%s207 + $0xcc] sm:$0xf]
      %v278 = vld [vmem:[%s207 + $0xd0] sm:$0xf]
      %v279 = vld [vmem:[%s207 + $0xd4] sm:$0xf]
      %v280 = vld [vmem:[%s207 + $0xd8] sm:$0xf]
      %v335 = vunpack.c.l.b16 %v226
      %v336 = vunpack.c.l.b16 %v227
      %v337 = vunpack.c.l.b16 %v228
      %v338 = vunpack.c.l.b16 %v229
      %v339 = vunpack.c.l.b16 %v230
      %v340 = vunpack.c.l.b16 %v231
      %v341 = vunpack.c.l.b16 %v232
      %v342 = vunpack.c.l.b16 %v233
      %v343 = vunpack.c.l.b16 %v234
      %v344 = vunpack.c.l.b16 %v235
      %v345 = vunpack.c.l.b16 %v236
      %v346 = vunpack.c.l.b16 %v237
      %v347 = vunpack.c.l.b16 %v238
      %v348 = vunpack.c.l.b16 %v239
      %v349 = vunpack.c.l.b16 %v240
      %v350 = vunpack.c.l.b16 %v241
      %v351 = vunpack.c.l.b16 %v242
      %v352 = vunpack.c.l.b16 %v243
      %v353 = vunpack.c.l.b16 %v244
      %v354 = vunpack.c.l.b16 %v245
      %v355 = vunpack.c.l.b16 %v246
      %v356 = vunpack.c.l.b16 %v247
      %v357 = vunpack.c.l.b16 %v248
      %v358 = vunpack.c.l.b16 %v249
      %v359 = vunpack.c.l.b16 %v250
      %v360 = vunpack.c.l.b16 %v251
      %v361 = vunpack.c.l.b16 %v252
      %v362 = vunpack.c.l.b16 %v253
      %v363 = vunpack.c.l.b16 %v254
      %v364 = vunpack.c.l.b16 %v255
      %v365 = vunpack.c.l.b16 %v256
      %v366 = vunpack.c.l.b16 %v257
      %v367 = vunpack.c.l.b16 %v258
      %v368 = vunpack.c.l.b16 %v259
      %v369 = vunpack.c.l.b16 %v260
      %v370 = vunpack.c.l.b16 %v261
      %v371 = vunpack.c.l.b16 %v262
      %v372 = vunpack.c.l.b16 %v263
      %v373 = vunpack.c.l.b16 %v264
      %v374 = vunpack.c.l.b16 %v265
      %v375 = vunpack.c.l.b16 %v266
      %v376 = vunpack.c.l.b16 %v267
      %v377 = vunpack.c.l.b16 %v268
      %v378 = vunpack.c.l.b16 %v269
      %v379 = vunpack.c.l.b16 %v270
      %v380 = vunpack.c.l.b16 %v271
      %v381 = vunpack.c.l.b16 %v272
      %v382 = vunpack.c.l.b16 %v273
      %v383 = vunpack.c.l.b16 %v274
      %v384 = vunpack.c.l.b16 %v275
      %v385 = vunpack.c.l.b16 %v276
      %v386 = vunpack.c.l.b16 %v277
      %v387 = vunpack.c.l.b16 %v278
      %v388 = vunpack.c.l.b16 %v279
      %v389 = vpack.c.b16 %v336, %v335
      %v390 = vpack.c.b16 %v338, %v337
      %v391 = vpack.c.b16 %v340, %v339
      %v392 = vpack.c.b16 %v342, %v341
      %v393 = vpack.c.b16 %v344, %v343
      %v394 = vpack.c.b16 %v346, %v345
      %v395 = vpack.c.b16 %v348, %v347
      %v396 = vpack.c.b16 %v350, %v349
      %v397 = vpack.c.b16 %v352, %v351
      %v398 = vpack.c.b16 %v354, %v353
      %v399 = vpack.c.b16 %v356, %v355
      %v400 = vpack.c.b16 %v358, %v357
      %v401 = vpack.c.b16 %v360, %v359
      %v402 = vpack.c.b16 %v362, %v361
      %v403 = vpack.c.b16 %v364, %v363
      %v404 = vpack.c.b16 %v366, %v365
      %v405 = vpack.c.b16 %v368, %v367
      %v406 = vpack.c.b16 %v370, %v369
      %v407 = vpack.c.b16 %v372, %v371
      %v408 = vpack.c.b16 %v374, %v373
      %v409 = vpack.c.b16 %v376, %v375
      %v410 = vpack.c.b16 %v378, %v377
      %v411 = vpack.c.b16 %v380, %v379
      %v412 = vpack.c.b16 %v382, %v381
      %v413 = vpack.c.b16 %v384, %v383
      %v414 = vpack.c.b16 %v386, %v385
      %v415 = vpack.c.b16 %v388, %v387
      %v417 = vunpack.c.l.b16 %v280
      %v418 = vpack.c.b16 %v417, %v417
      %vm419 = vsmask.f32 7424
      %v421 = vshrl.u32 %v389, 16
      %v423 = vshll.u32 %v389, 16
      %v425 = vrot.slane %v423, 1
      %v426 = vor.u32 %v421, %v425
      %v428 = vshll.u32 %v390, 16
      %v430 = vrot.slane %v428, 1
      %v431 = vsel %vm419, %v426, %v430
      %v432 = vshrl.u32 %v390, 16
      %v434 = vor.u32 %v432, %v430
      %v436 = vshll.u32 %v391, 16
      %v438 = vrot.slane %v436, 1
      %v439 = vsel %vm419, %v434, %v438
      %v440 = vshrl.u32 %v391, 16
      %v442 = vor.u32 %v440, %v438
      %v444 = vshll.u32 %v392, 16
      %v446 = vrot.slane %v444, 1
      %v447 = vsel %vm419, %v442, %v446
      %v448 = vshrl.u32 %v392, 16
      %v450 = vor.u32 %v448, %v446
      %v452 = vshll.u32 %v393, 16
      %v454 = vrot.slane %v452, 1
      %v455 = vsel %vm419, %v450, %v454
      %v456 = vshrl.u32 %v393, 16
      %v458 = vor.u32 %v456, %v454
      %v460 = vshll.u32 %v394, 16
      %v462 = vrot.slane %v460, 1
      %v463 = vsel %vm419, %v458, %v462
      %v464 = vshrl.u32 %v394, 16
      %v466 = vor.u32 %v464, %v462
      %v468 = vshll.u32 %v395, 16
      %v470 = vrot.slane %v468, 1
      %v471 = vsel %vm419, %v466, %v470
      %v472 = vshrl.u32 %v395, 16
      %v474 = vor.u32 %v472, %v470
      %v476 = vshll.u32 %v396, 16
      %v478 = vrot.slane %v476, 1
      %v479 = vsel %vm419, %v474, %v478
      %v480 = vshrl.u32 %v396, 16
      %v482 = vor.u32 %v480, %v478
      %v484 = vshll.u32 %v397, 16
      %v486 = vrot.slane %v484, 1
      %v487 = vsel %vm419, %v482, %v486
      %v488 = vshrl.u32 %v397, 16
      %v490 = vor.u32 %v488, %v486
      %v492 = vshll.u32 %v398, 16
      %v494 = vrot.slane %v492, 1
      %v495 = vsel %vm419, %v490, %v494
      %v496 = vshrl.u32 %v398, 16
      %v498 = vor.u32 %v496, %v494
      %v500 = vshll.u32 %v399, 16
      %v502 = vrot.slane %v500, 1
      %v503 = vsel %vm419, %v498, %v502
      %v504 = vshrl.u32 %v399, 16
      %v506 = vor.u32 %v504, %v502
      %v508 = vshll.u32 %v400, 16
      %v510 = vrot.slane %v508, 1
      %v511 = vsel %vm419, %v506, %v510
      %v512 = vshrl.u32 %v400, 16
      %v514 = vor.u32 %v512, %v510
      %v516 = vshll.u32 %v401, 16
      %v518 = vrot.slane %v516, 1
      %v519 = vsel %vm419, %v514, %v518
      %v520 = vshrl.u32 %v401, 16
      %v522 = vor.u32 %v520, %v518
      %v524 = vshll.u32 %v402, 16
      %v526 = vrot.slane %v524, 1
      %v527 = vsel %vm419, %v522, %v526
      %v528 = vshrl.u32 %v402, 16
      %v530 = vor.u32 %v528, %v526
      %v532 = vshll.u32 %v403, 16
      %v534 = vrot.slane %v532, 1
      %v535 = vsel %vm419, %v530, %v534
      %v536 = vshrl.u32 %v403, 16
      %v538 = vor.u32 %v536, %v534
      %v540 = vshll.u32 %v404, 16
      %v542 = vrot.slane %v540, 1
      %v543 = vsel %vm419, %v538, %v542
      %v544 = vshrl.u32 %v404, 16
      %v546 = vor.u32 %v544, %v542
      %v548 = vshll.u32 %v405, 16
      %v550 = vrot.slane %v548, 1
      %v551 = vsel %vm419, %v546, %v550
      %v552 = vshrl.u32 %v405, 16
      %v554 = vor.u32 %v552, %v550
      %v556 = vshll.u32 %v406, 16
      %v558 = vrot.slane %v556, 1
      %v559 = vsel %vm419, %v554, %v558
      %v560 = vshrl.u32 %v406, 16
      %v562 = vor.u32 %v560, %v558
      %v564 = vshll.u32 %v407, 16
      %v566 = vrot.slane %v564, 1
      %v567 = vsel %vm419, %v562, %v566
      %v568 = vshrl.u32 %v407, 16
      %v570 = vor.u32 %v568, %v566
      %v572 = vshll.u32 %v408, 16
      %v574 = vrot.slane %v572, 1
      %v575 = vsel %vm419, %v570, %v574
      %v576 = vshrl.u32 %v408, 16
      %v578 = vor.u32 %v576, %v574
      %v580 = vshll.u32 %v409, 16
      %v582 = vrot.slane %v580, 1
      %v583 = vsel %vm419, %v578, %v582
      %v584 = vshrl.u32 %v409, 16
      %v586 = vor.u32 %v584, %v582
      %v588 = vshll.u32 %v410, 16
      %v590 = vrot.slane %v588, 1
      %v591 = vsel %vm419, %v586, %v590
      %v592 = vshrl.u32 %v410, 16
      %v594 = vor.u32 %v592, %v590
      %v596 = vshll.u32 %v411, 16
      %v598 = vrot.slane %v596, 1
      %v599 = vsel %vm419, %v594, %v598
      %v600 = vshrl.u32 %v411, 16
      %v602 = vor.u32 %v600, %v598
      %v604 = vshll.u32 %v412, 16
      %v606 = vrot.slane %v604, 1
      %v607 = vsel %vm419, %v602, %v606
      %v608 = vshrl.u32 %v412, 16
      %v610 = vor.u32 %v608, %v606
      %v612 = vshll.u32 %v413, 16
      %v614 = vrot.slane %v612, 1
      %v615 = vsel %vm419, %v610, %v614
      %v616 = vshrl.u32 %v413, 16
      %v618 = vor.u32 %v616, %v614
      %v620 = vshll.u32 %v414, 16
      %v622 = vrot.slane %v620, 1
      %v623 = vsel %vm419, %v618, %v622
      %v624 = vshrl.u32 %v414, 16
      %v626 = vor.u32 %v624, %v622
      %v628 = vshll.u32 %v415, 16
      %v630 = vrot.slane %v628, 1
      %v631 = vsel %vm419, %v626, %v630
      %v632 = vshrl.u32 %v415, 16
      %v634 = vor.u32 %v632, %v630
      %v636 = vshll.u32 %v418, 16
      %v638 = vrot.slane %v636, 1
      %v639 = vsel %vm419, %v634, %v638
      %640 = vrot.lane.b32.xlu0 %v431, 4
      %v641 = vpop.permute.xlu0 %640
      %642 = vrot.lane.b32.xlu0 %v439, 4
      %v643 = vpop.permute.xlu0 %642
      %644 = vrot.lane.b32.xlu0 %v447, 4
      %v645 = vpop.permute.xlu0 %644
      %646 = vrot.lane.b32.xlu0 %v455, 4
      %v647 = vpop.permute.xlu0 %646
      %648 = vrot.lane.b32.xlu0 %v463, 4
      %v649 = vpop.permute.xlu0 %648
      %650 = vrot.lane.b32.xlu0 %v471, 4
      %v651 = vpop.permute.xlu0 %650
      %652 = vrot.lane.b32.xlu0 %v479, 4
      %v653 = vpop.permute.xlu0 %652
      %654 = vrot.lane.b32.xlu0 %v487, 4
      %v655 = vpop.permute.xlu0 %654
      %656 = vrot.lane.b32.xlu0 %v495, 4
      %v657 = vpop.permute.xlu0 %656
      %658 = vrot.lane.b32.xlu0 %v503, 4
      %v659 = vpop.permute.xlu0 %658
      %660 = vrot.lane.b32.xlu0 %v511, 4
      %v661 = vpop.permute.xlu0 %660
      %662 = vrot.lane.b32.xlu0 %v519, 4
      %v663 = vpop.permute.xlu0 %662
      %664 = vrot.lane.b32.xlu0 %v527, 4
      %v665 = vpop.permute.xlu0 %664
      %666 = vrot.lane.b32.xlu0 %v535, 4
      %v667 = vpop.permute.xlu0 %666
      %668 = vrot.lane.b32.xlu0 %v543, 4
      %v669 = vpop.permute.xlu0 %668
      %670 = vrot.lane.b32.xlu0 %v551, 4
      %v671 = vpop.permute.xlu0 %670
      %672 = vrot.lane.b32.xlu0 %v559, 4
      %v673 = vpop.permute.xlu0 %672
      %674 = vrot.lane.b32.xlu0 %v567, 4
      %v675 = vpop.permute.xlu0 %674
      %676 = vrot.lane.b32.xlu0 %v575, 4
      %v677 = vpop.permute.xlu0 %676
      %678 = vrot.lane.b32.xlu0 %v583, 4
      %v679 = vpop.permute.xlu0 %678
      %680 = vrot.lane.b32.xlu0 %v591, 4
      %v681 = vpop.permute.xlu0 %680
      %682 = vrot.lane.b32.xlu0 %v599, 4
      %v683 = vpop.permute.xlu0 %682
      %684 = vrot.lane.b32.xlu0 %v607, 4
      %v685 = vpop.permute.xlu0 %684
      %686 = vrot.lane.b32.xlu0 %v615, 4
      %v687 = vpop.permute.xlu0 %686
      %688 = vrot.lane.b32.xlu0 %v623, 4
      %v689 = vpop.permute.xlu0 %688
      %690 = vrot.lane.b32.xlu0 %v631, 4
      %v691 = vpop.permute.xlu0 %690
      %692 = vrot.lane.b32.xlu0 %v639, 4
      %v693 = vpop.permute.xlu0 %692
      %vm694 = vcmask 1046528
      %v695 = vrot.slane %v389, 1
      %v696 = vrot.slane %v390, 1
      %v697 = vsel %vm694, %v695, %v696
      %v698 = vrot.slane %v391, 1
      %v699 = vsel %vm694, %v696, %v698
      %v700 = vrot.slane %v392, 1
      %v701 = vsel %vm694, %v698, %v700
      %v702 = vrot.slane %v393, 1
      %v703 = vsel %vm694, %v700, %v702
      %v704 = vrot.slane %v394, 1
      %v705 = vsel %vm694, %v702, %v704
      %v706 = vrot.slane %v395, 1
      %v707 = vsel %vm694, %v704, %v706
      %v708 = vrot.slane %v396, 1
      %v709 = vsel %vm694, %v706, %v708
      %v710 = vrot.slane %v397, 1
      %v711 = vsel %vm694, %v708, %v710
      %v712 = vrot.slane %v398, 1
      %v713 = vsel %vm694, %v710, %v712
      %v714 = vrot.slane %v399, 1
      %v715 = vsel %vm694, %v712, %v714
      %v716 = vrot.slane %v400, 1
      %v717 = vsel %vm694, %v714, %v716
      %v718 = vrot.slane %v401, 1
      %v719 = vsel %vm694, %v716, %v718
      %v720 = vrot.slane %v402, 1
      %v721 = vsel %vm694, %v718, %v720
      %v722 = vrot.slane %v403, 1
      %v723 = vsel %vm694, %v720, %v722
      %v724 = vrot.slane %v404, 1
      %v725 = vsel %vm694, %v722, %v724
      %v726 = vrot.slane %v405, 1
      %v727 = vsel %vm694, %v724, %v726
      %v728 = vrot.slane %v406, 1
      %v729 = vsel %vm694, %v726, %v728
      %v730 = vrot.slane %v407, 1
      %v731 = vsel %vm694, %v728, %v730
      %v732 = vrot.slane %v408, 1
      %v733 = vsel %vm694, %v730, %v732
      %v734 = vrot.slane %v409, 1
      %v735 = vsel %vm694, %v732, %v734
      %v736 = vrot.slane %v410, 1
      %v737 = vsel %vm694, %v734, %v736
      %v738 = vrot.slane %v411, 1
      %v739 = vsel %vm694, %v736, %v738
      %v740 = vrot.slane %v412, 1
      %v741 = vsel %vm694, %v738, %v740
      %v742 = vrot.slane %v413, 1
      %v743 = vsel %vm694, %v740, %v742
      %v744 = vrot.slane %v414, 1
      %v745 = vsel %vm694, %v742, %v744
      %v746 = vrot.slane %v415, 1
      %v747 = vsel %vm694, %v744, %v746
      %v748 = vrot.slane %v418, 1
      %v749 = vsel %vm694, %v746, %v748
      %750 = vrot.lane.b32.xlu0 %v697, 8
      %v751 = vpop.permute.xlu0 %750
      %752 = vrot.lane.b32.xlu0 %v699, 8
      %v753 = vpop.permute.xlu0 %752
      %754 = vrot.lane.b32.xlu0 %v701, 8
      %v755 = vpop.permute.xlu0 %754
      %756 = vrot.lane.b32.xlu0 %v703, 8
      %v757 = vpop.permute.xlu0 %756
      %758 = vrot.lane.b32.xlu0 %v705, 8
      %v759 = vpop.permute.xlu0 %758
      %760 = vrot.lane.b32.xlu0 %v707, 8
      %v761 = vpop.permute.xlu0 %760
      %762 = vrot.lane.b32.xlu0 %v709, 8
      %v763 = vpop.permute.xlu0 %762
      %764 = vrot.lane.b32.xlu0 %v711, 8
      %v765 = vpop.permute.xlu0 %764
      %766 = vrot.lane.b32.xlu0 %v713, 8
      %v767 = vpop.permute.xlu0 %766
      %768 = vrot.lane.b32.xlu0 %v715, 8
      %v769 = vpop.permute.xlu0 %768
      %770 = vrot.lane.b32.xlu0 %v717, 8
      %v771 = vpop.permute.xlu0 %770
      %772 = vrot.lane.b32.xlu0 %v719, 8
      %v773 = vpop.permute.xlu0 %772
      %774 = vrot.lane.b32.xlu0 %v721, 8
      %v775 = vpop.permute.xlu0 %774
      %776 = vrot.lane.b32.xlu0 %v723, 8
      %v777 = vpop.permute.xlu0 %776
      %778 = vrot.lane.b32.xlu0 %v725, 8
      %v779 = vpop.permute.xlu0 %778
      %780 = vrot.lane.b32.xlu0 %v727, 8
      %v781 = vpop.permute.xlu0 %780
      %782 = vrot.lane.b32.xlu0 %v729, 8
      %v783 = vpop.permute.xlu0 %782
      %784 = vrot.lane.b32.xlu0 %v731, 8
      %v785 = vpop.permute.xlu0 %784
      %786 = vrot.lane.b32.xlu0 %v733, 8
      %v787 = vpop.permute.xlu0 %786
      %788 = vrot.lane.b32.xlu0 %v735, 8
      %v789 = vpop.permute.xlu0 %788
      %790 = vrot.lane.b32.xlu0 %v737, 8
      %v791 = vpop.permute.xlu0 %790
      %792 = vrot.lane.b32.xlu0 %v739, 8
      %v793 = vpop.permute.xlu0 %792
      %794 = vrot.lane.b32.xlu0 %v741, 8
      %v795 = vpop.permute.xlu0 %794
      %796 = vrot.lane.b32.xlu0 %v743, 8
      %v797 = vpop.permute.xlu0 %796
      %798 = vrot.lane.b32.xlu0 %v745, 8
      %v799 = vpop.permute.xlu0 %798
      %800 = vrot.lane.b32.xlu0 %v747, 8
      %v801 = vpop.permute.xlu0 %800
      %802 = vrot.lane.b32.xlu0 %v749, 8
      %v803 = vpop.permute.xlu0 %802
      %vm804 = vcmask 31744
      %v806 = vsel %vm804, %v389, %v641
      %v808 = vsel %vm804, %v390, %v643
      %v810 = vsel %vm804, %v391, %v645
      %v812 = vsel %vm804, %v392, %v647
      %v814 = vsel %vm804, %v393, %v649
      %v816 = vsel %vm804, %v394, %v651
      %v818 = vsel %vm804, %v395, %v653
      %v820 = vsel %vm804, %v396, %v655
      %v822 = vsel %vm804, %v397, %v657
      %v824 = vsel %vm804, %v398, %v659
      %v826 = vsel %vm804, %v399, %v661
      %v828 = vsel %vm804, %v400, %v663
      %v830 = vsel %vm804, %v401, %v665
      %v832 = vsel %vm804, %v402, %v667
      %v834 = vsel %vm804, %v403, %v669
      %v836 = vsel %vm804, %v404, %v671
      %v838 = vsel %vm804, %v405, %v673
      %v840 = vsel %vm804, %v406, %v675
      %v842 = vsel %vm804, %v407, %v677
      %v844 = vsel %vm804, %v408, %v679
      %v846 = vsel %vm804, %v409, %v681
      %v848 = vsel %vm804, %v410, %v683
      %v850 = vsel %vm804, %v411, %v685
      %v852 = vsel %vm804, %v412, %v687
      %v854 = vsel %vm804, %v413, %v689
      %v856 = vsel %vm804, %v414, %v691
      %v858 = vsel %vm804, %v415, %v693
      %vm859 = vcmask 64512
      %v861 = vsel %vm859, %v806, %v751
      %v863 = vsel %vm859, %v808, %v753
      %v865 = vsel %vm859, %v810, %v755
      %v867 = vsel %vm859, %v812, %v757
      %v869 = vsel %vm859, %v814, %v759
      %v871 = vsel %vm859, %v816, %v761
      %v873 = vsel %vm859, %v818, %v763
      %v875 = vsel %vm859, %v820, %v765
      %v877 = vsel %vm859, %v822, %v767
      %v879 = vsel %vm859, %v824, %v769
      %v881 = vsel %vm859, %v826, %v771
      %v883 = vsel %vm859, %v828, %v773
      %v885 = vsel %vm859, %v830, %v775
      %v887 = vsel %vm859, %v832, %v777
      %v889 = vsel %vm859, %v834, %v779
      %v891 = vsel %vm859, %v836, %v781
      %v893 = vsel %vm859, %v838, %v783
      %v895 = vsel %vm859, %v840, %v785
      %v897 = vsel %vm859, %v842, %v787
      %v899 = vsel %vm859, %v844, %v789
      %v901 = vsel %vm859, %v846, %v791
      %v903 = vsel %vm859, %v848, %v793
      %v905 = vsel %vm859, %v850, %v795
      %v907 = vsel %vm859, %v852, %v797
      %v909 = vsel %vm859, %v854, %v799
      %v911 = vsel %vm859, %v856, %v801
      %v913 = vsel %vm859, %v858, %v803
      %v914 = vld [vmem:[%s2] sm:$0xf]
      %v915 = vld [vmem:[%s2 + $0x4] sm:$0x3]
      %v918 = vunpack.c.l.b16 %v914
      %v919 = vunpack.c.l.b16 %v915
      %v920 = vpack.c.b16 %v919, %v918
      %vm921 = vcmask 97280
      %v922 = vsel %vm921, %v861, 0
      %v924 = vsel %vm921, %v863, 0
      %v926 = vsel %vm921, %v865, 0
      %v928 = vsel %vm921, %v867, 0
      %v930 = vsel %vm921, %v869, 0
      %v932 = vsel %vm921, %v871, 0
      %v934 = vsel %vm921, %v873, 0
      %v936 = vsel %vm921, %v875, 0
      %v938 = vsel %vm921, %v877, 0
      %v940 = vsel %vm921, %v879, 0
      %v942 = vsel %vm921, %v881, 0
      %v944 = vsel %vm921, %v883, 0
      %v946 = vsel %vm921, %v885, 0
      %v948 = vsel %vm921, %v887, 0
      %v950 = vsel %vm921, %v889, 0
      %v952 = vsel %vm921, %v891, 0
      %v954 = vsel %vm921, %v893, 0
      %v956 = vsel %vm921, %v895, 0
      %v958 = vsel %vm921, %v897, 0
      %v960 = vsel %vm921, %v899, 0
      %v962 = vsel %vm921, %v901, 0
      %v964 = vsel %vm921, %v903, 0
      %v966 = vsel %vm921, %v905, 0
      %v968 = vsel %vm921, %v907, 0
      %vm970 = vcmask 1045504
      %v972 = vsel %vm970, %v920, 0
      %974 = vmatpush.bf16.msra.mxu0 0
      %975 = vmatpush.bf16.msra.mxu0 0
      %976 = vmatpush.bf16.msra.mxu0 0
      %977 = vmatpush.bf16.msra.mxu0 0
      %978 = vmatpush.bf16.msra.mxu0 0
      %979 = vmatpush.bf16.msra.mxu0 0
      %980 = vmatpush.bf16.msra.mxu0 0
      %981 = vmatpush.bf16.msra.mxu0 %v972
      %982 = vmatmul.bf16.gmra.mxu0 %v922
      %v983 = vpop.f32.mrf.mxu0
      %v984 = vadd.f32 0.0, %v983
      %v985 = vpop.f32.mrf.mxu0
      %v986 = vadd.f32 0.0, %v985
      %987 = vmatmul.bf16.gmra.mxu0 %v924
      %v988 = vpop.f32.mrf.mxu0
      %v989 = vadd.f32 0.0, %v988
      %v990 = vpop.f32.mrf.mxu0
      %v991 = vadd.f32 0.0, %v990
      %992 = vmatmul.bf16.gmra.mxu0 %v926
      %v993 = vpop.f32.mrf.mxu0
      %v994 = vadd.f32 0.0, %v993
      %v995 = vpop.f32.mrf.mxu0
      %v996 = vadd.f32 0.0, %v995
      %997 = vmatmul.bf16.gmra.mxu0 %v928
      %v998 = vpop.f32.mrf.mxu0
      %v999 = vadd.f32 0.0, %v998
      %v1000 = vpop.f32.mrf.mxu0
      %v1001 = vadd.f32 0.0, %v1000
      %1002 = vmatmul.bf16.gmra.mxu0 %v930
      %v1003 = vpop.f32.mrf.mxu0
      %v1004 = vadd.f32 0.0, %v1003
      %v1005 = vpop.f32.mrf.mxu0
      %v1006 = vadd.f32 0.0, %v1005
      %1007 = vmatmul.bf16.gmra.mxu0 %v932
      %v1008 = vpop.f32.mrf.mxu0
      %v1009 = vadd.f32 0.0, %v1008
      %v1010 = vpop.f32.mrf.mxu0
      %v1011 = vadd.f32 0.0, %v1010
      %1012 = vmatmul.bf16.gmra.mxu0 %v934
      %v1013 = vpop.f32.mrf.mxu0
      %v1014 = vadd.f32 0.0, %v1013
      %v1015 = vpop.f32.mrf.mxu0
      %v1016 = vadd.f32 0.0, %v1015
      %1017 = vmatmul.bf16.gmra.mxu0 %v936
      %v1018 = vpop.f32.mrf.mxu0
      %v1019 = vadd.f32 0.0, %v1018
      %v1020 = vpop.f32.mrf.mxu0
      %v1021 = vadd.f32 0.0, %v1020
      %1022 = vmatmul.bf16.gmra.mxu0 %v938
      %v1023 = vpop.f32.mrf.mxu0
      %v1024 = vadd.f32 0.0, %v1023
      %v1025 = vpop.f32.mrf.mxu0
      %v1026 = vadd.f32 0.0, %v1025
      %1027 = vmatmul.bf16.gmra.mxu0 %v940
      %v1028 = vpop.f32.mrf.mxu0
      %v1029 = vadd.f32 0.0, %v1028
      %v1030 = vpop.f32.mrf.mxu0
      %v1031 = vadd.f32 0.0, %v1030
      %1032 = vmatmul.bf16.gmra.mxu0 %v942
      %v1033 = vpop.f32.mrf.mxu0
      %v1034 = vadd.f32 0.0, %v1033
      %v1035 = vpop.f32.mrf.mxu0
      %v1036 = vadd.f32 0.0, %v1035
      %1037 = vmatmul.bf16.gmra.mxu0 %v944
      %v1038 = vpop.f32.mrf.mxu0
      %v1039 = vadd.f32 0.0, %v1038
      %v1040 = vpop.f32.mrf.mxu0
      %v1041 = vadd.f32 0.0, %v1040
      %1042 = vmatmul.bf16.gmra.mxu0 %v946
      %v1043 = vpop.f32.mrf.mxu0
      %v1044 = vadd.f32 0.0, %v1043
      %v1045 = vpop.f32.mrf.mxu0
      %v1046 = vadd.f32 0.0, %v1045
      %1047 = vmatmul.bf16.gmra.mxu0 %v948
      %v1048 = vpop.f32.mrf.mxu0
      %v1049 = vadd.f32 0.0, %v1048
      %v1050 = vpop.f32.mrf.mxu0
      %v1051 = vadd.f32 0.0, %v1050
      %1052 = vmatmul.bf16.gmra.mxu0 %v950
      %v1053 = vpop.f32.mrf.mxu0
      %v1054 = vadd.f32 0.0, %v1053
      %v1055 = vpop.f32.mrf.mxu0
      %v1056 = vadd.f32 0.0, %v1055
      %1057 = vmatmul.bf16.gmra.mxu0 %v952
      %v1058 = vpop.f32.mrf.mxu0
      %v1059 = vadd.f32 0.0, %v1058
      %v1060 = vpop.f32.mrf.mxu0
      %v1061 = vadd.f32 0.0, %v1060
      %1062 = vmatmul.bf16.gmra.mxu0 %v954
      %v1063 = vpop.f32.mrf.mxu0
      %v1064 = vadd.f32 0.0, %v1063
      %v1065 = vpop.f32.mrf.mxu0
      %v1066 = vadd.f32 0.0, %v1065
      %1067 = vmatmul.bf16.gmra.mxu0 %v956
      %v1068 = vpop.f32.mrf.mxu0
      %v1069 = vadd.f32 0.0, %v1068
      %v1070 = vpop.f32.mrf.mxu0
      %v1071 = vadd.f32 0.0, %v1070
      %1072 = vmatmul.bf16.gmra.mxu0 %v958
      %v1073 = vpop.f32.mrf.mxu0
      %v1074 = vadd.f32 0.0, %v1073
      %v1075 = vpop.f32.mrf.mxu0
      %v1076 = vadd.f32 0.0, %v1075
      %1077 = vmatmul.bf16.gmra.mxu0 %v960
      %v1078 = vpop.f32.mrf.mxu0
      %v1079 = vadd.f32 0.0, %v1078
      %v1080 = vpop.f32.mrf.mxu0
      %v1081 = vadd.f32 0.0, %v1080
      %1082 = vmatmul.bf16.gmra.mxu0 %v962
      %v1083 = vpop.f32.mrf.mxu0
      %v1084 = vadd.f32 0.0, %v1083
      %v1085 = vpop.f32.mrf.mxu0
      %v1086 = vadd.f32 0.0, %v1085
      %1087 = vmatmul.bf16.gmra.mxu0 %v964
      %v1088 = vpop.f32.mrf.mxu0
      %v1089 = vadd.f32 0.0, %v1088
      %v1090 = vpop.f32.mrf.mxu0
      %v1091 = vadd.f32 0.0, %v1090
      %1092 = vmatmul.bf16.gmra.mxu0 %v966
      %v1093 = vpop.f32.mrf.mxu0
      %v1094 = vadd.f32 0.0, %v1093
      %v1095 = vpop.f32.mrf.mxu0
      %v1096 = vadd.f32 0.0, %v1095
      %1097 = vmatmul.bf16.gmra.mxu0 %v968
      %v1098 = vpop.f32.mrf.mxu0
      %v1099 = vadd.f32 0.0, %v1098
      %v1100 = vpop.f32.mrf.mxu0
      %v1101 = vadd.f32 0.0, %v1100
      %1102 = vdwg.mxu0
      %1103 = vst.msk [vmem:[#allocation2] sm:$0xff] %vm804, %v984
      %1104 = vst.msk [vmem:[#allocation2 + $0x8] sm:$0xff] %vm804, %v986
      %1105 = vst.msk [vmem:[#allocation2 + $0x10] sm:$0xff] %vm804, %v989
      %1106 = vst.msk [vmem:[#allocation2 + $0x18] sm:$0xff] %vm804, %v991
      %1107 = vst.msk [vmem:[#allocation2 + $0x20] sm:$0xff] %vm804, %v994
      %1108 = vst.msk [vmem:[#allocation2 + $0x28] sm:$0xff] %vm804, %v996
      %1109 = vst.msk [vmem:[#allocation2 + $0x30] sm:$0xff] %vm804, %v999
      %1110 = vst.msk [vmem:[#allocation2 + $0x38] sm:$0xff] %vm804, %v1001
      %1111 = vst.msk [vmem:[#allocation2 + $0x40] sm:$0xff] %vm804, %v1004
      %1112 = vst.msk [vmem:[#allocation2 + $0x48] sm:$0xff] %vm804, %v1006
      %1113 = vst.msk [vmem:[#allocation2 + $0x50] sm:$0xff] %vm804, %v1009
      %1114 = vst.msk [vmem:[#allocation2 + $0x58] sm:$0xff] %vm804, %v1011
      %1115 = vst.msk [vmem:[#allocation2 + $0x60] sm:$0xff] %vm804, %v1014
      %1116 = vst.msk [vmem:[#allocation2 + $0x68] sm:$0xff] %vm804, %v1016
      %1117 = vst.msk [vmem:[#allocation2 + $0x70] sm:$0xff] %vm804, %v1019
      %1118 = vst.msk [vmem:[#allocation2 + $0x78] sm:$0xff] %vm804, %v1021
      %1119 = vst.msk [vmem:[#allocation2 + $0x80] sm:$0xff] %vm804, %v1024
      %1120 = vst.msk [vmem:[#allocation2 + $0x88] sm:$0xff] %vm804, %v1026
      %1121 = vst.msk [vmem:[#allocation2 + $0x90] sm:$0xff] %vm804, %v1029
      %1122 = vst.msk [vmem:[#allocation2 + $0x98] sm:$0xff] %vm804, %v1031
      %1123 = vst.msk [vmem:[#allocation2 + $0xa0] sm:$0xff] %vm804, %v1034
      %1124 = vst.msk [vmem:[#allocation2 + $0xa8] sm:$0xff] %vm804, %v1036
      %1125 = vst.msk [vmem:[#allocation2 + $0xb0] sm:$0xff] %vm804, %v1039
      %1126 = vst.msk [vmem:[#allocation2 + $0xb8] sm:$0xff] %vm804, %v1041
      %1127 = vst.msk [vmem:[#allocation2 + $0xc0] sm:$0xff] %vm804, %v1044
      %1128 = vst.msk [vmem:[#allocation2 + $0xc8] sm:$0xff] %vm804, %v1046
      %1129 = vst.msk [vmem:[#allocation2 + $0xd0] sm:$0xff] %vm804, %v1049
      %1130 = vst.msk [vmem:[#allocation2 + $0xd8] sm:$0xff] %vm804, %v1051
      %1131 = vst.msk [vmem:[#allocation2 + $0xe0] sm:$0xff] %vm804, %v1054
      %1132 = vst.msk [vmem:[#allocation2 + $0xe8] sm:$0xff] %vm804, %v1056
      %1133 = vst.msk [vmem:[#allocation2 + $0xf0] sm:$0xff] %vm804, %v1059
      %1134 = vst.msk [vmem:[#allocation2 + $0xf8] sm:$0xff] %vm804, %v1061
      %1135 = vst.msk [vmem:[#allocation2 + $0x100] sm:$0xff] %vm804, %v1064
      %1136 = vst.msk [vmem:[#allocation2 + $0x108] sm:$0xff] %vm804, %v1066
      %1137 = vst.msk [vmem:[#allocation2 + $0x110] sm:$0xff] %vm804, %v1069
      %1138 = vst.msk [vmem:[#allocation2 + $0x118] sm:$0xff] %vm804, %v1071
      %1139 = vst.msk [vmem:[#allocation2 + $0x120] sm:$0xff] %vm804, %v1074
      %1140 = vst.msk [vmem:[#allocation2 + $0x128] sm:$0xff] %vm804, %v1076
      %1141 = vst.msk [vmem:[#allocation2 + $0x130] sm:$0xff] %vm804, %v1079
      %1142 = vst.msk [vmem:[#allocation2 + $0x138] sm:$0xff] %vm804, %v1081
      %1143 = vst.msk [vmem:[#allocation2 + $0x140] sm:$0xff] %vm804, %v1084
      %1144 = vst.msk [vmem:[#allocation2 + $0x148] sm:$0xff] %vm804, %v1086
      %1145 = vst.msk [vmem:[#allocation2 + $0x150] sm:$0xff] %vm804, %v1089
      %1146 = vst.msk [vmem:[#allocation2 + $0x158] sm:$0xff] %vm804, %v1091
      %1147 = vst.msk [vmem:[#allocation2 + $0x160] sm:$0xff] %vm804, %v1094
      %1148 = vst.msk [vmem:[#allocation2 + $0x168] sm:$0xff] %vm804, %v1096
      %1149 = vst.msk [vmem:[#allocation2 + $0x170] sm:$0xff] %vm804, %v1099
      %1150 = vst.msk [vmem:[#allocation2 + $0x178] sm:$0xff] %vm804, %v1101
      %v1151 = vld [vmem:[#allocation2] sm:$0xff]
      %v1152 = vld [vmem:[#allocation2 + $0x8] sm:$0xff]
      %v1153 = vld [vmem:[#allocation2 + $0x10] sm:$0xff]
      %v1154 = vld [vmem:[#allocation2 + $0x18] sm:$0xff]
      %v1155 = vld [vmem:[#allocation2 + $0x20] sm:$0xff]
      %v1156 = vld [vmem:[#allocation2 + $0x28] sm:$0xff]
      %v1157 = vld [vmem:[#allocation2 + $0x30] sm:$0xff]
      %v1158 = vld [vmem:[#allocation2 + $0x38] sm:$0xff]
      %v1159 = vld [vmem:[#allocation2 + $0x40] sm:$0xff]
      %v1160 = vld [vmem:[#allocation2 + $0x48] sm:$0xff]
      %v1161 = vld [vmem:[#allocation2 + $0x50] sm:$0xff]
      %v1162 = vld [vmem:[#allocation2 + $0x58] sm:$0xff]
      %v1163 = vld [vmem:[#allocation2 + $0x60] sm:$0xff]
      %v1164 = vld [vmem:[#allocation2 + $0x68] sm:$0xff]
      %v1165 = vld [vmem:[#allocation2 + $0x70] sm:$0xff]
      %v1166 = vld [vmem:[#allocation2 + $0x78] sm:$0xff]
      %v1167 = vld [vmem:[#allocation2 + $0x80] sm:$0xff]
      %v1168 = vld [vmem:[#allocation2 + $0x88] sm:$0xff]
      %v1169 = vld [vmem:[#allocation2 + $0x90] sm:$0xff]
      %v1170 = vld [vmem:[#allocation2 + $0x98] sm:$0xff]
      %v1171 = vld [vmem:[#allocation2 + $0xa0] sm:$0xff]
      %v1172 = vld [vmem:[#allocation2 + $0xa8] sm:$0xff]
      %v1173 = vld [vmem:[#allocation2 + $0xb0] sm:$0xff]
      %v1174 = vld [vmem:[#allocation2 + $0xb8] sm:$0xff]
      %v1175 = vld [vmem:[#allocation2 + $0xc0] sm:$0xff]
      %v1176 = vld [vmem:[#allocation2 + $0xc8] sm:$0xff]
      %v1177 = vld [vmem:[#allocation2 + $0xd0] sm:$0xff]
      %v1178 = vld [vmem:[#allocation2 + $0xd8] sm:$0xff]
      %v1179 = vld [vmem:[#allocation2 + $0xe0] sm:$0xff]
      %v1180 = vld [vmem:[#allocation2 + $0xe8] sm:$0xff]
      %v1181 = vld [vmem:[#allocation2 + $0xf0] sm:$0xff]
      %v1182 = vld [vmem:[#allocation2 + $0xf8] sm:$0xff]
      %v1183 = vld [vmem:[#allocation2 + $0x100] sm:$0xff]
      %v1184 = vld [vmem:[#allocation2 + $0x108] sm:$0xff]
      %v1185 = vld [vmem:[#allocation2 + $0x110] sm:$0xff]
      %v1186 = vld [vmem:[#allocation2 + $0x118] sm:$0xff]
      %v1187 = vld [vmem:[#allocation2 + $0x120] sm:$0xff]
      %v1188 = vld [vmem:[#allocation2 + $0x128] sm:$0xff]
      %v1189 = vld [vmem:[#allocation2 + $0x130] sm:$0xff]
      %v1190 = vld [vmem:[#allocation2 + $0x138] sm:$0xff]
      %v1191 = vld [vmem:[#allocation2 + $0x140] sm:$0xff]
      %v1192 = vld [vmem:[#allocation2 + $0x148] sm:$0xff]
      %v1193 = vld [vmem:[#allocation2 + $0x150] sm:$0xff]
      %v1194 = vld [vmem:[#allocation2 + $0x158] sm:$0xff]
      %v1195 = vld [vmem:[#allocation2 + $0x160] sm:$0xff]
      %v1196 = vld [vmem:[#allocation2 + $0x168] sm:$0xff]
      %v1197 = vld [vmem:[#allocation2 + $0x170] sm:$0xff]
      %v1198 = vld [vmem:[#allocation2 + $0x178] sm:$0xff]
      %s1199 = scalar_lea.vmem %s2, 8
      %v1200 = vld [vmem:[%s1199] sm:$0xf]
      %v1201 = vld [vmem:[%s1199 + $0x4] sm:$0x3]
      %vm1227 = vcmask 1043456
      %v1228 = vrot.slane %v863, 4
      %v1229 = vrot.slane %v865, 4
      %v1230 = vsel %vm1227, %v1228, %v1229
      %v1231 = vrot.slane %v867, 4
      %v1232 = vsel %vm1227, %v1229, %v1231
      %v1233 = vrot.slane %v869, 4
      %v1234 = vsel %vm1227, %v1231, %v1233
      %v1235 = vrot.slane %v871, 4
      %v1236 = vsel %vm1227, %v1233, %v1235
      %v1237 = vrot.slane %v873, 4
      %v1238 = vsel %vm1227, %v1235, %v1237
      %v1239 = vrot.slane %v875, 4
      %v1240 = vsel %vm1227, %v1237, %v1239
      %v1241 = vrot.slane %v877, 4
      %v1242 = vsel %vm1227, %v1239, %v1241
      %v1243 = vrot.slane %v879, 4
      %v1244 = vsel %vm1227, %v1241, %v1243
      %v1245 = vrot.slane %v881, 4
      %v1246 = vsel %vm1227, %v1243, %v1245
      %v1247 = vrot.slane %v883, 4
      %v1248 = vsel %vm1227, %v1245, %v1247
      %v1249 = vrot.slane %v885, 4
      %v1250 = vsel %vm1227, %v1247, %v1249
      %v1251 = vrot.slane %v887, 4
      %v1252 = vsel %vm1227, %v1249, %v1251
      %v1253 = vrot.slane %v889, 4
      %v1254 = vsel %vm1227, %v1251, %v1253
      %v1255 = vrot.slane %v891, 4
      %v1256 = vsel %vm1227, %v1253, %v1255
      %v1257 = vrot.slane %v893, 4
      %v1258 = vsel %vm1227, %v1255, %v1257
      %v1259 = vrot.slane %v895, 4
      %v1260 = vsel %vm1227, %v1257, %v1259
      %v1261 = vrot.slane %v897, 4
      %v1262 = vsel %vm1227, %v1259, %v1261
      %v1263 = vrot.slane %v899, 4
      %v1264 = vsel %vm1227, %v1261, %v1263
      %v1265 = vrot.slane %v901, 4
      %v1266 = vsel %vm1227, %v1263, %v1265
      %v1267 = vrot.slane %v903, 4
      %v1268 = vsel %vm1227, %v1265, %v1267
      %v1269 = vrot.slane %v905, 4
      %v1270 = vsel %vm1227, %v1267, %v1269
      %v1271 = vrot.slane %v907, 4
      %v1272 = vsel %vm1227, %v1269, %v1271
      %v1273 = vrot.slane %v909, 4
      %v1274 = vsel %vm1227, %v1271, %v1273
      %v1275 = vrot.slane %v911, 4
      %v1276 = vsel %vm1227, %v1273, %v1275
      %v1279 = vunpack.c.l.b16 %v1200
      %v1280 = vunpack.c.l.b16 %v1201
      %v1281 = vpack.c.b16 %v1280, %v1279
      %v1283 = vsel %vm921, %v1230, 0
      %v1286 = vsel %vm921, %v1232, 0
      %v1289 = vsel %vm921, %v1234, 0
      %v1292 = vsel %vm921, %v1236, 0
      %v1295 = vsel %vm921, %v1238, 0
      %v1298 = vsel %vm921, %v1240, 0
      %v1301 = vsel %vm921, %v1242, 0
      %v1304 = vsel %vm921, %v1244, 0
      %v1307 = vsel %vm921, %v1246, 0
      %v1310 = vsel %vm921, %v1248, 0
      %v1313 = vsel %vm921, %v1250, 0
      %v1316 = vsel %vm921, %v1252, 0
      %v1319 = vsel %vm921, %v1254, 0
      %v1322 = vsel %vm921, %v1256, 0
      %v1325 = vsel %vm921, %v1258, 0
      %v1328 = vsel %vm921, %v1260, 0
      %v1331 = vsel %vm921, %v1262, 0
      %v1334 = vsel %vm921, %v1264, 0
      %v1337 = vsel %vm921, %v1266, 0
      %v1340 = vsel %vm921, %v1268, 0
      %v1343 = vsel %vm921, %v1270, 0
      %v1346 = vsel %vm921, %v1272, 0
      %v1349 = vsel %vm921, %v1274, 0
      %v1352 = vsel %vm921, %v1276, 0
      %v1355 = vsel %vm970, %v1281, 0
      %1357 = vmatpush.bf16.msra.mxu0 0
      %1358 = vmatpush.bf16.msra.mxu0 0
      %1359 = vmatpush.bf16.msra.mxu0 0
      %1360 = vmatpush.bf16.msra.mxu0 0
      %1361 = vmatpush.bf16.msra.mxu0 0
      %1362 = vmatpush.bf16.msra.mxu0 0
      %1363 = vmatpush.bf16.msra.mxu0 0
      %1364 = vmatpush.bf16.msra.mxu0 %v1355
      %1365 = vmatmul.bf16.gmra.mxu0 %v1283
      %v1366 = vpop.f32.mrf.mxu0
      %v1367 = vadd.f32 0.0, %v1366
      %v1368 = vpop.f32.mrf.mxu0
      %v1369 = vadd.f32 0.0, %v1368
      %1370 = vmatmul.bf16.gmra.mxu0 %v1286
      %v1371 = vpop.f32.mrf.mxu0
      %v1372 = vadd.f32 0.0, %v1371
      %v1373 = vpop.f32.mrf.mxu0
      %v1374 = vadd.f32 0.0, %v1373
      %1375 = vmatmul.bf16.gmra.mxu0 %v1289
      %v1376 = vpop.f32.mrf.mxu0
      %v1377 = vadd.f32 0.0, %v1376
      %v1378 = vpop.f32.mrf.mxu0
      %v1379 = vadd.f32 0.0, %v1378
      %1380 = vmatmul.bf16.gmra.mxu0 %v1292
      %v1381 = vpop.f32.mrf.mxu0
      %v1382 = vadd.f32 0.0, %v1381
      %v1383 = vpop.f32.mrf.mxu0
      %v1384 = vadd.f32 0.0, %v1383
      %1385 = vmatmul.bf16.gmra.mxu0 %v1295
      %v1386 = vpop.f32.mrf.mxu0
      %v1387 = vadd.f32 0.0, %v1386
      %v1388 = vpop.f32.mrf.mxu0
      %v1389 = vadd.f32 0.0, %v1388
      %1390 = vmatmul.bf16.gmra.mxu0 %v1298
      %v1391 = vpop.f32.mrf.mxu0
      %v1392 = vadd.f32 0.0, %v1391
      %v1393 = vpop.f32.mrf.mxu0
      %v1394 = vadd.f32 0.0, %v1393
      %1395 = vmatmul.bf16.gmra.mxu0 %v1301
      %v1396 = vpop.f32.mrf.mxu0
      %v1397 = vadd.f32 0.0, %v1396
      %v1398 = vpop.f32.mrf.mxu0
      %v1399 = vadd.f32 0.0, %v1398
      %1400 = vmatmul.bf16.gmra.mxu0 %v1304
      %v1401 = vpop.f32.mrf.mxu0
      %v1402 = vadd.f32 0.0, %v1401
      %v1403 = vpop.f32.mrf.mxu0
      %v1404 = vadd.f32 0.0, %v1403
      %1405 = vmatmul.bf16.gmra.mxu0 %v1307
      %v1406 = vpop.f32.mrf.mxu0
      %v1407 = vadd.f32 0.0, %v1406
      %v1408 = vpop.f32.mrf.mxu0
      %v1409 = vadd.f32 0.0, %v1408
      %1410 = vmatmul.bf16.gmra.mxu0 %v1310
      %v1411 = vpop.f32.mrf.mxu0
      %v1412 = vadd.f32 0.0, %v1411
      %v1413 = vpop.f32.mrf.mxu0
      %v1414 = vadd.f32 0.0, %v1413
      %1415 = vmatmul.bf16.gmra.mxu0 %v1313
      %v1416 = vpop.f32.mrf.mxu0
      %v1417 = vadd.f32 0.0, %v1416
      %v1418 = vpop.f32.mrf.mxu0
      %v1419 = vadd.f32 0.0, %v1418
      %1420 = vmatmul.bf16.gmra.mxu0 %v1316
      %v1421 = vpop.f32.mrf.mxu0
      %v1422 = vadd.f32 0.0, %v1421
      %v1423 = vpop.f32.mrf.mxu0
      %v1424 = vadd.f32 0.0, %v1423
      %1425 = vmatmul.bf16.gmra.mxu0 %v1319
      %v1426 = vpop.f32.mrf.mxu0
      %v1427 = vadd.f32 0.0, %v1426
      %v1428 = vpop.f32.mrf.mxu0
      %v1429 = vadd.f32 0.0, %v1428
      %1430 = vmatmul.bf16.gmra.mxu0 %v1322
      %v1431 = vpop.f32.mrf.mxu0
      %v1432 = vadd.f32 0.0, %v1431
      %v1433 = vpop.f32.mrf.mxu0
      %v1434 = vadd.f32 0.0, %v1433
      %1435 = vmatmul.bf16.gmra.mxu0 %v1325
      %v1436 = vpop.f32.mrf.mxu0
      %v1437 = vadd.f32 0.0, %v1436
      %v1438 = vpop.f32.mrf.mxu0
      %v1439 = vadd.f32 0.0, %v1438
      %1440 = vmatmul.bf16.gmra.mxu0 %v1328
      %v1441 = vpop.f32.mrf.mxu0
      %v1442 = vadd.f32 0.0, %v1441
      %v1443 = vpop.f32.mrf.mxu0
      %v1444 = vadd.f32 0.0, %v1443
      %1445 = vmatmul.bf16.gmra.mxu0 %v1331
      %v1446 = vpop.f32.mrf.mxu0
      %v1447 = vadd.f32 0.0, %v1446
      %v1448 = vpop.f32.mrf.mxu0
      %v1449 = vadd.f32 0.0, %v1448
      %1450 = vmatmul.bf16.gmra.mxu0 %v1334
      %v1451 = vpop.f32.mrf.mxu0
      %v1452 = vadd.f32 0.0, %v1451
      %v1453 = vpop.f32.mrf.mxu0
      %v1454 = vadd.f32 0.0, %v1453
      %1455 = vmatmul.bf16.gmra.mxu0 %v1337
      %v1456 = vpop.f32.mrf.mxu0
      %v1457 = vadd.f32 0.0, %v1456
      %v1458 = vpop.f32.mrf.mxu0
      %v1459 = vadd.f32 0.0, %v1458
      %1460 = vmatmul.bf16.gmra.mxu0 %v1340
      %v1461 = vpop.f32.mrf.mxu0
      %v1462 = vadd.f32 0.0, %v1461
      %v1463 = vpop.f32.mrf.mxu0
      %v1464 = vadd.f32 0.0, %v1463
      %1465 = vmatmul.bf16.gmra.mxu0 %v1343
      %v1466 = vpop.f32.mrf.mxu0
      %v1467 = vadd.f32 0.0, %v1466
      %v1468 = vpop.f32.mrf.mxu0
      %v1469 = vadd.f32 0.0, %v1468
      %1470 = vmatmul.bf16.gmra.mxu0 %v1346
      %v1471 = vpop.f32.mrf.mxu0
      %v1472 = vadd.f32 0.0, %v1471
      %v1473 = vpop.f32.mrf.mxu0
      %v1474 = vadd.f32 0.0, %v1473
      %1475 = vmatmul.bf16.gmra.mxu0 %v1349
      %v1476 = vpop.f32.mrf.mxu0
      %v1477 = vadd.f32 0.0, %v1476
      %v1478 = vpop.f32.mrf.mxu0
      %v1479 = vadd.f32 0.0, %v1478
      %1480 = vmatmul.bf16.gmra.mxu0 %v1352
      %v1481 = vpop.f32.mrf.mxu0
      %v1482 = vadd.f32 0.0, %v1481
      %v1483 = vpop.f32.mrf.mxu0
      %v1484 = vadd.f32 0.0, %v1483
      %1485 = vdwg.mxu0
      %v1486 = vadd.f32 %v1151, %v1367
      %v1487 = vadd.f32 %v1152, %v1369
      %v1488 = vadd.f32 %v1153, %v1372
      %v1489 = vadd.f32 %v1154, %v1374
      %v1490 = vadd.f32 %v1155, %v1377
      %v1491 = vadd.f32 %v1156, %v1379
      %v1492 = vadd.f32 %v1157, %v1382
      %v1493 = vadd.f32 %v1158, %v1384
      %v1494 = vadd.f32 %v1159, %v1387
      %v1495 = vadd.f32 %v1160, %v1389
      %v1496 = vadd.f32 %v1161, %v1392
      %v1497 = vadd.f32 %v1162, %v1394
      %v1498 = vadd.f32 %v1163, %v1397
      %v1499 = vadd.f32 %v1164, %v1399
      %v1500 = vadd.f32 %v1165, %v1402
      %v1501 = vadd.f32 %v1166, %v1404
      %v1502 = vadd.f32 %v1167, %v1407
      %v1503 = vadd.f32 %v1168, %v1409
      %v1504 = vadd.f32 %v1169, %v1412
      %v1505 = vadd.f32 %v1170, %v1414
      %v1506 = vadd.f32 %v1171, %v1417
      %v1507 = vadd.f32 %v1172, %v1419
      %v1508 = vadd.f32 %v1173, %v1422
      %v1509 = vadd.f32 %v1174, %v1424
      %v1510 = vadd.f32 %v1175, %v1427
      %v1511 = vadd.f32 %v1176, %v1429
      %v1512 = vadd.f32 %v1177, %v1432
      %v1513 = vadd.f32 %v1178, %v1434
      %v1514 = vadd.f32 %v1179, %v1437
      %v1515 = vadd.f32 %v1180, %v1439
      %v1516 = vadd.f32 %v1181, %v1442
      %v1517 = vadd.f32 %v1182, %v1444
      %v1518 = vadd.f32 %v1183, %v1447
      %v1519 = vadd.f32 %v1184, %v1449
      %v1520 = vadd.f32 %v1185, %v1452
      %v1521 = vadd.f32 %v1186, %v1454
      %v1522 = vadd.f32 %v1187, %v1457
      %v1523 = vadd.f32 %v1188, %v1459
      %v1524 = vadd.f32 %v1189, %v1462
      %v1525 = vadd.f32 %v1190, %v1464
      %v1526 = vadd.f32 %v1191, %v1467
      %v1527 = vadd.f32 %v1192, %v1469
      %v1528 = vadd.f32 %v1193, %v1472
      %v1529 = vadd.f32 %v1194, %v1474
      %v1530 = vadd.f32 %v1195, %v1477
      %v1531 = vadd.f32 %v1196, %v1479
      %v1532 = vadd.f32 %v1197, %v1482
      %v1533 = vadd.f32 %v1198, %v1484
      %1534 = vst.msk [vmem:[#allocation2] sm:$0xff] %vm804, %v1486
      %1535 = vst.msk [vmem:[#allocation2 + $0x8] sm:$0xff] %vm804, %v1487
      %1536 = vst.msk [vmem:[#allocation2 + $0x10] sm:$0xff] %vm804, %v1488
      %1537 = vst.msk [vmem:[#allocation2 + $0x18] sm:$0xff] %vm804, %v1489
      %1538 = vst.msk [vmem:[#allocation2 + $0x20] sm:$0xff] %vm804, %v1490
      %1539 = vst.msk [vmem:[#allocation2 + $0x28] sm:$0xff] %vm804, %v1491
      %1540 = vst.msk [vmem:[#allocation2 + $0x30] sm:$0xff] %vm804, %v1492
      %1541 = vst.msk [vmem:[#allocation2 + $0x38] sm:$0xff] %vm804, %v1493
      %1542 = vst.msk [vmem:[#allocation2 + $0x40] sm:$0xff] %vm804, %v1494
      %1543 = vst.msk [vmem:[#allocation2 + $0x48] sm:$0xff] %vm804, %v1495
      %1544 = vst.msk [vmem:[#allocation2 + $0x50] sm:$0xff] %vm804, %v1496
      %1545 = vst.msk [vmem:[#allocation2 + $0x58] sm:$0xff] %vm804, %v1497
      %1546 = vst.msk [vmem:[#allocation2 + $0x60] sm:$0xff] %vm804, %v1498
      %1547 = vst.msk [vmem:[#allocation2 + $0x68] sm:$0xff] %vm804, %v1499
      %1548 = vst.msk [vmem:[#allocation2 + $0x70] sm:$0xff] %vm804, %v1500
      %1549 = vst.msk [vmem:[#allocation2 + $0x78] sm:$0xff] %vm804, %v1501
      %1550 = vst.msk [vmem:[#allocation2 + $0x80] sm:$0xff] %vm804, %v1502
      %1551 = vst.msk [vmem:[#allocation2 + $0x88] sm:$0xff] %vm804, %v1503
      %1552 = vst.msk [vmem:[#allocation2 + $0x90] sm:$0xff] %vm804, %v1504
      %1553 = vst.msk [vmem:[#allocation2 + $0x98] sm:$0xff] %vm804, %v1505
      %1554 = vst.msk [vmem:[#allocation2 + $0xa0] sm:$0xff] %vm804, %v1506
      %1555 = vst.msk [vmem:[#allocation2 + $0xa8] sm:$0xff] %vm804, %v1507
      %1556 = vst.msk [vmem:[#allocation2 + $0xb0] sm:$0xff] %vm804, %v1508
      %1557 = vst.msk [vmem:[#allocation2 + $0xb8] sm:$0xff] %vm804, %v1509
      %1558 = vst.msk [vmem:[#allocation2 + $0xc0] sm:$0xff] %vm804, %v1510
      %1559 = vst.msk [vmem:[#allocation2 + $0xc8] sm:$0xff] %vm804, %v1511
      %1560 = vst.msk [vmem:[#allocation2 + $0xd0] sm:$0xff] %vm804, %v1512
      %1561 = vst.msk [vmem:[#allocation2 + $0xd8] sm:$0xff] %vm804, %v1513
      %1562 = vst.msk [vmem:[#allocation2 + $0xe0] sm:$0xff] %vm804, %v1514
      %1563 = vst.msk [vmem:[#allocation2 + $0xe8] sm:$0xff] %vm804, %v1515
      %1564 = vst.msk [vmem:[#allocation2 + $0xf0] sm:$0xff] %vm804, %v1516
      %1565 = vst.msk [vmem:[#allocation2 + $0xf8] sm:$0xff] %vm804, %v1517
      %1566 = vst.msk [vmem:[#allocation2 + $0x100] sm:$0xff] %vm804, %v1518
      %1567 = vst.msk [vmem:[#allocation2 + $0x108] sm:$0xff] %vm804, %v1519
      %1568 = vst.msk [vmem:[#allocation2 + $0x110] sm:$0xff] %vm804, %v1520
      %1569 = vst.msk [vmem:[#allocation2 + $0x118] sm:$0xff] %vm804, %v1521
      %1570 = vst.msk [vmem:[#allocation2 + $0x120] sm:$0xff] %vm804, %v1522
      %1571 = vst.msk [vmem:[#allocation2 + $0x128] sm:$0xff] %vm804, %v1523
      %1572 = vst.msk [vmem:[#allocation2 + $0x130] sm:$0xff] %vm804, %v1524
      %1573 = vst.msk [vmem:[#allocation2 + $0x138] sm:$0xff] %vm804, %v1525
      %1574 = vst.msk [vmem:[#allocation2 + $0x140] sm:$0xff] %vm804, %v1526
      %1575 = vst.msk [vmem:[#allocation2 + $0x148] sm:$0xff] %vm804, %v1527
      %1576 = vst.msk [vmem:[#allocation2 + $0x150] sm:$0xff] %vm804, %v1528
      %1577 = vst.msk [vmem:[#allocation2 + $0x158] sm:$0xff] %vm804, %v1529
      %1578 = vst.msk [vmem:[#allocation2 + $0x160] sm:$0xff] %vm804, %v1530
      %1579 = vst.msk [vmem:[#allocation2 + $0x168] sm:$0xff] %vm804, %v1531
      %1580 = vst.msk [vmem:[#allocation2 + $0x170] sm:$0xff] %vm804, %v1532
      %1581 = vst.msk [vmem:[#allocation2 + $0x178] sm:$0xff] %vm804, %v1533
      %v1582 = vld [vmem:[#allocation2] sm:$0xff]
      %v1583 = vld [vmem:[#allocation2 + $0x8] sm:$0xff]
      %v1584 = vld [vmem:[#allocation2 + $0x10] sm:$0xff]
      %v1585 = vld [vmem:[#allocation2 + $0x18] sm:$0xff]
      %v1586 = vld [vmem:[#allocation2 + $0x20] sm:$0xff]
      %v1587 = vld [vmem:[#allocation2 + $0x28] sm:$0xff]
      %v1588 = vld [vmem:[#allocation2 + $0x30] sm:$0xff]
      %v1589 = vld [vmem:[#allocation2 + $0x38] sm:$0xff]
      %v1590 = vld [vmem:[#allocation2 + $0x40] sm:$0xff]
      %v1591 = vld [vmem:[#allocation2 + $0x48] sm:$0xff]
      %v1592 = vld [vmem:[#allocation2 + $0x50] sm:$0xff]
      %v1593 = vld [vmem:[#allocation2 + $0x58] sm:$0xff]
      %v1594 = vld [vmem:[#allocation2 + $0x60] sm:$0xff]
      %v1595 = vld [vmem:[#allocation2 + $0x68] sm:$0xff]
      %v1596 = vld [vmem:[#allocation2 + $0x70] sm:$0xff]
      %v1597 = vld [vmem:[#allocation2 + $0x78] sm:$0xff]
      %v1598 = vld [vmem:[#allocation2 + $0x80] sm:$0xff]
      %v1599 = vld [vmem:[#allocation2 + $0x88] sm:$0xff]
      %v1600 = vld [vmem:[#allocation2 + $0x90] sm:$0xff]
      %v1601 = vld [vmem:[#allocation2 + $0x98] sm:$0xff]
      %v1602 = vld [vmem:[#allocation2 + $0xa0] sm:$0xff]
      %v1603 = vld [vmem:[#allocation2 + $0xa8] sm:$0xff]
      %v1604 = vld [vmem:[#allocation2 + $0xb0] sm:$0xff]
      %v1605 = vld [vmem:[#allocation2 + $0xb8] sm:$0xff]
      %v1606 = vld [vmem:[#allocation2 + $0xc0] sm:$0xff]
      %v1607 = vld [vmem:[#allocation2 + $0xc8] sm:$0xff]
      %v1608 = vld [vmem:[#allocation2 + $0xd0] sm:$0xff]
      %v1609 = vld [vmem:[#allocation2 + $0xd8] sm:$0xff]
      %v1610 = vld [vmem:[#allocation2 + $0xe0] sm:$0xff]
      %v1611 = vld [vmem:[#allocation2 + $0xe8] sm:$0xff]
      %v1612 = vld [vmem:[#allocation2 + $0xf0] sm:$0xff]
      %v1613 = vld [vmem:[#allocation2 + $0xf8] sm:$0xff]
      %v1614 = vld [vmem:[#allocation2 + $0x100] sm:$0xff]
      %v1615 = vld [vmem:[#allocation2 + $0x108] sm:$0xff]
      %v1616 = vld [vmem:[#allocation2 + $0x110] sm:$0xff]
      %v1617 = vld [vmem:[#allocation2 + $0x118] sm:$0xff]
      %v1618 = vld [vmem:[#allocation2 + $0x120] sm:$0xff]
      %v1619 = vld [vmem:[#allocation2 + $0x128] sm:$0xff]
      %v1620 = vld [vmem:[#allocation2 + $0x130] sm:$0xff]
      %v1621 = vld [vmem:[#allocation2 + $0x138] sm:$0xff]
      %v1622 = vld [vmem:[#allocation2 + $0x140] sm:$0xff]
      %v1623 = vld [vmem:[#allocation2 + $0x148] sm:$0xff]
      %v1624 = vld [vmem:[#allocation2 + $0x150] sm:$0xff]
      %v1625 = vld [vmem:[#allocation2 + $0x158] sm:$0xff]
      %v1626 = vld [vmem:[#allocation2 + $0x160] sm:$0xff]
      %v1627 = vld [vmem:[#allocation2 + $0x168] sm:$0xff]
      %v1628 = vld [vmem:[#allocation2 + $0x170] sm:$0xff]
      %v1629 = vld [vmem:[#allocation2 + $0x178] sm:$0xff]
      %s1630 = scalar_lea.vmem %s2, 16
      %v1631 = vld [vmem:[%s1630] sm:$0xf]
      %v1632 = vld [vmem:[%s1630 + $0x4] sm:$0x3]
      %v1635 = vunpack.c.l.b16 %v1631
      %v1636 = vunpack.c.l.b16 %v1632
      %v1637 = vpack.c.b16 %v1636, %v1635
      %v1638 = vsel %vm921, %v909, 0
      %v1640 = vsel %vm921, %v911, 0
      %v1642 = vsel %vm921, %v913, 0
      %v1645 = vsel %vm970, %v1637, 0
      %1647 = vmatpush.bf16.msra.mxu0 0
      %1648 = vmatpush.bf16.msra.mxu0 0
      %1649 = vmatpush.bf16.msra.mxu0 0
      %1650 = vmatpush.bf16.msra.mxu0 0
      %1651 = vmatpush.bf16.msra.mxu0 0
      %1652 = vmatpush.bf16.msra.mxu0 0
      %1653 = vmatpush.bf16.msra.mxu0 0
      %1654 = vmatpush.bf16.msra.mxu0 %v1645
      %1655 = vmatmul.bf16.gmra.mxu0 %v928
      %v1656 = vpop.f32.mrf.mxu0
      %v1657 = vadd.f32 0.0, %v1656
      %v1658 = vpop.f32.mrf.mxu0
      %v1659 = vadd.f32 0.0, %v1658
      %1660 = vmatmul.bf16.gmra.mxu0 %v930
      %v1661 = vpop.f32.mrf.mxu0
      %v1662 = vadd.f32 0.0, %v1661
      %v1663 = vpop.f32.mrf.mxu0
      %v1664 = vadd.f32 0.0, %v1663
      %1665 = vmatmul.bf16.gmra.mxu0 %v932
      %v1666 = vpop.f32.mrf.mxu0
      %v1667 = vadd.f32 0.0, %v1666
      %v1668 = vpop.f32.mrf.mxu0
      %v1669 = vadd.f32 0.0, %v1668
      %1670 = vmatmul.bf16.gmra.mxu0 %v934
      %v1671 = vpop.f32.mrf.mxu0
      %v1672 = vadd.f32 0.0, %v1671
      %v1673 = vpop.f32.mrf.mxu0
      %v1674 = vadd.f32 0.0, %v1673
      %1675 = vmatmul.bf16.gmra.mxu0 %v936
      %v1676 = vpop.f32.mrf.mxu0
      %v1677 = vadd.f32 0.0, %v1676
      %v1678 = vpop.f32.mrf.mxu0
      %v1679 = vadd.f32 0.0, %v1678
      %1680 = vmatmul.bf16.gmra.mxu0 %v938
      %v1681 = vpop.f32.mrf.mxu0
      %v1682 = vadd.f32 0.0, %v1681
      %v1683 = vpop.f32.mrf.mxu0
      %v1684 = vadd.f32 0.0, %v1683
      %1685 = vmatmul.bf16.gmra.mxu0 %v940
      %v1686 = vpop.f32.mrf.mxu0
      %v1687 = vadd.f32 0.0, %v1686
      %v1688 = vpop.f32.mrf.mxu0
      %v1689 = vadd.f32 0.0, %v1688
      %1690 = vmatmul.bf16.gmra.mxu0 %v942
      %v1691 = vpop.f32.mrf.mxu0
      %v1692 = vadd.f32 0.0, %v1691
      %v1693 = vpop.f32.mrf.mxu0
      %v1694 = vadd.f32 0.0, %v1693
      %1695 = vmatmul.bf16.gmra.mxu0 %v944
      %v1696 = vpop.f32.mrf.mxu0
      %v1697 = vadd.f32 0.0, %v1696
      %v1698 = vpop.f32.mrf.mxu0
      %v1699 = vadd.f32 0.0, %v1698
      %1700 = vmatmul.bf16.gmra.mxu0 %v946
      %v1701 = vpop.f32.mrf.mxu0
      %v1702 = vadd.f32 0.0, %v1701
      %v1703 = vpop.f32.mrf.mxu0
      %v1704 = vadd.f32 0.0, %v1703
      %1705 = vmatmul.bf16.gmra.mxu0 %v948
      %v1706 = vpop.f32.mrf.mxu0
      %v1707 = vadd.f32 0.0, %v1706
      %v1708 = vpop.f32.mrf.mxu0
      %v1709 = vadd.f32 0.0, %v1708
      %1710 = vmatmul.bf16.gmra.mxu0 %v950
      %v1711 = vpop.f32.mrf.mxu0
      %v1712 = vadd.f32 0.0, %v1711
      %v1713 = vpop.f32.mrf.mxu0
      %v1714 = vadd.f32 0.0, %v1713
      %1715 = vmatmul.bf16.gmra.mxu0 %v952
      %v1716 = vpop.f32.mrf.mxu0
      %v1717 = vadd.f32 0.0, %v1716
      %v1718 = vpop.f32.mrf.mxu0
      %v1719 = vadd.f32 0.0, %v1718
      %1720 = vmatmul.bf16.gmra.mxu0 %v954
      %v1721 = vpop.f32.mrf.mxu0
      %v1722 = vadd.f32 0.0, %v1721
      %v1723 = vpop.f32.mrf.mxu0
      %v1724 = vadd.f32 0.0, %v1723
      %1725 = vmatmul.bf16.gmra.mxu0 %v956
      %v1726 = vpop.f32.mrf.mxu0
      %v1727 = vadd.f32 0.0, %v1726
      %v1728 = vpop.f32.mrf.mxu0
      %v1729 = vadd.f32 0.0, %v1728
      %1730 = vmatmul.bf16.gmra.mxu0 %v958
      %v1731 = vpop.f32.mrf.mxu0
      %v1732 = vadd.f32 0.0, %v1731
      %v1733 = vpop.f32.mrf.mxu0
      %v1734 = vadd.f32 0.0, %v1733
      %1735 = vmatmul.bf16.gmra.mxu0 %v960
      %v1736 = vpop.f32.mrf.mxu0
      %v1737 = vadd.f32 0.0, %v1736
      %v1738 = vpop.f32.mrf.mxu0
      %v1739 = vadd.f32 0.0, %v1738
      %1740 = vmatmul.bf16.gmra.mxu0 %v962
      %v1741 = vpop.f32.mrf.mxu0
      %v1742 = vadd.f32 0.0, %v1741
      %v1743 = vpop.f32.mrf.mxu0
      %v1744 = vadd.f32 0.0, %v1743
      %1745 = vmatmul.bf16.gmra.mxu0 %v964
      %v1746 = vpop.f32.mrf.mxu0
      %v1747 = vadd.f32 0.0, %v1746
      %v1748 = vpop.f32.mrf.mxu0
      %v1749 = vadd.f32 0.0, %v1748
      %1750 = vmatmul.bf16.gmra.mxu0 %v966
      %v1751 = vpop.f32.mrf.mxu0
      %v1752 = vadd.f32 0.0, %v1751
      %v1753 = vpop.f32.mrf.mxu0
      %v1754 = vadd.f32 0.0, %v1753
      %1755 = vmatmul.bf16.gmra.mxu0 %v968
      %v1756 = vpop.f32.mrf.mxu0
      %v1757 = vadd.f32 0.0, %v1756
      %v1758 = vpop.f32.mrf.mxu0
      %v1759 = vadd.f32 0.0, %v1758
      %1760 = vmatmul.bf16.gmra.mxu0 %v1638
      %v1761 = vpop.f32.mrf.mxu0
      %v1762 = vadd.f32 0.0, %v1761
      %v1763 = vpop.f32.mrf.mxu0
      %v1764 = vadd.f32 0.0, %v1763
      %1765 = vmatmul.bf16.gmra.mxu0 %v1640
      %v1766 = vpop.f32.mrf.mxu0
      %v1767 = vadd.f32 0.0, %v1766
      %v1768 = vpop.f32.mrf.mxu0
      %v1769 = vadd.f32 0.0, %v1768
      %1770 = vmatmul.bf16.gmra.mxu0 %v1642
      %v1771 = vpop.f32.mrf.mxu0
      %v1772 = vadd.f32 0.0, %v1771
      %v1773 = vpop.f32.mrf.mxu0
      %v1774 = vadd.f32 0.0, %v1773
      %1775 = vdwg.mxu0
      %v1776 = vadd.f32 %v1582, %v1657
      %v1777 = vadd.f32 %v1583, %v1659
      %v1778 = vadd.f32 %v1584, %v1662
      %v1779 = vadd.f32 %v1585, %v1664
      %v1780 = vadd.f32 %v1586, %v1667
      %v1781 = vadd.f32 %v1587, %v1669
      %v1782 = vadd.f32 %v1588, %v1672
      %v1783 = vadd.f32 %v1589, %v1674
      %v1784 = vadd.f32 %v1590, %v1677
      %v1785 = vadd.f32 %v1591, %v1679
      %v1786 = vadd.f32 %v1592, %v1682
      %v1787 = vadd.f32 %v1593, %v1684
      %v1788 = vadd.f32 %v1594, %v1687
      %v1789 = vadd.f32 %v1595, %v1689
      %v1790 = vadd.f32 %v1596, %v1692
      %v1791 = vadd.f32 %v1597, %v1694
      %v1792 = vadd.f32 %v1598, %v1697
      %v1793 = vadd.f32 %v1599, %v1699
      %v1794 = vadd.f32 %v1600, %v1702
      %v1795 = vadd.f32 %v1601, %v1704
      %v1796 = vadd.f32 %v1602, %v1707
      %v1797 = vadd.f32 %v1603, %v1709
      %v1798 = vadd.f32 %v1604, %v1712
      %v1799 = vadd.f32 %v1605, %v1714
      %v1800 = vadd.f32 %v1606, %v1717
      %v1801 = vadd.f32 %v1607, %v1719
      %v1802 = vadd.f32 %v1608, %v1722
      %v1803 = vadd.f32 %v1609, %v1724
      %v1804 = vadd.f32 %v1610, %v1727
      %v1805 = vadd.f32 %v1611, %v1729
      %v1806 = vadd.f32 %v1612, %v1732
      %v1807 = vadd.f32 %v1613, %v1734
      %v1808 = vadd.f32 %v1614, %v1737
      %v1809 = vadd.f32 %v1615, %v1739
      %v1810 = vadd.f32 %v1616, %v1742
      %v1811 = vadd.f32 %v1617, %v1744
      %v1812 = vadd.f32 %v1618, %v1747
      %v1813 = vadd.f32 %v1619, %v1749
      %v1814 = vadd.f32 %v1620, %v1752
      %v1815 = vadd.f32 %v1621, %v1754
      %v1816 = vadd.f32 %v1622, %v1757
      %v1817 = vadd.f32 %v1623, %v1759
      %v1818 = vadd.f32 %v1624, %v1762
      %v1819 = vadd.f32 %v1625, %v1764
      %v1820 = vadd.f32 %v1626, %v1767
      %v1821 = vadd.f32 %v1627, %v1769
      %v1822 = vadd.f32 %v1628, %v1772
      %v1823 = vadd.f32 %v1629, %v1774
      %1824 = vst.msk [vmem:[#allocation2] sm:$0xff] %vm804, %v1776
      %1825 = vst.msk [vmem:[#allocation2 + $0x8] sm:$0xff] %vm804, %v1777
      %1826 = vst.msk [vmem:[#allocation2 + $0x10] sm:$0xff] %vm804, %v1778
      %1827 = vst.msk [vmem:[#allocation2 + $0x18] sm:$0xff] %vm804, %v1779
      %1828 = vst.msk [vmem:[#allocation2 + $0x20] sm:$0xff] %vm804, %v1780
      %1829 = vst.msk [vmem:[#allocation2 + $0x28] sm:$0xff] %vm804, %v1781
      %1830 = vst.msk [vmem:[#allocation2 + $0x30] sm:$0xff] %vm804, %v1782
      %1831 = vst.msk [vmem:[#allocation2 + $0x38] sm:$0xff] %vm804, %v1783
      %1832 = vst.msk [vmem:[#allocation2 + $0x40] sm:$0xff] %vm804, %v1784
      %1833 = vst.msk [vmem:[#allocation2 + $0x48] sm:$0xff] %vm804, %v1785
      %1834 = vst.msk [vmem:[#allocation2 + $0x50] sm:$0xff] %vm804, %v1786
      %1835 = vst.msk [vmem:[#allocation2 + $0x58] sm:$0xff] %vm804, %v1787
      %1836 = vst.msk [vmem:[#allocation2 + $0x60] sm:$0xff] %vm804, %v1788
      %1837 = vst.msk [vmem:[#allocation2 + $0x68] sm:$0xff] %vm804, %v1789
      %1838 = vst.msk [vmem:[#allocation2 + $0x70] sm:$0xff] %vm804, %v1790
      %1839 = vst.msk [vmem:[#allocation2 + $0x78] sm:$0xff] %vm804, %v1791
      %1840 = vst.msk [vmem:[#allocation2 + $0x80] sm:$0xff] %vm804, %v1792
      %1841 = vst.msk [vmem:[#allocation2 + $0x88] sm:$0xff] %vm804, %v1793
      %1842 = vst.msk [vmem:[#allocation2 + $0x90] sm:$0xff] %vm804, %v1794
      %1843 = vst.msk [vmem:[#allocation2 + $0x98] sm:$0xff] %vm804, %v1795
      %1844 = vst.msk [vmem:[#allocation2 + $0xa0] sm:$0xff] %vm804, %v1796
      %1845 = vst.msk [vmem:[#allocation2 + $0xa8] sm:$0xff] %vm804, %v1797
      %1846 = vst.msk [vmem:[#allocation2 + $0xb0] sm:$0xff] %vm804, %v1798
      %1847 = vst.msk [vmem:[#allocation2 + $0xb8] sm:$0xff] %vm804, %v1799
      %1848 = vst.msk [vmem:[#allocation2 + $0xc0] sm:$0xff] %vm804, %v1800
      %1849 = vst.msk [vmem:[#allocation2 + $0xc8] sm:$0xff] %vm804, %v1801
      %1850 = vst.msk [vmem:[#allocation2 + $0xd0] sm:$0xff] %vm804, %v1802
      %1851 = vst.msk [vmem:[#allocation2 + $0xd8] sm:$0xff] %vm804, %v1803
      %1852 = vst.msk [vmem:[#allocation2 + $0xe0] sm:$0xff] %vm804, %v1804
      %1853 = vst.msk [vmem:[#allocation2 + $0xe8] sm:$0xff] %vm804, %v1805
      %1854 = vst.msk [vmem:[#allocation2 + $0xf0] sm:$0xff] %vm804, %v1806
      %1855 = vst.msk [vmem:[#allocation2 + $0xf8] sm:$0xff] %vm804, %v1807
      %1856 = vst.msk [vmem:[#allocation2 + $0x100] sm:$0xff] %vm804, %v1808
      %1857 = vst.msk [vmem:[#allocation2 + $0x108] sm:$0xff] %vm804, %v1809
      %1858 = vst.msk [vmem:[#allocation2 + $0x110] sm:$0xff] %vm804, %v1810
      %1859 = vst.msk [vmem:[#allocation2 + $0x118] sm:$0xff] %vm804, %v1811
      %1860 = vst.msk [vmem:[#allocation2 + $0x120] sm:$0xff] %vm804, %v1812
      %1861 = vst.msk [vmem:[#allocation2 + $0x128] sm:$0xff] %vm804, %v1813
      %1862 = vst.msk [vmem:[#allocation2 + $0x130] sm:$0xff] %vm804, %v1814
      %1863 = vst.msk [vmem:[#allocation2 + $0x138] sm:$0xff] %vm804, %v1815
      %1864 = vst.msk [vmem:[#allocation2 + $0x140] sm:$0xff] %vm804, %v1816
      %1865 = vst.msk [vmem:[#allocation2 + $0x148] sm:$0xff] %vm804, %v1817
      %1866 = vst.msk [vmem:[#allocation2 + $0x150] sm:$0xff] %vm804, %v1818
      %1867 = vst.msk [vmem:[#allocation2 + $0x158] sm:$0xff] %vm804, %v1819
      %1868 = vst.msk [vmem:[#allocation2 + $0x160] sm:$0xff] %vm804, %v1820
      %1869 = vst.msk [vmem:[#allocation2 + $0x168] sm:$0xff] %vm804, %v1821
      %1870 = vst.msk [vmem:[#allocation2 + $0x170] sm:$0xff] %vm804, %v1822
      %1871 = vst.msk [vmem:[#allocation2 + $0x178] sm:$0xff] %vm804, %v1823
      %v1872 = vld [vmem:[#allocation2] sm:$0xff]
      %v1873 = vld [vmem:[#allocation2 + $0x8] sm:$0xff]
      %v1874 = vld [vmem:[#allocation2 + $0x10] sm:$0xff]
      %v1875 = vld [vmem:[#allocation2 + $0x18] sm:$0xff]
      %v1876 = vld [vmem:[#allocation2 + $0x20] sm:$0xff]
      %v1877 = vld [vmem:[#allocation2 + $0x28] sm:$0xff]
      %v1878 = vld [vmem:[#allocation2 + $0x30] sm:$0xff]
      %v1879 = vld [vmem:[#allocation2 + $0x38] sm:$0xff]
      %v1880 = vld [vmem:[#allocation2 + $0x40] sm:$0xff]
      %v1881 = vld [vmem:[#allocation2 + $0x48] sm:$0xff]
      %v1882 = vld [vmem:[#allocation2 + $0x50] sm:$0xff]
      %v1883 = vld [vmem:[#allocation2 + $0x58] sm:$0xff]
      %v1884 = vld [vmem:[#allocation2 + $0x60] sm:$0xff]
      %v1885 = vld [vmem:[#allocation2 + $0x68] sm:$0xff]
      %v1886 = vld [vmem:[#allocation2 + $0x70] sm:$0xff]
      %v1887 = vld [vmem:[#allocation2 + $0x78] sm:$0xff]
      %v1888 = vld [vmem:[#allocation2 + $0x80] sm:$0xff]
      %v1889 = vld [vmem:[#allocation2 + $0x88] sm:$0xff]
      %v1890 = vld [vmem:[#allocation2 + $0x90] sm:$0xff]
      %v1891 = vld [vmem:[#allocation2 + $0x98] sm:$0xff]
      %v1892 = vld [vmem:[#allocation2 + $0xa0] sm:$0xff]
      %v1893 = vld [vmem:[#allocation2 + $0xa8] sm:$0xff]
      %v1894 = vld [vmem:[#allocation2 + $0xb0] sm:$0xff]
      %v1895 = vld [vmem:[#allocation2 + $0xb8] sm:$0xff]
      %v1896 = vld [vmem:[#allocation2 + $0xc0] sm:$0xff]
      %v1897 = vld [vmem:[#allocation2 + $0xc8] sm:$0xff]
      %v1898 = vld [vmem:[#allocation2 + $0xd0] sm:$0xff]
      %v1899 = vld [vmem:[#allocation2 + $0xd8] sm:$0xff]
      %v1900 = vld [vmem:[#allocation2 + $0xe0] sm:$0xff]
      %v1901 = vld [vmem:[#allocation2 + $0xe8] sm:$0xff]
      %v1902 = vld [vmem:[#allocation2 + $0xf0] sm:$0xff]
      %v1903 = vld [vmem:[#allocation2 + $0xf8] sm:$0xff]
      %v1904 = vld [vmem:[#allocation2 + $0x100] sm:$0xff]
      %v1905 = vld [vmem:[#allocation2 + $0x108] sm:$0xff]
      %v1906 = vld [vmem:[#allocation2 + $0x110] sm:$0xff]
      %v1907 = vld [vmem:[#allocation2 + $0x118] sm:$0xff]
      %v1908 = vld [vmem:[#allocation2 + $0x120] sm:$0xff]
      %v1909 = vld [vmem:[#allocation2 + $0x128] sm:$0xff]
      %v1910 = vld [vmem:[#allocation2 + $0x130] sm:$0xff]
      %v1911 = vld [vmem:[#allocation2 + $0x138] sm:$0xff]
      %v1912 = vld [vmem:[#allocation2 + $0x140] sm:$0xff]
      %v1913 = vld [vmem:[#allocation2 + $0x148] sm:$0xff]
      %v1914 = vld [vmem:[#allocation2 + $0x150] sm:$0xff]
      %v1915 = vld [vmem:[#allocation2 + $0x158] sm:$0xff]
      %v1916 = vld [vmem:[#allocation2 + $0x160] sm:$0xff]
      %v1917 = vld [vmem:[#allocation2 + $0x168] sm:$0xff]
      %v1918 = vld [vmem:[#allocation2 + $0x170] sm:$0xff]
      %v1919 = vld [vmem:[#allocation2 + $0x178] sm:$0xff]
      %v1920 = vsel %vm223, 1, 0
      %v1921 = vsel %vm224, 1, 0
      %v1922 = vsel %vm225, 1, 0
      %vm1923 = vcmp.eq.s32.totalorder %v1920, 1
      %vm1924 = vcmp.eq.s32.totalorder %v1921, 1
      %vm1925 = vcmp.eq.s32.totalorder %v1922, 1
      %v1926 = vsel %vm1923, %v1872, 0.0
      %v1927 = vsel %vm1924, %v1873, 0.0
      %v1928 = vsel %vm1925, %v1874, 0.0
      %v1929 = vsel %vm1923, %v1875, 0.0
      %v1930 = vsel %vm1924, %v1876, 0.0
      %v1931 = vsel %vm1925, %v1877, 0.0
      %v1932 = vsel %vm1923, %v1878, 0.0
      %v1933 = vsel %vm1924, %v1879, 0.0
      %v1934 = vsel %vm1925, %v1880, 0.0
      %v1935 = vsel %vm1923, %v1881, 0.0
      %v1936 = vsel %vm1924, %v1882, 0.0
      %v1937 = vsel %vm1925, %v1883, 0.0
      %v1938 = vsel %vm1923, %v1884, 0.0
      %v1939 = vsel %vm1924, %v1885, 0.0
      %v1940 = vsel %vm1925, %v1886, 0.0
      %v1941 = vsel %vm1923, %v1887, 0.0
      %v1942 = vsel %vm1924, %v1888, 0.0
      %v1943 = vsel %vm1925, %v1889, 0.0
      %v1944 = vsel %vm1923, %v1890, 0.0
      %v1945 = vsel %vm1924, %v1891, 0.0
      %v1946 = vsel %vm1925, %v1892, 0.0
      %v1947 = vsel %vm1923, %v1893, 0.0
      %v1948 = vsel %vm1924, %v1894, 0.0
      %v1949 = vsel %vm1925, %v1895, 0.0
      %v1950 = vsel %vm1923, %v1896, 0.0
      %v1951 = vsel %vm1924, %v1897, 0.0
      %v1952 = vsel %vm1925, %v1898, 0.0
      %v1953 = vsel %vm1923, %v1899, 0.0
      %v1954 = vsel %vm1924, %v1900, 0.0
      %v1955 = vsel %vm1925, %v1901, 0.0
      %v1956 = vsel %vm1923, %v1902, 0.0
      %v1957 = vsel %vm1924, %v1903, 0.0
      %v1958 = vsel %vm1925, %v1904, 0.0
      %v1959 = vsel %vm1923, %v1905, 0.0
      %v1960 = vsel %vm1924, %v1906, 0.0
      %v1961 = vsel %vm1925, %v1907, 0.0
      %v1962 = vsel %vm1923, %v1908, 0.0
      %v1963 = vsel %vm1924, %v1909, 0.0
      %v1964 = vsel %vm1925, %v1910, 0.0
      %v1965 = vsel %vm1923, %v1911, 0.0
      %v1966 = vsel %vm1924, %v1912, 0.0
      %v1967 = vsel %vm1925, %v1913, 0.0
      %v1968 = vsel %vm1923, %v1914, 0.0
      %v1969 = vsel %vm1924, %v1915, 0.0
      %v1970 = vsel %vm1925, %v1916, 0.0
      %v1971 = vsel %vm1923, %v1917, 0.0
      %v1972 = vsel %vm1924, %v1918, 0.0
      %v1973 = vsel %vm1925, %v1919, 0.0
      %v1974 = vsel %vm804, %v1926, 0.0
      %v1975 = vsel %vm804, %v1927, 0.0
      %v1976 = vadd.f32 %v1974, %v1975
      %v1977 = vsel %vm804, %v1928, 0.0
      %v1978 = vadd.f32 %v1976, %v1977
      %v1979 = vsel %vm804, %v1929, 0.0
      %v1980 = vadd.f32 %v1978, %v1979
      %v1981 = vsel %vm804, %v1930, 0.0
      %v1982 = vadd.f32 %v1980, %v1981
      %v1983 = vsel %vm804, %v1931, 0.0
      %v1984 = vadd.f32 %v1982, %v1983
      %v1985 = vsel %vm804, %v1932, 0.0
      %v1986 = vadd.f32 %v1984, %v1985
      %v1987 = vsel %vm804, %v1933, 0.0
      %v1988 = vadd.f32 %v1986, %v1987
      %v1989 = vsel %vm804, %v1934, 0.0
      %v1990 = vadd.f32 %v1988, %v1989
      %v1991 = vsel %vm804, %v1935, 0.0
      %v1992 = vadd.f32 %v1990, %v1991
      %v1993 = vsel %vm804, %v1936, 0.0
      %v1994 = vadd.f32 %v1992, %v1993
      %v1995 = vsel %vm804, %v1937, 0.0
      %v1996 = vadd.f32 %v1994, %v1995
      %v1997 = vsel %vm804, %v1938, 0.0
      %v1998 = vadd.f32 %v1996, %v1997
      %v1999 = vsel %vm804, %v1939, 0.0
      %v2000 = vadd.f32 %v1998, %v1999
      %v2001 = vsel %vm804, %v1940, 0.0
      %v2002 = vadd.f32 %v2000, %v2001
      %v2003 = vsel %vm804, %v1941, 0.0
      %v2004 = vadd.f32 %v2002, %v2003
      %v2005 = vsel %vm804, %v1942, 0.0
      %v2006 = vadd.f32 %v2004, %v2005
      %v2007 = vsel %vm804, %v1943, 0.0
      %v2008 = vadd.f32 %v2006, %v2007
      %v2009 = vsel %vm804, %v1944, 0.0
      %v2010 = vadd.f32 %v2008, %v2009
      %v2011 = vsel %vm804, %v1945, 0.0
      %v2012 = vadd.f32 %v2010, %v2011
      %v2013 = vsel %vm804, %v1946, 0.0
      %v2014 = vadd.f32 %v2012, %v2013
      %v2015 = vsel %vm804, %v1947, 0.0
      %v2016 = vadd.f32 %v2014, %v2015
      %v2017 = vsel %vm804, %v1948, 0.0
      %v2018 = vadd.f32 %v2016, %v2017
      %v2019 = vsel %vm804, %v1949, 0.0
      %v2020 = vadd.f32 %v2018, %v2019
      %v2021 = vsel %vm804, %v1950, 0.0
      %v2022 = vadd.f32 %v2020, %v2021
      %v2023 = vsel %vm804, %v1951, 0.0
      %v2024 = vadd.f32 %v2022, %v2023
      %v2025 = vsel %vm804, %v1952, 0.0
      %v2026 = vadd.f32 %v2024, %v2025
      %v2027 = vsel %vm804, %v1953, 0.0
      %v2028 = vadd.f32 %v2026, %v2027
      %v2029 = vsel %vm804, %v1954, 0.0
      %v2030 = vadd.f32 %v2028, %v2029
      %v2031 = vsel %vm804, %v1955, 0.0
      %v2032 = vadd.f32 %v2030, %v2031
      %v2033 = vsel %vm804, %v1956, 0.0
      %v2034 = vadd.f32 %v2032, %v2033
      %v2035 = vsel %vm804, %v1957, 0.0
      %v2036 = vadd.f32 %v2034, %v2035
      %v2037 = vsel %vm804, %v1958, 0.0
      %v2038 = vadd.f32 %v2036, %v2037
      %v2039 = vsel %vm804, %v1959, 0.0
      %v2040 = vadd.f32 %v2038, %v2039
      %v2041 = vsel %vm804, %v1960, 0.0
      %v2042 = vadd.f32 %v2040, %v2041
      %v2043 = vsel %vm804, %v1961, 0.0
      %v2044 = vadd.f32 %v2042, %v2043
      %v2045 = vsel %vm804, %v1962, 0.0
      %v2046 = vadd.f32 %v2044, %v2045
      %v2047 = vsel %vm804, %v1963, 0.0
      %v2048 = vadd.f32 %v2046, %v2047
      %v2049 = vsel %vm804, %v1964, 0.0
      %v2050 = vadd.f32 %v2048, %v2049
      %v2051 = vsel %vm804, %v1965, 0.0
      %v2052 = vadd.f32 %v2050, %v2051
      %v2053 = vsel %vm804, %v1966, 0.0
      %v2054 = vadd.f32 %v2052, %v2053
      %v2055 = vsel %vm804, %v1967, 0.0
      %v2056 = vadd.f32 %v2054, %v2055
      %v2057 = vsel %vm804, %v1968, 0.0
      %v2058 = vadd.f32 %v2056, %v2057
      %v2059 = vsel %vm804, %v1969, 0.0
      %v2060 = vadd.f32 %v2058, %v2059
      %v2061 = vsel %vm804, %v1970, 0.0
      %v2062 = vadd.f32 %v2060, %v2061
      %v2063 = vsel %vm804, %v1971, 0.0
      %v2064 = vadd.f32 %v2062, %v2063
      %v2065 = vsel %vm804, %v1972, 0.0
      %v2066 = vadd.f32 %v2064, %v2065
      %v2067 = vsel %vm804, %v1973, 0.0
      %v2068 = vadd.f32 %v2066, %v2067
      %v2069 = vrot.slane %v2068, 4
      %v2070 = vadd.f32 %v2068, %v2069
      %v2071 = vrot.slane %v2070, 2
      %v2072 = vadd.f32 %v2070, %v2071
      %v2073 = vrot.slane %v2072, 1
      %v2074 = vadd.f32 %v2072, %v2073
      %v2075 = vmul.f32 %v1926, %v1872
      %v2076 = vmul.f32 %v1927, %v1873
      %v2077 = vmul.f32 %v1928, %v1874
      %v2078 = vmul.f32 %v1929, %v1875
      %v2079 = vmul.f32 %v1930, %v1876
      %v2080 = vmul.f32 %v1931, %v1877
      %v2081 = vmul.f32 %v1932, %v1878
      %v2082 = vmul.f32 %v1933, %v1879
      %v2083 = vmul.f32 %v1934, %v1880
      %v2084 = vmul.f32 %v1935, %v1881
      %v2085 = vmul.f32 %v1936, %v1882
      %v2086 = vmul.f32 %v1937, %v1883
      %v2087 = vmul.f32 %v1938, %v1884
      %v2088 = vmul.f32 %v1939, %v1885
      %v2089 = vmul.f32 %v1940, %v1886
      %v2090 = vmul.f32 %v1941, %v1887
      %v2091 = vmul.f32 %v1942, %v1888
      %v2092 = vmul.f32 %v1943, %v1889
      %v2093 = vmul.f32 %v1944, %v1890
      %v2094 = vmul.f32 %v1945, %v1891
      %v2095 = vmul.f32 %v1946, %v1892
      %v2096 = vmul.f32 %v1947, %v1893
      %v2097 = vmul.f32 %v1948, %v1894
      %v2098 = vmul.f32 %v1949, %v1895
      %v2099 = vmul.f32 %v1950, %v1896
      %v2100 = vmul.f32 %v1951, %v1897
      %v2101 = vmul.f32 %v1952, %v1898
      %v2102 = vmul.f32 %v1953, %v1899
      %v2103 = vmul.f32 %v1954, %v1900
      %v2104 = vmul.f32 %v1955, %v1901
      %v2105 = vmul.f32 %v1956, %v1902
      %v2106 = vmul.f32 %v1957, %v1903
      %v2107 = vmul.f32 %v1958, %v1904
      %v2108 = vmul.f32 %v1959, %v1905
      %v2109 = vmul.f32 %v1960, %v1906
      %v2110 = vmul.f32 %v1961, %v1907
      %v2111 = vmul.f32 %v1962, %v1908
      %v2112 = vmul.f32 %v1963, %v1909
      %v2113 = vmul.f32 %v1964, %v1910
      %v2114 = vmul.f32 %v1965, %v1911
      %v2115 = vmul.f32 %v1966, %v1912
      %v2116 = vmul.f32 %v1967, %v1913
      %v2117 = vmul.f32 %v1968, %v1914
      %v2118 = vmul.f32 %v1969, %v1915
      %v2119 = vmul.f32 %v1970, %v1916
      %v2120 = vmul.f32 %v1971, %v1917
      %v2121 = vmul.f32 %v1972, %v1918
      %v2122 = vmul.f32 %v1973, %v1919
      %v2123 = vsel %vm804, %v2075, 0.0
      %v2124 = vsel %vm804, %v2076, 0.0
      %v2125 = vadd.f32 %v2123, %v2124
      %v2126 = vsel %vm804, %v2077, 0.0
      %v2127 = vadd.f32 %v2125, %v2126
      %v2128 = vsel %vm804, %v2078, 0.0
      %v2129 = vadd.f32 %v2127, %v2128
      %v2130 = vsel %vm804, %v2079, 0.0
      %v2131 = vadd.f32 %v2129, %v2130
      %v2132 = vsel %vm804, %v2080, 0.0
      %v2133 = vadd.f32 %v2131, %v2132
      %v2134 = vsel %vm804, %v2081, 0.0
      %v2135 = vadd.f32 %v2133, %v2134
      %v2136 = vsel %vm804, %v2082, 0.0
      %v2137 = vadd.f32 %v2135, %v2136
      %v2138 = vsel %vm804, %v2083, 0.0
      %v2139 = vadd.f32 %v2137, %v2138
      %v2140 = vsel %vm804, %v2084, 0.0
      %v2141 = vadd.f32 %v2139, %v2140
      %v2142 = vsel %vm804, %v2085, 0.0
      %v2143 = vadd.f32 %v2141, %v2142
      %v2144 = vsel %vm804, %v2086, 0.0
      %v2145 = vadd.f32 %v2143, %v2144
      %v2146 = vsel %vm804, %v2087, 0.0
      %v2147 = vadd.f32 %v2145, %v2146
      %v2148 = vsel %vm804, %v2088, 0.0
      %v2149 = vadd.f32 %v2147, %v2148
      %v2150 = vsel %vm804, %v2089, 0.0
      %v2151 = vadd.f32 %v2149, %v2150
      %v2152 = vsel %vm804, %v2090, 0.0
      %v2153 = vadd.f32 %v2151, %v2152
      %v2154 = vsel %vm804, %v2091, 0.0
      %v2155 = vadd.f32 %v2153, %v2154
      %v2156 = vsel %vm804, %v2092, 0.0
      %v2157 = vadd.f32 %v2155, %v2156
      %v2158 = vsel %vm804, %v2093, 0.0
      %v2159 = vadd.f32 %v2157, %v2158
      %v2160 = vsel %vm804, %v2094, 0.0
      %v2161 = vadd.f32 %v2159, %v2160
      %v2162 = vsel %vm804, %v2095, 0.0
      %v2163 = vadd.f32 %v2161, %v2162
      %v2164 = vsel %vm804, %v2096, 0.0
      %v2165 = vadd.f32 %v2163, %v2164
      %v2166 = vsel %vm804, %v2097, 0.0
      %v2167 = vadd.f32 %v2165, %v2166
      %v2168 = vsel %vm804, %v2098, 0.0
      %v2169 = vadd.f32 %v2167, %v2168
      %v2170 = vsel %vm804, %v2099, 0.0
      %v2171 = vadd.f32 %v2169, %v2170
      %v2172 = vsel %vm804, %v2100, 0.0
      %v2173 = vadd.f32 %v2171, %v2172
      %v2174 = vsel %vm804, %v2101, 0.0
      %v2175 = vadd.f32 %v2173, %v2174
      %v2176 = vsel %vm804, %v2102, 0.0
      %v2177 = vadd.f32 %v2175, %v2176
      %v2178 = vsel %vm804, %v2103, 0.0
      %v2179 = vadd.f32 %v2177, %v2178
      %v2180 = vsel %vm804, %v2104, 0.0
      %v2181 = vadd.f32 %v2179, %v2180
      %v2182 = vsel %vm804, %v2105, 0.0
      %v2183 = vadd.f32 %v2181, %v2182
      %v2184 = vsel %vm804, %v2106, 0.0
      %v2185 = vadd.f32 %v2183, %v2184
      %v2186 = vsel %vm804, %v2107, 0.0
      %v2187 = vadd.f32 %v2185, %v2186
      %v2188 = vsel %vm804, %v2108, 0.0
      %v2189 = vadd.f32 %v2187, %v2188
      %v2190 = vsel %vm804, %v2109, 0.0
      %v2191 = vadd.f32 %v2189, %v2190
      %v2192 = vsel %vm804, %v2110, 0.0
      %v2193 = vadd.f32 %v2191, %v2192
      %v2194 = vsel %vm804, %v2111, 0.0
      %v2195 = vadd.f32 %v2193, %v2194
      %v2196 = vsel %vm804, %v2112, 0.0
      %v2197 = vadd.f32 %v2195, %v2196
      %v2198 = vsel %vm804, %v2113, 0.0
      %v2199 = vadd.f32 %v2197, %v2198
      %v2200 = vsel %vm804, %v2114, 0.0
      %v2201 = vadd.f32 %v2199, %v2200
      %v2202 = vsel %vm804, %v2115, 0.0
      %v2203 = vadd.f32 %v2201, %v2202
      %v2204 = vsel %vm804, %v2116, 0.0
      %v2205 = vadd.f32 %v2203, %v2204
      %v2206 = vsel %vm804, %v2117, 0.0
      %v2207 = vadd.f32 %v2205, %v2206
      %v2208 = vsel %vm804, %v2118, 0.0
      %v2209 = vadd.f32 %v2207, %v2208
      %v2210 = vsel %vm804, %v2119, 0.0
      %v2211 = vadd.f32 %v2209, %v2210
      %v2212 = vsel %vm804, %v2120, 0.0
      %v2213 = vadd.f32 %v2211, %v2212
      %v2214 = vsel %vm804, %v2121, 0.0
      %v2215 = vadd.f32 %v2213, %v2214
      %v2216 = vsel %vm804, %v2122, 0.0
      %v2217 = vadd.f32 %v2215, %v2216
      %v2218 = vrot.slane %v2217, 4
      %v2219 = vadd.f32 %v2217, %v2218
      %v2220 = vrot.slane %v2219, 2
      %v2221 = vadd.f32 %v2219, %v2220
      %v2222 = vrot.slane %v2221, 1
      %v2223 = vadd.f32 %v2221, %v2222
      %v2224 = vmul.f32 %v2074, 0.00390625
      %v2225 = vmul.f32 %v2223, 0.00390625
      %v2226 = vmul.f32 %v2224, %v2224
      %v2227 = vsub.f32 %v2225, %v2226
      %v2228 = vmax.f32 %v2227, 0.0
      %v2229 = vsub.f32 %v1872, %v2224
      %v2230 = vsub.f32 %v1873, %v2224
      %v2231 = vsub.f32 %v1875, %v2224
      %v2232 = vsub.f32 %v1876, %v2224
      %v2233 = vsub.f32 %v1878, %v2224
      %v2234 = vsub.f32 %v1879, %v2224
      %v2235 = vsub.f32 %v1881, %v2224
      %v2236 = vsub.f32 %v1882, %v2224
      %v2237 = vsub.f32 %v1884, %v2224
      %v2238 = vsub.f32 %v1885, %v2224
      %v2239 = vsub.f32 %v1887, %v2224
      %v2240 = vsub.f32 %v1888, %v2224
      %v2241 = vsub.f32 %v1890, %v2224
      %v2242 = vsub.f32 %v1891, %v2224
      %v2243 = vsub.f32 %v1893, %v2224
      %v2244 = vsub.f32 %v1894, %v2224
      %v2245 = vsub.f32 %v1896, %v2224
      %v2246 = vsub.f32 %v1897, %v2224
      %v2247 = vsub.f32 %v1899, %v2224
      %v2248 = vsub.f32 %v1900, %v2224
      %v2249 = vsub.f32 %v1902, %v2224
      %v2250 = vsub.f32 %v1903, %v2224
      %v2251 = vsub.f32 %v1905, %v2224
      %v2252 = vsub.f32 %v1906, %v2224
      %v2253 = vsub.f32 %v1908, %v2224
      %v2254 = vsub.f32 %v1909, %v2224
      %v2255 = vsub.f32 %v1911, %v2224
      %v2256 = vsub.f32 %v1912, %v2224
      %v2257 = vsub.f32 %v1914, %v2224
      %v2258 = vsub.f32 %v1915, %v2224
      %v2259 = vsub.f32 %v1917, %v2224
      %v2260 = vsub.f32 %v1918, %v2224
      %v2261 = vadd.f32 %v2228, 1e-05
      %v2262 = vrsqrt.pop %v2261
      %v2263 = vmul.f32 %v2262, %v2261
      %v2264 = vmul.f32 %v2263, %v2262
      %v2265 = vmul.f32 0.5, %v2264
      %v2266 = vsub.f32 1.5, %v2265
      %v2267 = vmul.f32 %v2262, %v2266
      %vm2268 = vweird.f32 %v2261
      %vm2269 = vweird.f32 %v2262
      %vm2270 = vmor %vm2268, %vm2269
      %v2271 = vsel %vm2270, %v2262, %v2267
      %v2272 = vmul.f32 %v2229, %v2271
      %v2273 = vmul.f32 %v2230, %v2271
      %v2274 = vmul.f32 %v2231, %v2271
      %v2275 = vmul.f32 %v2232, %v2271
      %v2276 = vmul.f32 %v2233, %v2271
      %v2277 = vmul.f32 %v2234, %v2271
      %v2278 = vmul.f32 %v2235, %v2271
      %v2279 = vmul.f32 %v2236, %v2271
      %v2280 = vmul.f32 %v2237, %v2271
      %v2281 = vmul.f32 %v2238, %v2271
      %v2282 = vmul.f32 %v2239, %v2271
      %v2283 = vmul.f32 %v2240, %v2271
      %v2284 = vmul.f32 %v2241, %v2271
      %v2285 = vmul.f32 %v2242, %v2271
      %v2286 = vmul.f32 %v2243, %v2271
      %v2287 = vmul.f32 %v2244, %v2271
      %v2288 = vmul.f32 %v2245, %v2271
      %v2289 = vmul.f32 %v2246, %v2271
      %v2290 = vmul.f32 %v2247, %v2271
      %v2291 = vmul.f32 %v2248, %v2271
      %v2292 = vmul.f32 %v2249, %v2271
      %v2293 = vmul.f32 %v2250, %v2271
      %v2294 = vmul.f32 %v2251, %v2271
      %v2295 = vmul.f32 %v2252, %v2271
      %v2296 = vmul.f32 %v2253, %v2271
      %v2297 = vmul.f32 %v2254, %v2271
      %v2298 = vmul.f32 %v2255, %v2271
      %v2299 = vmul.f32 %v2256, %v2271
      %v2300 = vmul.f32 %v2257, %v2271
      %v2301 = vmul.f32 %v2258, %v2271
      %v2302 = vmul.f32 %v2259, %v2271
      %v2303 = vmul.f32 %v2260, %v2271
      %v2304 = vmax.f32 %v2272, 0.0
      %v2305 = vmax.f32 %v2273, 0.0
      %v2306 = vmax.f32 %v2274, 0.0
      %v2307 = vmax.f32 %v2275, 0.0
      %v2308 = vmax.f32 %v2276, 0.0
      %v2309 = vmax.f32 %v2277, 0.0
      %v2310 = vmax.f32 %v2278, 0.0
      %v2311 = vmax.f32 %v2279, 0.0
      %v2312 = vmax.f32 %v2280, 0.0
      %v2313 = vmax.f32 %v2281, 0.0
      %v2314 = vmax.f32 %v2282, 0.0
      %v2315 = vmax.f32 %v2283, 0.0
      %v2316 = vmax.f32 %v2284, 0.0
      %v2317 = vmax.f32 %v2285, 0.0
      %v2318 = vmax.f32 %v2286, 0.0
      %v2319 = vmax.f32 %v2287, 0.0
      %v2320 = vmax.f32 %v2288, 0.0
      %v2321 = vmax.f32 %v2289, 0.0
      %v2322 = vmax.f32 %v2290, 0.0
      %v2323 = vmax.f32 %v2291, 0.0
      %v2324 = vmax.f32 %v2292, 0.0
      %v2325 = vmax.f32 %v2293, 0.0
      %v2326 = vmax.f32 %v2294, 0.0
      %v2327 = vmax.f32 %v2295, 0.0
      %v2328 = vmax.f32 %v2296, 0.0
      %v2329 = vmax.f32 %v2297, 0.0
      %v2330 = vmax.f32 %v2298, 0.0
      %v2331 = vmax.f32 %v2299, 0.0
      %v2332 = vmax.f32 %v2300, 0.0
      %v2333 = vmax.f32 %v2301, 0.0
      %v2334 = vmax.f32 %v2302, 0.0
      %v2335 = vmax.f32 %v2303, 0.0
      %v2336 = vpack.c.bf16 %v2304, %v2304
      %v2337 = vpack.c.bf16 %v2305, %v2305
      %v2338 = vpack.c.bf16 %v2306, %v2306
      %v2339 = vpack.c.bf16 %v2307, %v2307
      %v2340 = vpack.c.bf16 %v2308, %v2308
      %v2341 = vpack.c.bf16 %v2309, %v2309
      %v2342 = vpack.c.bf16 %v2310, %v2310
      %v2343 = vpack.c.bf16 %v2311, %v2311
      %v2344 = vpack.c.bf16 %v2312, %v2312
      %v2345 = vpack.c.bf16 %v2313, %v2313
      %v2346 = vpack.c.bf16 %v2314, %v2314
      %v2347 = vpack.c.bf16 %v2315, %v2315
      %v2348 = vpack.c.bf16 %v2316, %v2316
      %v2349 = vpack.c.bf16 %v2317, %v2317
      %v2350 = vpack.c.bf16 %v2318, %v2318
      %v2351 = vpack.c.bf16 %v2319, %v2319
      %v2352 = vpack.c.bf16 %v2320, %v2320
      %v2353 = vpack.c.bf16 %v2321, %v2321
      %v2354 = vpack.c.bf16 %v2322, %v2322
      %v2355 = vpack.c.bf16 %v2323, %v2323
      %v2356 = vpack.c.bf16 %v2324, %v2324
      %v2357 = vpack.c.bf16 %v2325, %v2325
      %v2358 = vpack.c.bf16 %v2326, %v2326
      %v2359 = vpack.c.bf16 %v2327, %v2327
      %v2360 = vpack.c.bf16 %v2328, %v2328
      %v2361 = vpack.c.bf16 %v2329, %v2329
      %v2362 = vpack.c.bf16 %v2330, %v2330
      %v2363 = vpack.c.bf16 %v2331, %v2331
      %v2364 = vpack.c.bf16 %v2332, %v2332
      %v2365 = vpack.c.bf16 %v2333, %v2333
      %v2366 = vpack.c.bf16 %v2334, %v2334
      %v2367 = vpack.c.bf16 %v2335, %v2335
      %v2384 = vunpack.c.l.b16 %v2336
      %v2385 = vunpack.c.l.b16 %v2338
      %v2386 = vunpack.c.l.b16 %v2340
      %v2387 = vunpack.c.l.b16 %v2342
      %v2388 = vunpack.c.l.b16 %v2344
      %v2389 = vunpack.c.l.b16 %v2346
      %v2390 = vunpack.c.l.b16 %v2348
      %v2391 = vunpack.c.l.b16 %v2350
      %v2392 = vunpack.c.l.b16 %v2352
      %v2393 = vunpack.c.l.b16 %v2354
      %v2394 = vunpack.c.l.b16 %v2356
      %v2395 = vunpack.c.l.b16 %v2358
      %v2396 = vunpack.c.l.b16 %v2360
      %v2397 = vunpack.c.l.b16 %v2362
      %v2398 = vunpack.c.l.b16 %v2364
      %v2399 = vunpack.c.l.b16 %v2366
      %v2400 = vpack.c.b16 %v2384, %v2384
      %v2401 = vpack.c.b16 %v2385, %v2385
      %v2402 = vpack.c.b16 %v2386, %v2386
      %v2403 = vpack.c.b16 %v2387, %v2387
      %v2404 = vpack.c.b16 %v2388, %v2388
      %v2405 = vpack.c.b16 %v2389, %v2389
      %v2406 = vpack.c.b16 %v2390, %v2390
      %v2407 = vpack.c.b16 %v2391, %v2391
      %v2408 = vpack.c.b16 %v2392, %v2392
      %v2409 = vpack.c.b16 %v2393, %v2393
      %v2410 = vpack.c.b16 %v2394, %v2394
      %v2411 = vpack.c.b16 %v2395, %v2395
      %v2412 = vpack.c.b16 %v2396, %v2396
      %v2413 = vpack.c.b16 %v2397, %v2397
      %v2414 = vpack.c.b16 %v2398, %v2398
      %v2415 = vpack.c.b16 %v2399, %v2399
      %v2417 = vshrl.u32 %v2400, 16
      %v2420 = vshrl.u32 %v2401, 16
      %v2423 = vshrl.u32 %v2402, 16
      %v2426 = vshrl.u32 %v2403, 16
      %v2429 = vshrl.u32 %v2404, 16
      %v2432 = vshrl.u32 %v2405, 16
      %v2435 = vshrl.u32 %v2406, 16
      %v2438 = vshrl.u32 %v2407, 16
      %v2441 = vshrl.u32 %v2408, 16
      %v2444 = vshrl.u32 %v2409, 16
      %v2447 = vshrl.u32 %v2410, 16
      %v2450 = vshrl.u32 %v2411, 16
      %v2453 = vshrl.u32 %v2412, 16
      %v2456 = vshrl.u32 %v2413, 16
      %v2459 = vshrl.u32 %v2414, 16
      %v2462 = vshrl.u32 %v2415, 16
      %v2496 = vunpack.c.l.b16 %v2337
      %v2497 = vunpack.c.l.b16 %v2339
      %v2498 = vunpack.c.l.b16 %v2341
      %v2499 = vunpack.c.l.b16 %v2343
      %v2500 = vunpack.c.l.b16 %v2345
      %v2501 = vunpack.c.l.b16 %v2347
      %v2502 = vunpack.c.l.b16 %v2349
      %v2503 = vunpack.c.l.b16 %v2351
      %v2504 = vunpack.c.l.b16 %v2353
      %v2505 = vunpack.c.l.b16 %v2355
      %v2506 = vunpack.c.l.b16 %v2357
      %v2507 = vunpack.c.l.b16 %v2359
      %v2508 = vunpack.c.l.b16 %v2361
      %v2509 = vunpack.c.l.b16 %v2363
      %v2510 = vunpack.c.l.b16 %v2365
      %v2511 = vunpack.c.l.b16 %v2367
      %v2512 = vpack.c.b16 %v2496, %v2384
      %v2513 = vpack.c.b16 %v2497, %v2385
      %v2514 = vpack.c.b16 %v2498, %v2386
      %v2515 = vpack.c.b16 %v2499, %v2387
      %v2516 = vpack.c.b16 %v2500, %v2388
      %v2517 = vpack.c.b16 %v2501, %v2389
      %v2518 = vpack.c.b16 %v2502, %v2390
      %v2519 = vpack.c.b16 %v2503, %v2391
      %v2520 = vpack.c.b16 %v2504, %v2392
      %v2521 = vpack.c.b16 %v2505, %v2393
      %v2522 = vpack.c.b16 %v2506, %v2394
      %v2523 = vpack.c.b16 %v2507, %v2395
      %v2524 = vpack.c.b16 %v2508, %v2396
      %v2525 = vpack.c.b16 %v2509, %v2397
      %v2526 = vpack.c.b16 %v2510, %v2398
      %v2527 = vpack.c.b16 %v2511, %v2399
      %v2529 = vshrl.u32 %v2512, 16
      %v2531 = vrot.slane %v2529, 7
      %v2532 = vshll.u32 %v2512, 16
      %v2534 = vor.u32 %v2531, %v2532
      %v2536 = vshrl.u32 %v2513, 16
      %v2538 = vrot.slane %v2536, 7
      %v2539 = vshll.u32 %v2513, 16
      %v2541 = vor.u32 %v2538, %v2539
      %v2543 = vshrl.u32 %v2514, 16
      %v2545 = vrot.slane %v2543, 7
      %v2546 = vshll.u32 %v2514, 16
      %v2548 = vor.u32 %v2545, %v2546
      %v2550 = vshrl.u32 %v2515, 16
      %v2552 = vrot.slane %v2550, 7
      %v2553 = vshll.u32 %v2515, 16
      %v2555 = vor.u32 %v2552, %v2553
      %v2557 = vshrl.u32 %v2516, 16
      %v2559 = vrot.slane %v2557, 7
      %v2560 = vshll.u32 %v2516, 16
      %v2562 = vor.u32 %v2559, %v2560
      %v2564 = vshrl.u32 %v2517, 16
      %v2566 = vrot.slane %v2564, 7
      %v2567 = vshll.u32 %v2517, 16
      %v2569 = vor.u32 %v2566, %v2567
      %v2571 = vshrl.u32 %v2518, 16
      %v2573 = vrot.slane %v2571, 7
      %v2574 = vshll.u32 %v2518, 16
      %v2576 = vor.u32 %v2573, %v2574
      %v2578 = vshrl.u32 %v2519, 16
      %v2580 = vrot.slane %v2578, 7
      %v2581 = vshll.u32 %v2519, 16
      %v2583 = vor.u32 %v2580, %v2581
      %v2585 = vshrl.u32 %v2520, 16
      %v2587 = vrot.slane %v2585, 7
      %v2588 = vshll.u32 %v2520, 16
      %v2590 = vor.u32 %v2587, %v2588
      %v2592 = vshrl.u32 %v2521, 16
      %v2594 = vrot.slane %v2592, 7
      %v2595 = vshll.u32 %v2521, 16
      %v2597 = vor.u32 %v2594, %v2595
      %v2599 = vshrl.u32 %v2522, 16
      %v2601 = vrot.slane %v2599, 7
      %v2602 = vshll.u32 %v2522, 16
      %v2604 = vor.u32 %v2601, %v2602
      %v2606 = vshrl.u32 %v2523, 16
      %v2608 = vrot.slane %v2606, 7
      %v2609 = vshll.u32 %v2523, 16
      %v2611 = vor.u32 %v2608, %v2609
      %v2613 = vshrl.u32 %v2524, 16
      %v2615 = vrot.slane %v2613, 7
      %v2616 = vshll.u32 %v2524, 16
      %v2618 = vor.u32 %v2615, %v2616
      %v2620 = vshrl.u32 %v2525, 16
      %v2622 = vrot.slane %v2620, 7
      %v2623 = vshll.u32 %v2525, 16
      %v2625 = vor.u32 %v2622, %v2623
      %v2627 = vshrl.u32 %v2526, 16
      %v2629 = vrot.slane %v2627, 7
      %v2630 = vshll.u32 %v2526, 16
      %v2632 = vor.u32 %v2629, %v2630
      %v2634 = vshrl.u32 %v2527, 16
      %v2636 = vrot.slane %v2634, 7
      %v2637 = vshll.u32 %v2527, 16
      %v2639 = vor.u32 %v2636, %v2637
      %v2672 = vpack.c.b16 %v2496, %v2496
      %v2673 = vpack.c.b16 %v2497, %v2497
      %v2674 = vpack.c.b16 %v2498, %v2498
      %v2675 = vpack.c.b16 %v2499, %v2499
      %v2676 = vpack.c.b16 %v2500, %v2500
      %v2677 = vpack.c.b16 %v2501, %v2501
      %v2678 = vpack.c.b16 %v2502, %v2502
      %v2679 = vpack.c.b16 %v2503, %v2503
      %v2680 = vpack.c.b16 %v2504, %v2504
      %v2681 = vpack.c.b16 %v2505, %v2505
      %v2682 = vpack.c.b16 %v2506, %v2506
      %v2683 = vpack.c.b16 %v2507, %v2507
      %v2684 = vpack.c.b16 %v2508, %v2508
      %v2685 = vpack.c.b16 %v2509, %v2509
      %v2686 = vpack.c.b16 %v2510, %v2510
      %v2687 = vpack.c.b16 %v2511, %v2511
      %v2689 = vshll.u32 %v2672, 16
      %v2691 = vrot.slane %v2689, 3
      %v2693 = vshll.u32 %v2673, 16
      %v2695 = vrot.slane %v2693, 3
      %v2697 = vshll.u32 %v2674, 16
      %v2699 = vrot.slane %v2697, 3
      %v2701 = vshll.u32 %v2675, 16
      %v2703 = vrot.slane %v2701, 3
      %v2705 = vshll.u32 %v2676, 16
      %v2707 = vrot.slane %v2705, 3
      %v2709 = vshll.u32 %v2677, 16
      %v2711 = vrot.slane %v2709, 3
      %v2713 = vshll.u32 %v2678, 16
      %v2715 = vrot.slane %v2713, 3
      %v2717 = vshll.u32 %v2679, 16
      %v2719 = vrot.slane %v2717, 3
      %v2721 = vshll.u32 %v2680, 16
      %v2723 = vrot.slane %v2721, 3
      %v2725 = vshll.u32 %v2681, 16
      %v2727 = vrot.slane %v2725, 3
      %v2729 = vshll.u32 %v2682, 16
      %v2731 = vrot.slane %v2729, 3
      %v2733 = vshll.u32 %v2683, 16
      %v2735 = vrot.slane %v2733, 3
      %v2737 = vshll.u32 %v2684, 16
      %v2739 = vrot.slane %v2737, 3
      %v2741 = vshll.u32 %v2685, 16
      %v2743 = vrot.slane %v2741, 3
      %v2745 = vshll.u32 %v2686, 16
      %v2747 = vrot.slane %v2745, 3
      %v2749 = vshll.u32 %v2687, 16
      %v2751 = vrot.slane %v2749, 3
      %vm2768 = vcmask 1040384
      %vm2769 = vsmask.f32 256
      %vm2770 = vmand %vm2768, %vm2769
      %v2771 = vsel %vm2770, %v2417, %v2534
      %v2772 = vsel %vm2770, %v2420, %v2541
      %v2773 = vsel %vm2770, %v2423, %v2548
      %v2774 = vsel %vm2770, %v2426, %v2555
      %v2775 = vsel %vm2770, %v2429, %v2562
      %v2776 = vsel %vm2770, %v2432, %v2569
      %v2777 = vsel %vm2770, %v2435, %v2576
      %v2778 = vsel %vm2770, %v2438, %v2583
      %v2779 = vsel %vm2770, %v2441, %v2590
      %v2780 = vsel %vm2770, %v2444, %v2597
      %v2781 = vsel %vm2770, %v2447, %v2604
      %v2782 = vsel %vm2770, %v2450, %v2611
      %v2783 = vsel %vm2770, %v2453, %v2618
      %v2784 = vsel %vm2770, %v2456, %v2625
      %v2785 = vsel %vm2770, %v2459, %v2632
      %v2786 = vsel %vm2770, %v2462, %v2639
      %v2787 = vsel %vm2770, %v2531, %v2691
      %v2788 = vsel %vm2770, %v2538, %v2695
      %v2789 = vsel %vm2770, %v2545, %v2699
      %v2790 = vsel %vm2770, %v2552, %v2703
      %v2791 = vsel %vm2770, %v2559, %v2707
      %v2792 = vsel %vm2770, %v2566, %v2711
      %v2793 = vsel %vm2770, %v2573, %v2715
      %v2794 = vsel %vm2770, %v2580, %v2719
      %v2795 = vsel %vm2770, %v2587, %v2723
      %v2796 = vsel %vm2770, %v2594, %v2727
      %v2797 = vsel %vm2770, %v2601, %v2731
      %v2798 = vsel %vm2770, %v2608, %v2735
      %v2799 = vsel %vm2770, %v2615, %v2739
      %v2800 = vsel %vm2770, %v2622, %v2743
      %v2801 = vsel %vm2770, %v2629, %v2747
      %v2802 = vsel %vm2770, %v2636, %v2751
      %vm2803 = vcmask 1040384
      %v2806 = vsel %vm2803, %v2787, 0
      %v2808 = vsel %vm2803, %v2788, 0
      %v2810 = vsel %vm2803, %v2789, 0
      %v2812 = vsel %vm2803, %v2790, 0
      %v2814 = vsel %vm2803, %v2791, 0
      %v2816 = vsel %vm2803, %v2792, 0
      %v2818 = vsel %vm2803, %v2793, 0
      %v2820 = vsel %vm2803, %v2794, 0
      %v2822 = vsel %vm2803, %v2795, 0
      %v2824 = vsel %vm2803, %v2796, 0
      %v2826 = vsel %vm2803, %v2797, 0
      %v2828 = vsel %vm2803, %v2798, 0
      %v2830 = vsel %vm2803, %v2799, 0
      %v2832 = vsel %vm2803, %v2800, 0
      %v2834 = vsel %vm2803, %v2801, 0
      %v2836 = vsel %vm2803, %v2802, 0
      %v2870 = vunpack.c.l.b16 %v2772
      %v2871 = vunpack.c.h.b16 %v2772
      %v2872 = vunpack.c.l.b16 %v2808
      %v2873 = vunpack.c.l.b16 %v2771
      %v2874 = vunpack.c.h.b16 %v2771
      %v2875 = vunpack.c.l.b16 %v2806
      %v2876 = vunpack.c.l.b16 %v2773
      %v2877 = vunpack.c.h.b16 %v2773
      %v2878 = vunpack.c.l.b16 %v2810
      %v2879 = vunpack.c.l.b16 %v2774
      %v2880 = vunpack.c.h.b16 %v2774
      %v2881 = vunpack.c.l.b16 %v2812
      %v2882 = vunpack.c.l.b16 %v2775
      %v2883 = vunpack.c.h.b16 %v2775
      %v2884 = vunpack.c.l.b16 %v2814
      %v2885 = vunpack.c.l.b16 %v2776
      %v2886 = vunpack.c.h.b16 %v2776
      %v2887 = vunpack.c.l.b16 %v2816
      %v2888 = vunpack.c.l.b16 %v2777
      %v2889 = vunpack.c.h.b16 %v2777
      %v2890 = vunpack.c.l.b16 %v2818
      %v2891 = vunpack.c.l.b16 %v2778
      %v2892 = vunpack.c.h.b16 %v2778
      %v2893 = vunpack.c.l.b16 %v2820
      %v2894 = vunpack.c.l.b16 %v2779
      %v2895 = vunpack.c.h.b16 %v2779
      %v2896 = vunpack.c.l.b16 %v2822
      %v2897 = vunpack.c.l.b16 %v2780
      %v2898 = vunpack.c.h.b16 %v2780
      %v2899 = vunpack.c.l.b16 %v2824
      %v2900 = vunpack.c.l.b16 %v2781
      %v2901 = vunpack.c.h.b16 %v2781
      %v2902 = vunpack.c.l.b16 %v2826
      %v2903 = vunpack.c.l.b16 %v2782
      %v2904 = vunpack.c.h.b16 %v2782
      %v2905 = vunpack.c.l.b16 %v2828
      %v2906 = vunpack.c.l.b16 %v2783
      %v2907 = vunpack.c.h.b16 %v2783
      %v2908 = vunpack.c.l.b16 %v2830
      %v2909 = vunpack.c.l.b16 %v2784
      %v2910 = vunpack.c.h.b16 %v2784
      %v2911 = vunpack.c.l.b16 %v2832
      %v2912 = vunpack.c.l.b16 %v2785
      %v2913 = vunpack.c.h.b16 %v2785
      %v2914 = vunpack.c.l.b16 %v2834
      %v2915 = vunpack.c.l.b16 %v2786
      %v2916 = vunpack.c.h.b16 %v2786
      %v2917 = vunpack.c.l.b16 %v2836
      %v2918 = vunpack.c.l.b16 0
      %v2919 = vpack.c.b16 %v2871, %v2870
      %v2920 = vpack.c.b16 %v2873, %v2872
      %v2921 = vpack.c.b16 %v2875, %v2874
      %v2922 = vpack.c.b16 %v2876, %v2872
      %v2923 = vpack.c.b16 %v2878, %v2877
      %v2924 = vpack.c.b16 %v2880, %v2879
      %v2925 = vpack.c.b16 %v2882, %v2881
      %v2926 = vpack.c.b16 %v2884, %v2883
      %v2927 = vpack.c.b16 %v2886, %v2885
      %v2928 = vpack.c.b16 %v2888, %v2887
      %v2929 = vpack.c.b16 %v2890, %v2889
      %v2930 = vpack.c.b16 %v2892, %v2891
      %v2931 = vpack.c.b16 %v2894, %v2893
      %v2932 = vpack.c.b16 %v2896, %v2895
      %v2933 = vpack.c.b16 %v2898, %v2897
      %v2934 = vpack.c.b16 %v2900, %v2899
      %v2935 = vpack.c.b16 %v2902, %v2901
      %v2936 = vpack.c.b16 %v2904, %v2903
      %v2937 = vpack.c.b16 %v2906, %v2905
      %v2938 = vpack.c.b16 %v2908, %v2907
      %v2939 = vpack.c.b16 %v2910, %v2909
      %v2940 = vpack.c.b16 %v2912, %v2911
      %v2941 = vpack.c.b16 %v2914, %v2913
      %v2942 = vpack.c.b16 %v2916, %v2915
      %v2943 = vpack.c.b16 %v2912, %v2917
      %v2944 = vpack.c.b16 %v2918, %v2918
      %v2946 = vshrl.u32 %v2919, 16
      %v2948 = vshll.u32 %v2919, 16
      %v2950 = vrot.slane %v2948, 1
      %v2951 = vor.u32 %v2946, %v2950
      %v2953 = vshll.u32 %v2920, 16
      %v2955 = vrot.slane %v2953, 1
      %v2956 = vsel %vm419, %v2951, %v2955
      %v2957 = vshrl.u32 %v2920, 16
      %v2959 = vor.u32 %v2957, %v2955
      %v2961 = vshll.u32 %v2921, 16
      %v2963 = vrot.slane %v2961, 1
      %v2964 = vsel %vm419, %v2959, %v2963
      %v2965 = vshrl.u32 %v2921, 16
      %v2967 = vor.u32 %v2965, %v2963
      %v2968 = vsel %vm419, %v2967, %v2950
      %v2970 = vshll.u32 %v2922, 16
      %v2972 = vrot.slane %v2970, 1
      %v2973 = vsel %vm419, %v2951, %v2972
      %v2974 = vshrl.u32 %v2922, 16
      %v2976 = vor.u32 %v2974, %v2972
      %v2978 = vshll.u32 %v2923, 16
      %v2980 = vrot.slane %v2978, 1
      %v2981 = vsel %vm419, %v2976, %v2980
      %v2982 = vshrl.u32 %v2923, 16
      %v2984 = vor.u32 %v2982, %v2980
      %v2986 = vshll.u32 %v2924, 16
      %v2988 = vrot.slane %v2986, 1
      %v2989 = vsel %vm419, %v2984, %v2988
      %v2990 = vshrl.u32 %v2924, 16
      %v2992 = vor.u32 %v2990, %v2988
      %v2994 = vshll.u32 %v2925, 16
      %v2996 = vrot.slane %v2994, 1
      %v2997 = vsel %vm419, %v2992, %v2996
      %v2998 = vshrl.u32 %v2925, 16
      %v3000 = vor.u32 %v2998, %v2996
      %v3002 = vshll.u32 %v2926, 16
      %v3004 = vrot.slane %v3002, 1
      %v3005 = vsel %vm419, %v3000, %v3004
      %v3006 = vshrl.u32 %v2926, 16
      %v3008 = vor.u32 %v3006, %v3004
      %v3010 = vshll.u32 %v2927, 16
      %v3012 = vrot.slane %v3010, 1
      %v3013 = vsel %vm419, %v3008, %v3012
      %v3014 = vshrl.u32 %v2927, 16
      %v3016 = vor.u32 %v3014, %v3012
      %v3018 = vshll.u32 %v2928, 16
      %v3020 = vrot.slane %v3018, 1
      %v3021 = vsel %vm419, %v3016, %v3020
      %v3022 = vshrl.u32 %v2928, 16
      %v3024 = vor.u32 %v3022, %v3020
      %v3026 = vshll.u32 %v2929, 16
      %v3028 = vrot.slane %v3026, 1
      %v3029 = vsel %vm419, %v3024, %v3028
      %v3030 = vshrl.u32 %v2929, 16
      %v3032 = vor.u32 %v3030, %v3028
      %v3034 = vshll.u32 %v2930, 16
      %v3036 = vrot.slane %v3034, 1
      %v3037 = vsel %vm419, %v3032, %v3036
      %v3038 = vshrl.u32 %v2930, 16
      %v3040 = vor.u32 %v3038, %v3036
      %v3042 = vshll.u32 %v2931, 16
      %v3044 = vrot.slane %v3042, 1
      %v3045 = vsel %vm419, %v3040, %v3044
      %v3046 = vshrl.u32 %v2931, 16
      %v3048 = vor.u32 %v3046, %v3044
      %v3050 = vshll.u32 %v2932, 16
      %v3052 = vrot.slane %v3050, 1
      %v3053 = vsel %vm419, %v3048, %v3052
      %v3054 = vshrl.u32 %v2932, 16
      %v3056 = vor.u32 %v3054, %v3052
      %v3058 = vshll.u32 %v2933, 16
      %v3060 = vrot.slane %v3058, 1
      %v3061 = vsel %vm419, %v3056, %v3060
      %v3062 = vshrl.u32 %v2933, 16
      %v3064 = vor.u32 %v3062, %v3060
      %v3066 = vshll.u32 %v2934, 16
      %v3068 = vrot.slane %v3066, 1
      %v3069 = vsel %vm419, %v3064, %v3068
      %v3070 = vshrl.u32 %v2934, 16
      %v3072 = vor.u32 %v3070, %v3068
      %v3074 = vshll.u32 %v2935, 16
      %v3076 = vrot.slane %v3074, 1
      %v3077 = vsel %vm419, %v3072, %v3076
      %v3078 = vshrl.u32 %v2935, 16
      %v3080 = vor.u32 %v3078, %v3076
      %v3082 = vshll.u32 %v2936, 16
      %v3084 = vrot.slane %v3082, 1
      %v3085 = vsel %vm419, %v3080, %v3084
      %v3086 = vshrl.u32 %v2936, 16
      %v3088 = vor.u32 %v3086, %v3084
      %v3090 = vshll.u32 %v2937, 16
      %v3092 = vrot.slane %v3090, 1
      %v3093 = vsel %vm419, %v3088, %v3092
      %v3094 = vshrl.u32 %v2937, 16
      %v3096 = vor.u32 %v3094, %v3092
      %v3098 = vshll.u32 %v2938, 16
      %v3100 = vrot.slane %v3098, 1
      %v3101 = vsel %vm419, %v3096, %v3100
      %v3102 = vshrl.u32 %v2938, 16
      %v3104 = vor.u32 %v3102, %v3100
      %v3106 = vshll.u32 %v2939, 16
      %v3108 = vrot.slane %v3106, 1
      %v3109 = vsel %vm419, %v3104, %v3108
      %v3110 = vshrl.u32 %v2939, 16
      %v3112 = vor.u32 %v3110, %v3108
      %v3114 = vshll.u32 %v2940, 16
      %v3116 = vrot.slane %v3114, 1
      %v3117 = vsel %vm419, %v3112, %v3116
      %v3118 = vshrl.u32 %v2940, 16
      %v3120 = vor.u32 %v3118, %v3116
      %v3122 = vshll.u32 %v2941, 16
      %v3124 = vrot.slane %v3122, 1
      %v3125 = vsel %vm419, %v3120, %v3124
      %v3126 = vshrl.u32 %v2941, 16
      %v3128 = vor.u32 %v3126, %v3124
      %v3130 = vshll.u32 %v2942, 16
      %v3132 = vrot.slane %v3130, 1
      %v3133 = vsel %vm419, %v3128, %v3132
      %v3134 = vshrl.u32 %v2942, 16
      %v3136 = vor.u32 %v3134, %v3132
      %v3138 = vshll.u32 %v2943, 16
      %v3140 = vrot.slane %v3138, 1
      %v3141 = vsel %vm419, %v3136, %v3140
      %v3142 = vshrl.u32 %v2943, 16
      %v3144 = vor.u32 %v3142, %v3140
      %v3145 = vsel %vm419, %v3144, %v3124
      %v3147 = vshll.u32 %v2944, 16
      %v3149 = vrot.slane %v3147, 1
      %v3150 = vsel %vm419, %v3128, %v3149
      %3151 = vrot.lane.b32.xlu0 %v2956, 4
      %v3152 = vpop.permute.xlu0 %3151
      %3153 = vrot.lane.b32.xlu0 %v2964, 4
      %v3154 = vpop.permute.xlu0 %3153
      %3155 = vrot.lane.b32.xlu0 %v2968, 4
      %v3156 = vpop.permute.xlu0 %3155
      %3157 = vrot.lane.b32.xlu0 %v2973, 4
      %v3158 = vpop.permute.xlu0 %3157
      %3159 = vrot.lane.b32.xlu0 %v2981, 4
      %v3160 = vpop.permute.xlu0 %3159
      %3161 = vrot.lane.b32.xlu0 %v2989, 4
      %v3162 = vpop.permute.xlu0 %3161
      %3163 = vrot.lane.b32.xlu0 %v2997, 4
      %v3164 = vpop.permute.xlu0 %3163
      %3165 = vrot.lane.b32.xlu0 %v3005, 4
      %v3166 = vpop.permute.xlu0 %3165
      %3167 = vrot.lane.b32.xlu0 %v3013, 4
      %v3168 = vpop.permute.xlu0 %3167
      %3169 = vrot.lane.b32.xlu0 %v3021, 4
      %v3170 = vpop.permute.xlu0 %3169
      %3171 = vrot.lane.b32.xlu0 %v3029, 4
      %v3172 = vpop.permute.xlu0 %3171
      %3173 = vrot.lane.b32.xlu0 %v3037, 4
      %v3174 = vpop.permute.xlu0 %3173
      %3175 = vrot.lane.b32.xlu0 %v3045, 4
      %v3176 = vpop.permute.xlu0 %3175
      %3177 = vrot.lane.b32.xlu0 %v3053, 4
      %v3178 = vpop.permute.xlu0 %3177
      %3179 = vrot.lane.b32.xlu0 %v3061, 4
      %v3180 = vpop.permute.xlu0 %3179
      %3181 = vrot.lane.b32.xlu0 %v3069, 4
      %v3182 = vpop.permute.xlu0 %3181
      %3183 = vrot.lane.b32.xlu0 %v3077, 4
      %v3184 = vpop.permute.xlu0 %3183
      %3185 = vrot.lane.b32.xlu0 %v3085, 4
      %v3186 = vpop.permute.xlu0 %3185
      %3187 = vrot.lane.b32.xlu0 %v3093, 4
      %v3188 = vpop.permute.xlu0 %3187
      %3189 = vrot.lane.b32.xlu0 %v3101, 4
      %v3190 = vpop.permute.xlu0 %3189
      %3191 = vrot.lane.b32.xlu0 %v3109, 4
      %v3192 = vpop.permute.xlu0 %3191
      %3193 = vrot.lane.b32.xlu0 %v3117, 4
      %v3194 = vpop.permute.xlu0 %3193
      %3195 = vrot.lane.b32.xlu0 %v3125, 4
      %v3196 = vpop.permute.xlu0 %3195
      %3197 = vrot.lane.b32.xlu0 %v3133, 4
      %v3198 = vpop.permute.xlu0 %3197
      %3199 = vrot.lane.b32.xlu0 %v3141, 4
      %v3200 = vpop.permute.xlu0 %3199
      %3201 = vrot.lane.b32.xlu0 %v3145, 4
      %v3202 = vpop.permute.xlu0 %3201
      %3203 = vrot.lane.b32.xlu0 %v3150, 4
      %v3204 = vpop.permute.xlu0 %3203
      %v3205 = vrot.slane %v2919, 1
      %v3206 = vrot.slane %v2920, 1
      %v3207 = vsel %vm694, %v3205, %v3206
      %v3208 = vrot.slane %v2921, 1
      %v3209 = vsel %vm694, %v3206, %v3208
      %v3210 = vsel %vm694, %v3208, %v3205
      %v3211 = vrot.slane %v2922, 1
      %v3212 = vsel %vm694, %v3205, %v3211
      %v3213 = vrot.slane %v2923, 1
      %v3214 = vsel %vm694, %v3211, %v3213
      %v3215 = vrot.slane %v2924, 1
      %v3216 = vsel %vm694, %v3213, %v3215
      %v3217 = vrot.slane %v2925, 1
      %v3218 = vsel %vm694, %v3215, %v3217
      %v3219 = vrot.slane %v2926, 1
      %v3220 = vsel %vm694, %v3217, %v3219
      %v3221 = vrot.slane %v2927, 1
      %v3222 = vsel %vm694, %v3219, %v3221
      %v3223 = vrot.slane %v2928, 1
      %v3224 = vsel %vm694, %v3221, %v3223
      %v3225 = vrot.slane %v2929, 1
      %v3226 = vsel %vm694, %v3223, %v3225
      %v3227 = vrot.slane %v2930, 1
      %v3228 = vsel %vm694, %v3225, %v3227
      %v3229 = vrot.slane %v2931, 1
      %v3230 = vsel %vm694, %v3227, %v3229
      %v3231 = vrot.slane %v2932, 1
      %v3232 = vsel %vm694, %v3229, %v3231
      %v3233 = vrot.slane %v2933, 1
      %v3234 = vsel %vm694, %v3231, %v3233
      %v3235 = vrot.slane %v2934, 1
      %v3236 = vsel %vm694, %v3233, %v3235
      %v3237 = vrot.slane %v2935, 1
      %v3238 = vsel %vm694, %v3235, %v3237
      %v3239 = vrot.slane %v2936, 1
      %v3240 = vsel %vm694, %v3237, %v3239
      %v3241 = vrot.slane %v2937, 1
      %v3242 = vsel %vm694, %v3239, %v3241
      %v3243 = vrot.slane %v2938, 1
      %v3244 = vsel %vm694, %v3241, %v3243
      %v3245 = vrot.slane %v2939, 1
      %v3246 = vsel %vm694, %v3243, %v3245
      %v3247 = vrot.slane %v2940, 1
      %v3248 = vsel %vm694, %v3245, %v3247
      %v3249 = vrot.slane %v2941, 1
      %v3250 = vsel %vm694, %v3247, %v3249
      %v3251 = vrot.slane %v2942, 1
      %v3252 = vsel %vm694, %v3249, %v3251
      %v3253 = vrot.slane %v2943, 1
      %v3254 = vsel %vm694, %v3251, %v3253
      %v3255 = vsel %vm694, %v3253, %v3249
      %v3256 = vrot.slane %v2944, 1
      %v3257 = vsel %vm694, %v3249, %v3256
      %3258 = vrot.lane.b32.xlu0 %v3207, 8
      %v3259 = vpop.permute.xlu0 %3258
      %3260 = vrot.lane.b32.xlu0 %v3209, 8
      %v3261 = vpop.permute.xlu0 %3260
      %3262 = vrot.lane.b32.xlu0 %v3210, 8
      %v3263 = vpop.permute.xlu0 %3262
      %3264 = vrot.lane.b32.xlu0 %v3212, 8
      %v3265 = vpop.permute.xlu0 %3264
      %3266 = vrot.lane.b32.xlu0 %v3214, 8
      %v3267 = vpop.permute.xlu0 %3266
      %3268 = vrot.lane.b32.xlu0 %v3216, 8
      %v3269 = vpop.permute.xlu0 %3268
      %3270 = vrot.lane.b32.xlu0 %v3218, 8
      %v3271 = vpop.permute.xlu0 %3270
      %3272 = vrot.lane.b32.xlu0 %v3220, 8
      %v3273 = vpop.permute.xlu0 %3272
      %3274 = vrot.lane.b32.xlu0 %v3222, 8
      %v3275 = vpop.permute.xlu0 %3274
      %3276 = vrot.lane.b32.xlu0 %v3224, 8
      %v3277 = vpop.permute.xlu0 %3276
      %3278 = vrot.lane.b32.xlu0 %v3226, 8
      %v3279 = vpop.permute.xlu0 %3278
      %3280 = vrot.lane.b32.xlu0 %v3228, 8
      %v3281 = vpop.permute.xlu0 %3280
      %3282 = vrot.lane.b32.xlu0 %v3230, 8
      %v3283 = vpop.permute.xlu0 %3282
      %3284 = vrot.lane.b32.xlu0 %v3232, 8
      %v3285 = vpop.permute.xlu0 %3284
      %3286 = vrot.lane.b32.xlu0 %v3234, 8
      %v3287 = vpop.permute.xlu0 %3286
      %3288 = vrot.lane.b32.xlu0 %v3236, 8
      %v3289 = vpop.permute.xlu0 %3288
      %3290 = vrot.lane.b32.xlu0 %v3238, 8
      %v3291 = vpop.permute.xlu0 %3290
      %3292 = vrot.lane.b32.xlu0 %v3240, 8
      %v3293 = vpop.permute.xlu0 %3292
      %3294 = vrot.lane.b32.xlu0 %v3242, 8
      %v3295 = vpop.permute.xlu0 %3294
      %3296 = vrot.lane.b32.xlu0 %v3244, 8
      %v3297 = vpop.permute.xlu0 %3296
      %3298 = vrot.lane.b32.xlu0 %v3246, 8
      %v3299 = vpop.permute.xlu0 %3298
      %3300 = vrot.lane.b32.xlu0 %v3248, 8
      %v3301 = vpop.permute.xlu0 %3300
      %3302 = vrot.lane.b32.xlu0 %v3250, 8
      %v3303 = vpop.permute.xlu0 %3302
      %3304 = vrot.lane.b32.xlu0 %v3252, 8
      %v3305 = vpop.permute.xlu0 %3304
      %3306 = vrot.lane.b32.xlu0 %v3254, 8
      %v3307 = vpop.permute.xlu0 %3306
      %3308 = vrot.lane.b32.xlu0 %v3255, 8
      %v3309 = vpop.permute.xlu0 %3308
      %3310 = vrot.lane.b32.xlu0 %v3257, 8
      %v3311 = vpop.permute.xlu0 %3310
      %v3313 = vsel %vm804, %v2919, %v3152
      %v3315 = vsel %vm804, %v2920, %v3154
      %v3317 = vsel %vm804, %v2921, %v3156
      %v3319 = vsel %vm804, %v2919, %v3158
      %v3321 = vsel %vm804, %v2922, %v3160
      %v3323 = vsel %vm804, %v2923, %v3162
      %v3325 = vsel %vm804, %v2924, %v3164
      %v3327 = vsel %vm804, %v2925, %v3166
      %v3329 = vsel %vm804, %v2926, %v3168
      %v3331 = vsel %vm804, %v2927, %v3170
      %v3333 = vsel %vm804, %v2928, %v3172
      %v3335 = vsel %vm804, %v2929, %v3174
      %v3337 = vsel %vm804, %v2930, %v3176
      %v3339 = vsel %vm804, %v2931, %v3178
      %v3341 = vsel %vm804, %v2932, %v3180
      %v3343 = vsel %vm804, %v2933, %v3182
      %v3345 = vsel %vm804, %v2934, %v3184
      %v3347 = vsel %vm804, %v2935, %v3186
      %v3349 = vsel %vm804, %v2936, %v3188
      %v3351 = vsel %vm804, %v2937, %v3190
      %v3353 = vsel %vm804, %v2938, %v3192
      %v3355 = vsel %vm804, %v2939, %v3194
      %v3357 = vsel %vm804, %v2940, %v3196
      %v3359 = vsel %vm804, %v2941, %v3198
      %v3361 = vsel %vm804, %v2942, %v3200
      %v3363 = vsel %vm804, %v2943, %v3202
      %v3365 = vsel %vm804, %v2941, %v3204
      %v3367 = vsel %vm859, %v3313, %v3259
      %v3369 = vsel %vm859, %v3315, %v3261
      %v3371 = vsel %vm859, %v3317, %v3263
      %v3373 = vsel %vm859, %v3319, %v3265
      %v3375 = vsel %vm859, %v3321, %v3267
      %v3377 = vsel %vm859, %v3323, %v3269
      %v3379 = vsel %vm859, %v3325, %v3271
      %v3381 = vsel %vm859, %v3327, %v3273
      %v3383 = vsel %vm859, %v3329, %v3275
      %v3385 = vsel %vm859, %v3331, %v3277
      %v3387 = vsel %vm859, %v3333, %v3279
      %v3389 = vsel %vm859, %v3335, %v3281
      %v3391 = vsel %vm859, %v3337, %v3283
      %v3393 = vsel %vm859, %v3339, %v3285
      %v3395 = vsel %vm859, %v3341, %v3287
      %v3397 = vsel %vm859, %v3343, %v3289
      %v3399 = vsel %vm859, %v3345, %v3291
      %v3401 = vsel %vm859, %v3347, %v3293
      %v3403 = vsel %vm859, %v3349, %v3295
      %v3405 = vsel %vm859, %v3351, %v3297
      %v3407 = vsel %vm859, %v3353, %v3299
      %v3409 = vsel %vm859, %v3355, %v3301
      %v3411 = vsel %vm859, %v3357, %v3303
      %v3413 = vsel %vm859, %v3359, %v3305
      %v3415 = vsel %vm859, %v3361, %v3307
      %v3417 = vsel %vm859, %v3363, %v3309
      %v3419 = vsel %vm859, %v3365, %v3311
      %v3420 = vld [vmem:[%s3] sm:$0xf]
      %v3421 = vld [vmem:[%s3 + $0x4] sm:$0x3]
      %v3424 = vunpack.c.l.b16 %v3420
      %v3425 = vunpack.c.l.b16 %v3421
      %v3426 = vpack.c.b16 %v3425, %v3424
      %v3427 = vsel %vm921, %v3367, 0
      %v3429 = vsel %vm921, %v3369, 0
      %v3431 = vsel %vm921, %v3371, 0
      %v3433 = vsel %vm921, %v3373, 0
      %v3435 = vsel %vm921, %v3375, 0
      %v3437 = vsel %vm921, %v3377, 0
      %v3439 = vsel %vm921, %v3379, 0
      %v3441 = vsel %vm921, %v3381, 0
      %v3443 = vsel %vm921, %v3383, 0
      %v3445 = vsel %vm921, %v3385, 0
      %v3447 = vsel %vm921, %v3387, 0
      %v3449 = vsel %vm921, %v3389, 0
      %v3451 = vsel %vm921, %v3391, 0
      %v3453 = vsel %vm921, %v3393, 0
      %v3455 = vsel %vm921, %v3395, 0
      %v3457 = vsel %vm921, %v3397, 0
      %v3459 = vsel %vm921, %v3399, 0
      %v3461 = vsel %vm921, %v3401, 0
      %v3463 = vsel %vm921, %v3403, 0
      %v3465 = vsel %vm921, %v3405, 0
      %v3467 = vsel %vm921, %v3407, 0
      %v3469 = vsel %vm921, %v3409, 0
      %v3471 = vsel %vm921, %v3411, 0
      %v3473 = vsel %vm921, %v3413, 0
      %v3476 = vsel %vm970, %v3426, 0
      %3478 = vmatpush.bf16.msra.mxu0 0
      %3479 = vmatpush.bf16.msra.mxu0 0
      %3480 = vmatpush.bf16.msra.mxu0 0
      %3481 = vmatpush.bf16.msra.mxu0 0
      %3482 = vmatpush.bf16.msra.mxu0 0
      %3483 = vmatpush.bf16.msra.mxu0 0
      %3484 = vmatpush.bf16.msra.mxu0 0
      %3485 = vmatpush.bf16.msra.mxu0 %v3476
      %3486 = vmatmul.bf16.gmra.mxu0 %v3427
      %v3487 = vpop.f32.mrf.mxu0
      %v3488 = vadd.f32 0.0, %v3487
      %v3489 = vpop.f32.mrf.mxu0
      %v3490 = vadd.f32 0.0, %v3489
      %3491 = vmatmul.bf16.gmra.mxu0 %v3429
      %v3492 = vpop.f32.mrf.mxu0
      %v3493 = vadd.f32 0.0, %v3492
      %v3494 = vpop.f32.mrf.mxu0
      %v3495 = vadd.f32 0.0, %v3494
      %3496 = vmatmul.bf16.gmra.mxu0 %v3431
      %v3497 = vpop.f32.mrf.mxu0
      %v3498 = vadd.f32 0.0, %v3497
      %v3499 = vpop.f32.mrf.mxu0
      %v3500 = vadd.f32 0.0, %v3499
      %3501 = vmatmul.bf16.gmra.mxu0 %v3433
      %v3502 = vpop.f32.mrf.mxu0
      %v3503 = vadd.f32 0.0, %v3502
      %v3504 = vpop.f32.mrf.mxu0
      %v3505 = vadd.f32 0.0, %v3504
      %3506 = vmatmul.bf16.gmra.mxu0 %v3435
      %v3507 = vpop.f32.mrf.mxu0
      %v3508 = vadd.f32 0.0, %v3507
      %v3509 = vpop.f32.mrf.mxu0
      %v3510 = vadd.f32 0.0, %v3509
      %3511 = vmatmul.bf16.gmra.mxu0 %v3437
      %v3512 = vpop.f32.mrf.mxu0
      %v3513 = vadd.f32 0.0, %v3512
      %v3514 = vpop.f32.mrf.mxu0
      %v3515 = vadd.f32 0.0, %v3514
      %3516 = vmatmul.bf16.gmra.mxu0 %v3439
      %v3517 = vpop.f32.mrf.mxu0
      %v3518 = vadd.f32 0.0, %v3517
      %v3519 = vpop.f32.mrf.mxu0
      %v3520 = vadd.f32 0.0, %v3519
      %3521 = vmatmul.bf16.gmra.mxu0 %v3441
      %v3522 = vpop.f32.mrf.mxu0
      %v3523 = vadd.f32 0.0, %v3522
      %v3524 = vpop.f32.mrf.mxu0
      %v3525 = vadd.f32 0.0, %v3524
      %3526 = vmatmul.bf16.gmra.mxu0 %v3443
      %v3527 = vpop.f32.mrf.mxu0
      %v3528 = vadd.f32 0.0, %v3527
      %v3529 = vpop.f32.mrf.mxu0
      %v3530 = vadd.f32 0.0, %v3529
      %3531 = vmatmul.bf16.gmra.mxu0 %v3445
      %v3532 = vpop.f32.mrf.mxu0
      %v3533 = vadd.f32 0.0, %v3532
      %v3534 = vpop.f32.mrf.mxu0
      %v3535 = vadd.f32 0.0, %v3534
      %3536 = vmatmul.bf16.gmra.mxu0 %v3447
      %v3537 = vpop.f32.mrf.mxu0
      %v3538 = vadd.f32 0.0, %v3537
      %v3539 = vpop.f32.mrf.mxu0
      %v3540 = vadd.f32 0.0, %v3539
      %3541 = vmatmul.bf16.gmra.mxu0 %v3449
      %v3542 = vpop.f32.mrf.mxu0
      %v3543 = vadd.f32 0.0, %v3542
      %v3544 = vpop.f32.mrf.mxu0
      %v3545 = vadd.f32 0.0, %v3544
      %3546 = vmatmul.bf16.gmra.mxu0 %v3451
      %v3547 = vpop.f32.mrf.mxu0
      %v3548 = vadd.f32 0.0, %v3547
      %v3549 = vpop.f32.mrf.mxu0
      %v3550 = vadd.f32 0.0, %v3549
      %3551 = vmatmul.bf16.gmra.mxu0 %v3453
      %v3552 = vpop.f32.mrf.mxu0
      %v3553 = vadd.f32 0.0, %v3552
      %v3554 = vpop.f32.mrf.mxu0
      %v3555 = vadd.f32 0.0, %v3554
      %3556 = vmatmul.bf16.gmra.mxu0 %v3455
      %v3557 = vpop.f32.mrf.mxu0
      %v3558 = vadd.f32 0.0, %v3557
      %v3559 = vpop.f32.mrf.mxu0
      %v3560 = vadd.f32 0.0, %v3559
      %3561 = vmatmul.bf16.gmra.mxu0 %v3457
      %v3562 = vpop.f32.mrf.mxu0
      %v3563 = vadd.f32 0.0, %v3562
      %v3564 = vpop.f32.mrf.mxu0
      %v3565 = vadd.f32 0.0, %v3564
      %3566 = vmatmul.bf16.gmra.mxu0 %v3459
      %v3567 = vpop.f32.mrf.mxu0
      %v3568 = vadd.f32 0.0, %v3567
      %v3569 = vpop.f32.mrf.mxu0
      %v3570 = vadd.f32 0.0, %v3569
      %3571 = vmatmul.bf16.gmra.mxu0 %v3461
      %v3572 = vpop.f32.mrf.mxu0
      %v3573 = vadd.f32 0.0, %v3572
      %v3574 = vpop.f32.mrf.mxu0
      %v3575 = vadd.f32 0.0, %v3574
      %3576 = vmatmul.bf16.gmra.mxu0 %v3463
      %v3577 = vpop.f32.mrf.mxu0
      %v3578 = vadd.f32 0.0, %v3577
      %v3579 = vpop.f32.mrf.mxu0
      %v3580 = vadd.f32 0.0, %v3579
      %3581 = vmatmul.bf16.gmra.mxu0 %v3465
      %v3582 = vpop.f32.mrf.mxu0
      %v3583 = vadd.f32 0.0, %v3582
      %v3584 = vpop.f32.mrf.mxu0
      %v3585 = vadd.f32 0.0, %v3584
      %3586 = vmatmul.bf16.gmra.mxu0 %v3467
      %v3587 = vpop.f32.mrf.mxu0
      %v3588 = vadd.f32 0.0, %v3587
      %v3589 = vpop.f32.mrf.mxu0
      %v3590 = vadd.f32 0.0, %v3589
      %3591 = vmatmul.bf16.gmra.mxu0 %v3469
      %v3592 = vpop.f32.mrf.mxu0
      %v3593 = vadd.f32 0.0, %v3592
      %v3594 = vpop.f32.mrf.mxu0
      %v3595 = vadd.f32 0.0, %v3594
      %3596 = vmatmul.bf16.gmra.mxu0 %v3471
      %v3597 = vpop.f32.mrf.mxu0
      %v3598 = vadd.f32 0.0, %v3597
      %v3599 = vpop.f32.mrf.mxu0
      %v3600 = vadd.f32 0.0, %v3599
      %3601 = vmatmul.bf16.gmra.mxu0 %v3473
      %v3602 = vpop.f32.mrf.mxu0
      %v3603 = vadd.f32 0.0, %v3602
      %v3604 = vpop.f32.mrf.mxu0
      %v3605 = vadd.f32 0.0, %v3604
      %3606 = vdwg.mxu0
      %3607 = vst.msk [vmem:[#allocation2] sm:$0xff] %vm804, %v3488
      %3608 = vst.msk [vmem:[#allocation2 + $0x8] sm:$0xff] %vm804, %v3490
      %3609 = vst.msk [vmem:[#allocation2 + $0x10] sm:$0xff] %vm804, %v3493
      %3610 = vst.msk [vmem:[#allocation2 + $0x18] sm:$0xff] %vm804, %v3495
      %3611 = vst.msk [vmem:[#allocation2 + $0x20] sm:$0xff] %vm804, %v3498
      %3612 = vst.msk [vmem:[#allocation2 + $0x28] sm:$0xff] %vm804, %v3500
      %3613 = vst.msk [vmem:[#allocation2 + $0x30] sm:$0xff] %vm804, %v3503
      %3614 = vst.msk [vmem:[#allocation2 + $0x38] sm:$0xff] %vm804, %v3505
      %3615 = vst.msk [vmem:[#allocation2 + $0x40] sm:$0xff] %vm804, %v3508
      %3616 = vst.msk [vmem:[#allocation2 + $0x48] sm:$0xff] %vm804, %v3510
      %3617 = vst.msk [vmem:[#allocation2 + $0x50] sm:$0xff] %vm804, %v3513
      %3618 = vst.msk [vmem:[#allocation2 + $0x58] sm:$0xff] %vm804, %v3515
      %3619 = vst.msk [vmem:[#allocation2 + $0x60] sm:$0xff] %vm804, %v3518
      %3620 = vst.msk [vmem:[#allocation2 + $0x68] sm:$0xff] %vm804, %v3520
      %3621 = vst.msk [vmem:[#allocation2 + $0x70] sm:$0xff] %vm804, %v3523
      %3622 = vst.msk [vmem:[#allocation2 + $0x78] sm:$0xff] %vm804, %v3525
      %3623 = vst.msk [vmem:[#allocation2 + $0x80] sm:$0xff] %vm804, %v3528
      %3624 = vst.msk [vmem:[#allocation2 + $0x88] sm:$0xff] %vm804, %v3530
      %3625 = vst.msk [vmem:[#allocation2 + $0x90] sm:$0xff] %vm804, %v3533
      %3626 = vst.msk [vmem:[#allocation2 + $0x98] sm:$0xff] %vm804, %v3535
      %3627 = vst.msk [vmem:[#allocation2 + $0xa0] sm:$0xff] %vm804, %v3538
      %3628 = vst.msk [vmem:[#allocation2 + $0xa8] sm:$0xff] %vm804, %v3540
      %3629 = vst.msk [vmem:[#allocation2 + $0xb0] sm:$0xff] %vm804, %v3543
      %3630 = vst.msk [vmem:[#allocation2 + $0xb8] sm:$0xff] %vm804, %v3545
      %3631 = vst.msk [vmem:[#allocation2 + $0xc0] sm:$0xff] %vm804, %v3548
      %3632 = vst.msk [vmem:[#allocation2 + $0xc8] sm:$0xff] %vm804, %v3550
      %3633 = vst.msk [vmem:[#allocation2 + $0xd0] sm:$0xff] %vm804, %v3553
      %3634 = vst.msk [vmem:[#allocation2 + $0xd8] sm:$0xff] %vm804, %v3555
      %3635 = vst.msk [vmem:[#allocation2 + $0xe0] sm:$0xff] %vm804, %v3558
      %3636 = vst.msk [vmem:[#allocation2 + $0xe8] sm:$0xff] %vm804, %v3560
      %3637 = vst.msk [vmem:[#allocation2 + $0xf0] sm:$0xff] %vm804, %v3563
      %3638 = vst.msk [vmem:[#allocation2 + $0xf8] sm:$0xff] %vm804, %v3565
      %3639 = vst.msk [vmem:[#allocation2 + $0x100] sm:$0xff] %vm804, %v3568
      %3640 = vst.msk [vmem:[#allocation2 + $0x108] sm:$0xff] %vm804, %v3570
      %3641 = vst.msk [vmem:[#allocation2 + $0x110] sm:$0xff] %vm804, %v3573
      %3642 = vst.msk [vmem:[#allocation2 + $0x118] sm:$0xff] %vm804, %v3575
      %3643 = vst.msk [vmem:[#allocation2 + $0x120] sm:$0xff] %vm804, %v3578
      %3644 = vst.msk [vmem:[#allocation2 + $0x128] sm:$0xff] %vm804, %v3580
      %3645 = vst.msk [vmem:[#allocation2 + $0x130] sm:$0xff] %vm804, %v3583
      %3646 = vst.msk [vmem:[#allocation2 + $0x138] sm:$0xff] %vm804, %v3585
      %3647 = vst.msk [vmem:[#allocation2 + $0x140] sm:$0xff] %vm804, %v3588
      %3648 = vst.msk [vmem:[#allocation2 + $0x148] sm:$0xff] %vm804, %v3590
      %3649 = vst.msk [vmem:[#allocation2 + $0x150] sm:$0xff] %vm804, %v3593
      %3650 = vst.msk [vmem:[#allocation2 + $0x158] sm:$0xff] %vm804, %v3595
      %3651 = vst.msk [vmem:[#allocation2 + $0x160] sm:$0xff] %vm804, %v3598
      %3652 = vst.msk [vmem:[#allocation2 + $0x168] sm:$0xff] %vm804, %v3600
      %3653 = vst.msk [vmem:[#allocation2 + $0x170] sm:$0xff] %vm804, %v3603
      %3654 = vst.msk [vmem:[#allocation2 + $0x178] sm:$0xff] %vm804, %v3605
      %v3655 = vld [vmem:[#allocation2] sm:$0xff]
      %v3656 = vld [vmem:[#allocation2 + $0x8] sm:$0xff]
      %v3657 = vld [vmem:[#allocation2 + $0x10] sm:$0xff]
      %v3658 = vld [vmem:[#allocation2 + $0x18] sm:$0xff]
      %v3659 = vld [vmem:[#allocation2 + $0x20] sm:$0xff]
      %v3660 = vld [vmem:[#allocation2 + $0x28] sm:$0xff]
      %v3661 = vld [vmem:[#allocation2 + $0x30] sm:$0xff]
      %v3662 = vld [vmem:[#allocation2 + $0x38] sm:$0xff]
      %v3663 = vld [vmem:[#allocation2 + $0x40] sm:$0xff]
      %v3664 = vld [vmem:[#allocation2 + $0x48] sm:$0xff]
      %v3665 = vld [vmem:[#allocation2 + $0x50] sm:$0xff]
      %v3666 = vld [vmem:[#allocation2 + $0x58] sm:$0xff]
      %v3667 = vld [vmem:[#allocation2 + $0x60] sm:$0xff]
      %v3668 = vld [vmem:[#allocation2 + $0x68] sm:$0xff]
      %v3669 = vld [vmem:[#allocation2 + $0x70] sm:$0xff]
      %v3670 = vld [vmem:[#allocation2 + $0x78] sm:$0xff]
      %v3671 = vld [vmem:[#allocation2 + $0x80] sm:$0xff]
      %v3672 = vld [vmem:[#allocation2 + $0x88] sm:$0xff]
      %v3673 = vld [vmem:[#allocation2 + $0x90] sm:$0xff]
      %v3674 = vld [vmem:[#allocation2 + $0x98] sm:$0xff]
      %v3675 = vld [vmem:[#allocation2 + $0xa0] sm:$0xff]
      %v3676 = vld [vmem:[#allocation2 + $0xa8] sm:$0xff]
      %v3677 = vld [vmem:[#allocation2 + $0xb0] sm:$0xff]
      %v3678 = vld [vmem:[#allocation2 + $0xb8] sm:$0xff]
      %v3679 = vld [vmem:[#allocation2 + $0xc0] sm:$0xff]
      %v3680 = vld [vmem:[#allocation2 + $0xc8] sm:$0xff]
      %v3681 = vld [vmem:[#allocation2 + $0xd0] sm:$0xff]
      %v3682 = vld [vmem:[#allocation2 + $0xd8] sm:$0xff]
      %v3683 = vld [vmem:[#allocation2 + $0xe0] sm:$0xff]
      %v3684 = vld [vmem:[#allocation2 + $0xe8] sm:$0xff]
      %v3685 = vld [vmem:[#allocation2 + $0xf0] sm:$0xff]
      %v3686 = vld [vmem:[#allocation2 + $0xf8] sm:$0xff]
      %v3687 = vld [vmem:[#allocation2 + $0x100] sm:$0xff]
      %v3688 = vld [vmem:[#allocation2 + $0x108] sm:$0xff]
      %v3689 = vld [vmem:[#allocation2 + $0x110] sm:$0xff]
      %v3690 = vld [vmem:[#allocation2 + $0x118] sm:$0xff]
      %v3691 = vld [vmem:[#allocation2 + $0x120] sm:$0xff]
      %v3692 = vld [vmem:[#allocation2 + $0x128] sm:$0xff]
      %v3693 = vld [vmem:[#allocation2 + $0x130] sm:$0xff]
      %v3694 = vld [vmem:[#allocation2 + $0x138] sm:$0xff]
      %v3695 = vld [vmem:[#allocation2 + $0x140] sm:$0xff]
      %v3696 = vld [vmem:[#allocation2 + $0x148] sm:$0xff]
      %v3697 = vld [vmem:[#allocation2 + $0x150] sm:$0xff]
      %v3698 = vld [vmem:[#allocation2 + $0x158] sm:$0xff]
      %v3699 = vld [vmem:[#allocation2 + $0x160] sm:$0xff]
      %v3700 = vld [vmem:[#allocation2 + $0x168] sm:$0xff]
      %v3701 = vld [vmem:[#allocation2 + $0x170] sm:$0xff]
      %v3702 = vld [vmem:[#allocation2 + $0x178] sm:$0xff]
      %s3703 = scalar_lea.vmem %s3, 8
      %v3704 = vld [vmem:[%s3703] sm:$0xf]
      %v3705 = vld [vmem:[%s3703 + $0x4] sm:$0x3]
      %v3731 = vrot.slane %v3369, 4
      %v3732 = vrot.slane %v3371, 4
      %v3733 = vsel %vm1227, %v3731, %v3732
      %v3734 = vrot.slane %v3373, 4
      %v3735 = vsel %vm1227, %v3732, %v3734
      %v3736 = vrot.slane %v3375, 4
      %v3737 = vsel %vm1227, %v3734, %v3736
      %v3738 = vrot.slane %v3377, 4
      %v3739 = vsel %vm1227, %v3736, %v3738
      %v3740 = vrot.slane %v3379, 4
      %v3741 = vsel %vm1227, %v3738, %v3740
      %v3742 = vrot.slane %v3381, 4
      %v3743 = vsel %vm1227, %v3740, %v3742
      %v3744 = vrot.slane %v3383, 4
      %v3745 = vsel %vm1227, %v3742, %v3744
      %v3746 = vrot.slane %v3385, 4
      %v3747 = vsel %vm1227, %v3744, %v3746
      %v3748 = vrot.slane %v3387, 4
      %v3749 = vsel %vm1227, %v3746, %v3748
      %v3750 = vrot.slane %v3389, 4
      %v3751 = vsel %vm1227, %v3748, %v3750
      %v3752 = vrot.slane %v3391, 4
      %v3753 = vsel %vm1227, %v3750, %v3752
      %v3754 = vrot.slane %v3393, 4
      %v3755 = vsel %vm1227, %v3752, %v3754
      %v3756 = vrot.slane %v3395, 4
      %v3757 = vsel %vm1227, %v3754, %v3756
      %v3758 = vrot.slane %v3397, 4
      %v3759 = vsel %vm1227, %v3756, %v3758
      %v3760 = vrot.slane %v3399, 4
      %v3761 = vsel %vm1227, %v3758, %v3760
      %v3762 = vrot.slane %v3401, 4
      %v3763 = vsel %vm1227, %v3760, %v3762
      %v3764 = vrot.slane %v3403, 4
      %v3765 = vsel %vm1227, %v3762, %v3764
      %v3766 = vrot.slane %v3405, 4
      %v3767 = vsel %vm1227, %v3764, %v3766
      %v3768 = vrot.slane %v3407, 4
      %v3769 = vsel %vm1227, %v3766, %v3768
      %v3770 = vrot.slane %v3409, 4
      %v3771 = vsel %vm1227, %v3768, %v3770
      %v3772 = vrot.slane %v3411, 4
      %v3773 = vsel %vm1227, %v3770, %v3772
      %v3774 = vrot.slane %v3413, 4
      %v3775 = vsel %vm1227, %v3772, %v3774
      %v3776 = vrot.slane %v3415, 4
      %v3777 = vsel %vm1227, %v3774, %v3776
      %v3778 = vrot.slane %v3417, 4
      %v3779 = vsel %vm1227, %v3776, %v3778
      %v3782 = vunpack.c.l.b16 %v3704
      %v3783 = vunpack.c.l.b16 %v3705
      %v3784 = vpack.c.b16 %v3783, %v3782
      %v3786 = vsel %vm921, %v3733, 0
      %v3789 = vsel %vm921, %v3735, 0
      %v3792 = vsel %vm921, %v3737, 0
      %v3795 = vsel %vm921, %v3739, 0
      %v3798 = vsel %vm921, %v3741, 0
      %v3801 = vsel %vm921, %v3743, 0
      %v3804 = vsel %vm921, %v3745, 0
      %v3807 = vsel %vm921, %v3747, 0
      %v3810 = vsel %vm921, %v3749, 0
      %v3813 = vsel %vm921, %v3751, 0
      %v3816 = vsel %vm921, %v3753, 0
      %v3819 = vsel %vm921, %v3755, 0
      %v3822 = vsel %vm921, %v3757, 0
      %v3825 = vsel %vm921, %v3759, 0
      %v3828 = vsel %vm921, %v3761, 0
      %v3831 = vsel %vm921, %v3763, 0
      %v3834 = vsel %vm921, %v3765, 0
      %v3837 = vsel %vm921, %v3767, 0
      %v3840 = vsel %vm921, %v3769, 0
      %v3843 = vsel %vm921, %v3771, 0
      %v3846 = vsel %vm921, %v3773, 0
      %v3849 = vsel %vm921, %v3775, 0
      %v3852 = vsel %vm921, %v3777, 0
      %v3855 = vsel %vm921, %v3779, 0
      %v3858 = vsel %vm970, %v3784, 0
      %3860 = vmatpush.bf16.msra.mxu0 0
      %3861 = vmatpush.bf16.msra.mxu0 0
      %3862 = vmatpush.bf16.msra.mxu0 0
      %3863 = vmatpush.bf16.msra.mxu0 0
      %3864 = vmatpush.bf16.msra.mxu0 0
      %3865 = vmatpush.bf16.msra.mxu0 0
      %3866 = vmatpush.bf16.msra.mxu0 0
      %3867 = vmatpush.bf16.msra.mxu0 %v3858
      %3868 = vmatmul.bf16.gmra.mxu0 %v3786
      %v3869 = vpop.f32.mrf.mxu0
      %v3870 = vadd.f32 0.0, %v3869
      %v3871 = vpop.f32.mrf.mxu0
      %v3872 = vadd.f32 0.0, %v3871
      %3873 = vmatmul.bf16.gmra.mxu0 %v3789
      %v3874 = vpop.f32.mrf.mxu0
      %v3875 = vadd.f32 0.0, %v3874
      %v3876 = vpop.f32.mrf.mxu0
      %v3877 = vadd.f32 0.0, %v3876
      %3878 = vmatmul.bf16.gmra.mxu0 %v3792
      %v3879 = vpop.f32.mrf.mxu0
      %v3880 = vadd.f32 0.0, %v3879
      %v3881 = vpop.f32.mrf.mxu0
      %v3882 = vadd.f32 0.0, %v3881
      %3883 = vmatmul.bf16.gmra.mxu0 %v3795
      %v3884 = vpop.f32.mrf.mxu0
      %v3885 = vadd.f32 0.0, %v3884
      %v3886 = vpop.f32.mrf.mxu0
      %v3887 = vadd.f32 0.0, %v3886
      %3888 = vmatmul.bf16.gmra.mxu0 %v3798
      %v3889 = vpop.f32.mrf.mxu0
      %v3890 = vadd.f32 0.0, %v3889
      %v3891 = vpop.f32.mrf.mxu0
      %v3892 = vadd.f32 0.0, %v3891
      %3893 = vmatmul.bf16.gmra.mxu0 %v3801
      %v3894 = vpop.f32.mrf.mxu0
      %v3895 = vadd.f32 0.0, %v3894
      %v3896 = vpop.f32.mrf.mxu0
      %v3897 = vadd.f32 0.0, %v3896
      %3898 = vmatmul.bf16.gmra.mxu0 %v3804
      %v3899 = vpop.f32.mrf.mxu0
      %v3900 = vadd.f32 0.0, %v3899
      %v3901 = vpop.f32.mrf.mxu0
      %v3902 = vadd.f32 0.0, %v3901
      %3903 = vmatmul.bf16.gmra.mxu0 %v3807
      %v3904 = vpop.f32.mrf.mxu0
      %v3905 = vadd.f32 0.0, %v3904
      %v3906 = vpop.f32.mrf.mxu0
      %v3907 = vadd.f32 0.0, %v3906
      %3908 = vmatmul.bf16.gmra.mxu0 %v3810
      %v3909 = vpop.f32.mrf.mxu0
      %v3910 = vadd.f32 0.0, %v3909
      %v3911 = vpop.f32.mrf.mxu0
      %v3912 = vadd.f32 0.0, %v3911
      %3913 = vmatmul.bf16.gmra.mxu0 %v3813
      %v3914 = vpop.f32.mrf.mxu0
      %v3915 = vadd.f32 0.0, %v3914
      %v3916 = vpop.f32.mrf.mxu0
      %v3917 = vadd.f32 0.0, %v3916
      %3918 = vmatmul.bf16.gmra.mxu0 %v3816
      %v3919 = vpop.f32.mrf.mxu0
      %v3920 = vadd.f32 0.0, %v3919
      %v3921 = vpop.f32.mrf.mxu0
      %v3922 = vadd.f32 0.0, %v3921
      %3923 = vmatmul.bf16.gmra.mxu0 %v3819
      %v3924 = vpop.f32.mrf.mxu0
      %v3925 = vadd.f32 0.0, %v3924
      %v3926 = vpop.f32.mrf.mxu0
      %v3927 = vadd.f32 0.0, %v3926
      %3928 = vmatmul.bf16.gmra.mxu0 %v3822
      %v3929 = vpop.f32.mrf.mxu0
      %v3930 = vadd.f32 0.0, %v3929
      %v3931 = vpop.f32.mrf.mxu0
      %v3932 = vadd.f32 0.0, %v3931
      %3933 = vmatmul.bf16.gmra.mxu0 %v3825
      %v3934 = vpop.f32.mrf.mxu0
      %v3935 = vadd.f32 0.0, %v3934
      %v3936 = vpop.f32.mrf.mxu0
      %v3937 = vadd.f32 0.0, %v3936
      %3938 = vmatmul.bf16.gmra.mxu0 %v3828
      %v3939 = vpop.f32.mrf.mxu0
      %v3940 = vadd.f32 0.0, %v3939
      %v3941 = vpop.f32.mrf.mxu0
      %v3942 = vadd.f32 0.0, %v3941
      %3943 = vmatmul.bf16.gmra.mxu0 %v3831
      %v3944 = vpop.f32.mrf.mxu0
      %v3945 = vadd.f32 0.0, %v3944
      %v3946 = vpop.f32.mrf.mxu0
      %v3947 = vadd.f32 0.0, %v3946
      %3948 = vmatmul.bf16.gmra.mxu0 %v3834
      %v3949 = vpop.f32.mrf.mxu0
      %v3950 = vadd.f32 0.0, %v3949
      %v3951 = vpop.f32.mrf.mxu0
      %v3952 = vadd.f32 0.0, %v3951
      %3953 = vmatmul.bf16.gmra.mxu0 %v3837
      %v3954 = vpop.f32.mrf.mxu0
      %v3955 = vadd.f32 0.0, %v3954
      %v3956 = vpop.f32.mrf.mxu0
      %v3957 = vadd.f32 0.0, %v3956
      %3958 = vmatmul.bf16.gmra.mxu0 %v3840
      %v3959 = vpop.f32.mrf.mxu0
      %v3960 = vadd.f32 0.0, %v3959
      %v3961 = vpop.f32.mrf.mxu0
      %v3962 = vadd.f32 0.0, %v3961
      %3963 = vmatmul.bf16.gmra.mxu0 %v3843
      %v3964 = vpop.f32.mrf.mxu0
      %v3965 = vadd.f32 0.0, %v3964
      %v3966 = vpop.f32.mrf.mxu0
      %v3967 = vadd.f32 0.0, %v3966
      %3968 = vmatmul.bf16.gmra.mxu0 %v3846
      %v3969 = vpop.f32.mrf.mxu0
      %v3970 = vadd.f32 0.0, %v3969
      %v3971 = vpop.f32.mrf.mxu0
      %v3972 = vadd.f32 0.0, %v3971
      %3973 = vmatmul.bf16.gmra.mxu0 %v3849
      %v3974 = vpop.f32.mrf.mxu0
      %v3975 = vadd.f32 0.0, %v3974
      %v3976 = vpop.f32.mrf.mxu0
      %v3977 = vadd.f32 0.0, %v3976
      %3978 = vmatmul.bf16.gmra.mxu0 %v3852
      %v3979 = vpop.f32.mrf.mxu0
      %v3980 = vadd.f32 0.0, %v3979
      %v3981 = vpop.f32.mrf.mxu0
      %v3982 = vadd.f32 0.0, %v3981
      %3983 = vmatmul.bf16.gmra.mxu0 %v3855
      %v3984 = vpop.f32.mrf.mxu0
      %v3985 = vadd.f32 0.0, %v3984
      %v3986 = vpop.f32.mrf.mxu0
      %v3987 = vadd.f32 0.0, %v3986
      %3988 = vdwg.mxu0
      %v3989 = vadd.f32 %v3655, %v3870
      %v3990 = vadd.f32 %v3656, %v3872
      %v3991 = vadd.f32 %v3657, %v3875
      %v3992 = vadd.f32 %v3658, %v3877
      %v3993 = vadd.f32 %v3659, %v3880
      %v3994 = vadd.f32 %v3660, %v3882
      %v3995 = vadd.f32 %v3661, %v3885
      %v3996 = vadd.f32 %v3662, %v3887
      %v3997 = vadd.f32 %v3663, %v3890
      %v3998 = vadd.f32 %v3664, %v3892
      %v3999 = vadd.f32 %v3665, %v3895
      %v4000 = vadd.f32 %v3666, %v3897
      %v4001 = vadd.f32 %v3667, %v3900
      %v4002 = vadd.f32 %v3668, %v3902
      %v4003 = vadd.f32 %v3669, %v3905
      %v4004 = vadd.f32 %v3670, %v3907
      %v4005 = vadd.f32 %v3671, %v3910
      %v4006 = vadd.f32 %v3672, %v3912
      %v4007 = vadd.f32 %v3673, %v3915
      %v4008 = vadd.f32 %v3674, %v3917
      %v4009 = vadd.f32 %v3675, %v3920
      %v4010 = vadd.f32 %v3676, %v3922
      %v4011 = vadd.f32 %v3677, %v3925
      %v4012 = vadd.f32 %v3678, %v3927
      %v4013 = vadd.f32 %v3679, %v3930
      %v4014 = vadd.f32 %v3680, %v3932
      %v4015 = vadd.f32 %v3681, %v3935
      %v4016 = vadd.f32 %v3682, %v3937
      %v4017 = vadd.f32 %v3683, %v3940
      %v4018 = vadd.f32 %v3684, %v3942
      %v4019 = vadd.f32 %v3685, %v3945
      %v4020 = vadd.f32 %v3686, %v3947
      %v4021 = vadd.f32 %v3687, %v3950
      %v4022 = vadd.f32 %v3688, %v3952
      %v4023 = vadd.f32 %v3689, %v3955
      %v4024 = vadd.f32 %v3690, %v3957
      %v4025 = vadd.f32 %v3691, %v3960
      %v4026 = vadd.f32 %v3692, %v3962
      %v4027 = vadd.f32 %v3693, %v3965
      %v4028 = vadd.f32 %v3694, %v3967
      %v4029 = vadd.f32 %v3695, %v3970
      %v4030 = vadd.f32 %v3696, %v3972
      %v4031 = vadd.f32 %v3697, %v3975
      %v4032 = vadd.f32 %v3698, %v3977
      %v4033 = vadd.f32 %v3699, %v3980
      %v4034 = vadd.f32 %v3700, %v3982
      %v4035 = vadd.f32 %v3701, %v3985
      %v4036 = vadd.f32 %v3702, %v3987
      %4037 = vst.msk [vmem:[#allocation2] sm:$0xff] %vm804, %v3989
      %4038 = vst.msk [vmem:[#allocation2 + $0x8] sm:$0xff] %vm804, %v3990
      %4039 = vst.msk [vmem:[#allocation2 + $0x10] sm:$0xff] %vm804, %v3991
      %4040 = vst.msk [vmem:[#allocation2 + $0x18] sm:$0xff] %vm804, %v3992
      %4041 = vst.msk [vmem:[#allocation2 + $0x20] sm:$0xff] %vm804, %v3993
      %4042 = vst.msk [vmem:[#allocation2 + $0x28] sm:$0xff] %vm804, %v3994
      %4043 = vst.msk [vmem:[#allocation2 + $0x30] sm:$0xff] %vm804, %v3995
      %4044 = vst.msk [vmem:[#allocation2 + $0x38] sm:$0xff] %vm804, %v3996
      %4045 = vst.msk [vmem:[#allocation2 + $0x40] sm:$0xff] %vm804, %v3997
      %4046 = vst.msk [vmem:[#allocation2 + $0x48] sm:$0xff] %vm804, %v3998
      %4047 = vst.msk [vmem:[#allocation2 + $0x50] sm:$0xff] %vm804, %v3999
      %4048 = vst.msk [vmem:[#allocation2 + $0x58] sm:$0xff] %vm804, %v4000
      %4049 = vst.msk [vmem:[#allocation2 + $0x60] sm:$0xff] %vm804, %v4001
      %4050 = vst.msk [vmem:[#allocation2 + $0x68] sm:$0xff] %vm804, %v4002
      %4051 = vst.msk [vmem:[#allocation2 + $0x70] sm:$0xff] %vm804, %v4003
      %4052 = vst.msk [vmem:[#allocation2 + $0x78] sm:$0xff] %vm804, %v4004
      %4053 = vst.msk [vmem:[#allocation2 + $0x80] sm:$0xff] %vm804, %v4005
      %4054 = vst.msk [vmem:[#allocation2 + $0x88] sm:$0xff] %vm804, %v4006
      %4055 = vst.msk [vmem:[#allocation2 + $0x90] sm:$0xff] %vm804, %v4007
      %4056 = vst.msk [vmem:[#allocation2 + $0x98] sm:$0xff] %vm804, %v4008
      %4057 = vst.msk [vmem:[#allocation2 + $0xa0] sm:$0xff] %vm804, %v4009
      %4058 = vst.msk [vmem:[#allocation2 + $0xa8] sm:$0xff] %vm804, %v4010
      %4059 = vst.msk [vmem:[#allocation2 + $0xb0] sm:$0xff] %vm804, %v4011
      %4060 = vst.msk [vmem:[#allocation2 + $0xb8] sm:$0xff] %vm804, %v4012
      %4061 = vst.msk [vmem:[#allocation2 + $0xc0] sm:$0xff] %vm804, %v4013
      %4062 = vst.msk [vmem:[#allocation2 + $0xc8] sm:$0xff] %vm804, %v4014
      %4063 = vst.msk [vmem:[#allocation2 + $0xd0] sm:$0xff] %vm804, %v4015
      %4064 = vst.msk [vmem:[#allocation2 + $0xd8] sm:$0xff] %vm804, %v4016
      %4065 = vst.msk [vmem:[#allocation2 + $0xe0] sm:$0xff] %vm804, %v4017
      %4066 = vst.msk [vmem:[#allocation2 + $0xe8] sm:$0xff] %vm804, %v4018
      %4067 = vst.msk [vmem:[#allocation2 + $0xf0] sm:$0xff] %vm804, %v4019
      %4068 = vst.msk [vmem:[#allocation2 + $0xf8] sm:$0xff] %vm804, %v4020
      %4069 = vst.msk [vmem:[#allocation2 + $0x100] sm:$0xff] %vm804, %v4021
      %4070 = vst.msk [vmem:[#allocation2 + $0x108] sm:$0xff] %vm804, %v4022
      %4071 = vst.msk [vmem:[#allocation2 + $0x110] sm:$0xff] %vm804, %v4023
      %4072 = vst.msk [vmem:[#allocation2 + $0x118] sm:$0xff] %vm804, %v4024
      %4073 = vst.msk [vmem:[#allocation2 + $0x120] sm:$0xff] %vm804, %v4025
      %4074 = vst.msk [vmem:[#allocation2 + $0x128] sm:$0xff] %vm804, %v4026
      %4075 = vst.msk [vmem:[#allocation2 + $0x130] sm:$0xff] %vm804, %v4027
      %4076 = vst.msk [vmem:[#allocation2 + $0x138] sm:$0xff] %vm804, %v4028
      %4077 = vst.msk [vmem:[#allocation2 + $0x140] sm:$0xff] %vm804, %v4029
      %4078 = vst.msk [vmem:[#allocation2 + $0x148] sm:$0xff] %vm804, %v4030
      %4079 = vst.msk [vmem:[#allocation2 + $0x150] sm:$0xff] %vm804, %v4031
      %4080 = vst.msk [vmem:[#allocation2 + $0x158] sm:$0xff] %vm804, %v4032
      %4081 = vst.msk [vmem:[#allocation2 + $0x160] sm:$0xff] %vm804, %v4033
      %4082 = vst.msk [vmem:[#allocation2 + $0x168] sm:$0xff] %vm804, %v4034
      %4083 = vst.msk [vmem:[#allocation2 + $0x170] sm:$0xff] %vm804, %v4035
      %4084 = vst.msk [vmem:[#allocation2 + $0x178] sm:$0xff] %vm804, %v4036
      %v4085 = vld [vmem:[#allocation2] sm:$0xff]
      %v4086 = vld [vmem:[#allocation2 + $0x8] sm:$0xff]
      %v4087 = vld [vmem:[#allocation2 + $0x10] sm:$0xff]
      %v4088 = vld [vmem:[#allocation2 + $0x18] sm:$0xff]
      %v4089 = vld [vmem:[#allocation2 + $0x20] sm:$0xff]
      %v4090 = vld [vmem:[#allocation2 + $0x28] sm:$0xff]
      %v4091 = vld [vmem:[#allocation2 + $0x30] sm:$0xff]
      %v4092 = vld [vmem:[#allocation2 + $0x38] sm:$0xff]
      %v4093 = vld [vmem:[#allocation2 + $0x40] sm:$0xff]
      %v4094 = vld [vmem:[#allocation2 + $0x48] sm:$0xff]
      %v4095 = vld [vmem:[#allocation2 + $0x50] sm:$0xff]
      %v4096 = vld [vmem:[#allocation2 + $0x58] sm:$0xff]
      %v4097 = vld [vmem:[#allocation2 + $0x60] sm:$0xff]
      %v4098 = vld [vmem:[#allocation2 + $0x68] sm:$0xff]
      %v4099 = vld [vmem:[#allocation2 + $0x70] sm:$0xff]
      %v4100 = vld [vmem:[#allocation2 + $0x78] sm:$0xff]
      %v4101 = vld [vmem:[#allocation2 + $0x80] sm:$0xff]
      %v4102 = vld [vmem:[#allocation2 + $0x88] sm:$0xff]
      %v4103 = vld [vmem:[#allocation2 + $0x90] sm:$0xff]
      %v4104 = vld [vmem:[#allocation2 + $0x98] sm:$0xff]
      %v4105 = vld [vmem:[#allocation2 + $0xa0] sm:$0xff]
      %v4106 = vld [vmem:[#allocation2 + $0xa8] sm:$0xff]
      %v4107 = vld [vmem:[#allocation2 + $0xb0] sm:$0xff]
      %v4108 = vld [vmem:[#allocation2 + $0xb8] sm:$0xff]
      %v4109 = vld [vmem:[#allocation2 + $0xc0] sm:$0xff]
      %v4110 = vld [vmem:[#allocation2 + $0xc8] sm:$0xff]
      %v4111 = vld [vmem:[#allocation2 + $0xd0] sm:$0xff]
      %v4112 = vld [vmem:[#allocation2 + $0xd8] sm:$0xff]
      %v4113 = vld [vmem:[#allocation2 + $0xe0] sm:$0xff]
      %v4114 = vld [vmem:[#allocation2 + $0xe8] sm:$0xff]
      %v4115 = vld [vmem:[#allocation2 + $0xf0] sm:$0xff]
      %v4116 = vld [vmem:[#allocation2 + $0xf8] sm:$0xff]
      %v4117 = vld [vmem:[#allocation2 + $0x100] sm:$0xff]
      %v4118 = vld [vmem:[#allocation2 + $0x108] sm:$0xff]
      %v4119 = vld [vmem:[#allocation2 + $0x110] sm:$0xff]
      %v4120 = vld [vmem:[#allocation2 + $0x118] sm:$0xff]
      %v4121 = vld [vmem:[#allocation2 + $0x120] sm:$0xff]
      %v4122 = vld [vmem:[#allocation2 + $0x128] sm:$0xff]
      %v4123 = vld [vmem:[#allocation2 + $0x130] sm:$0xff]
      %v4124 = vld [vmem:[#allocation2 + $0x138] sm:$0xff]
      %v4125 = vld [vmem:[#allocation2 + $0x140] sm:$0xff]
      %v4126 = vld [vmem:[#allocation2 + $0x148] sm:$0xff]
      %v4127 = vld [vmem:[#allocation2 + $0x150] sm:$0xff]
      %v4128 = vld [vmem:[#allocation2 + $0x158] sm:$0xff]
      %v4129 = vld [vmem:[#allocation2 + $0x160] sm:$0xff]
      %v4130 = vld [vmem:[#allocation2 + $0x168] sm:$0xff]
      %v4131 = vld [vmem:[#allocation2 + $0x170] sm:$0xff]
      %v4132 = vld [vmem:[#allocation2 + $0x178] sm:$0xff]
      %s4133 = scalar_lea.vmem %s3, 16
      %v4134 = vld [vmem:[%s4133] sm:$0xf]
      %v4135 = vld [vmem:[%s4133 + $0x4] sm:$0x3]
      %v4138 = vunpack.c.l.b16 %v4134
      %v4139 = vunpack.c.l.b16 %v4135
      %v4140 = vpack.c.b16 %v4139, %v4138
      %v4141 = vsel %vm921, %v3415, 0
      %v4143 = vsel %vm921, %v3417, 0
      %v4145 = vsel %vm921, %v3419, 0
      %v4148 = vsel %vm970, %v4140, 0
      %4150 = vmatpush.bf16.msra.mxu0 0
      %4151 = vmatpush.bf16.msra.mxu0 0
      %4152 = vmatpush.bf16.msra.mxu0 0
      %4153 = vmatpush.bf16.msra.mxu0 0
      %4154 = vmatpush.bf16.msra.mxu0 0
      %4155 = vmatpush.bf16.msra.mxu0 0
      %4156 = vmatpush.bf16.msra.mxu0 0
      %4157 = vmatpush.bf16.msra.mxu0 %v4148
      %4158 = vmatmul.bf16.gmra.mxu0 %v3433
      %v4159 = vpop.f32.mrf.mxu0
      %v4160 = vadd.f32 0.0, %v4159
      %v4161 = vpop.f32.mrf.mxu0
      %v4162 = vadd.f32 0.0, %v4161
      %4163 = vmatmul.bf16.gmra.mxu0 %v3435
      %v4164 = vpop.f32.mrf.mxu0
      %v4165 = vadd.f32 0.0, %v4164
      %v4166 = vpop.f32.mrf.mxu0
      %v4167 = vadd.f32 0.0, %v4166
      %4168 = vmatmul.bf16.gmra.mxu0 %v3437
      %v4169 = vpop.f32.mrf.mxu0
      %v4170 = vadd.f32 0.0, %v4169
      %v4171 = vpop.f32.mrf.mxu0
      %v4172 = vadd.f32 0.0, %v4171
      %4173 = vmatmul.bf16.gmra.mxu0 %v3439
      %v4174 = vpop.f32.mrf.mxu0
      %v4175 = vadd.f32 0.0, %v4174
      %v4176 = vpop.f32.mrf.mxu0
      %v4177 = vadd.f32 0.0, %v4176
      %4178 = vmatmul.bf16.gmra.mxu0 %v3441
      %v4179 = vpop.f32.mrf.mxu0
      %v4180 = vadd.f32 0.0, %v4179
      %v4181 = vpop.f32.mrf.mxu0
      %v4182 = vadd.f32 0.0, %v4181
      %4183 = vmatmul.bf16.gmra.mxu0 %v3443
      %v4184 = vpop.f32.mrf.mxu0
      %v4185 = vadd.f32 0.0, %v4184
      %v4186 = vpop.f32.mrf.mxu0
      %v4187 = vadd.f32 0.0, %v4186
      %4188 = vmatmul.bf16.gmra.mxu0 %v3445
      %v4189 = vpop.f32.mrf.mxu0
      %v4190 = vadd.f32 0.0, %v4189
      %v4191 = vpop.f32.mrf.mxu0
      %v4192 = vadd.f32 0.0, %v4191
      %4193 = vmatmul.bf16.gmra.mxu0 %v3447
      %v4194 = vpop.f32.mrf.mxu0
      %v4195 = vadd.f32 0.0, %v4194
      %v4196 = vpop.f32.mrf.mxu0
      %v4197 = vadd.f32 0.0, %v4196
      %4198 = vmatmul.bf16.gmra.mxu0 %v3449
      %v4199 = vpop.f32.mrf.mxu0
      %v4200 = vadd.f32 0.0, %v4199
      %v4201 = vpop.f32.mrf.mxu0
      %v4202 = vadd.f32 0.0, %v4201
      %4203 = vmatmul.bf16.gmra.mxu0 %v3451
      %v4204 = vpop.f32.mrf.mxu0
      %v4205 = vadd.f32 0.0, %v4204
      %v4206 = vpop.f32.mrf.mxu0
      %v4207 = vadd.f32 0.0, %v4206
      %4208 = vmatmul.bf16.gmra.mxu0 %v3453
      %v4209 = vpop.f32.mrf.mxu0
      %v4210 = vadd.f32 0.0, %v4209
      %v4211 = vpop.f32.mrf.mxu0
      %v4212 = vadd.f32 0.0, %v4211
      %4213 = vmatmul.bf16.gmra.mxu0 %v3455
      %v4214 = vpop.f32.mrf.mxu0
      %v4215 = vadd.f32 0.0, %v4214
      %v4216 = vpop.f32.mrf.mxu0
      %v4217 = vadd.f32 0.0, %v4216
      %4218 = vmatmul.bf16.gmra.mxu0 %v3457
      %v4219 = vpop.f32.mrf.mxu0
      %v4220 = vadd.f32 0.0, %v4219
      %v4221 = vpop.f32.mrf.mxu0
      %v4222 = vadd.f32 0.0, %v4221
      %4223 = vmatmul.bf16.gmra.mxu0 %v3459
      %v4224 = vpop.f32.mrf.mxu0
      %v4225 = vadd.f32 0.0, %v4224
      %v4226 = vpop.f32.mrf.mxu0
      %v4227 = vadd.f32 0.0, %v4226
      %4228 = vmatmul.bf16.gmra.mxu0 %v3461
      %v4229 = vpop.f32.mrf.mxu0
      %v4230 = vadd.f32 0.0, %v4229
      %v4231 = vpop.f32.mrf.mxu0
      %v4232 = vadd.f32 0.0, %v4231
      %4233 = vmatmul.bf16.gmra.mxu0 %v3463
      %v4234 = vpop.f32.mrf.mxu0
      %v4235 = vadd.f32 0.0, %v4234
      %v4236 = vpop.f32.mrf.mxu0
      %v4237 = vadd.f32 0.0, %v4236
      %4238 = vmatmul.bf16.gmra.mxu0 %v3465
      %v4239 = vpop.f32.mrf.mxu0
      %v4240 = vadd.f32 0.0, %v4239
      %v4241 = vpop.f32.mrf.mxu0
      %v4242 = vadd.f32 0.0, %v4241
      %4243 = vmatmul.bf16.gmra.mxu0 %v3467
      %v4244 = vpop.f32.mrf.mxu0
      %v4245 = vadd.f32 0.0, %v4244
      %v4246 = vpop.f32.mrf.mxu0
      %v4247 = vadd.f32 0.0, %v4246
      %4248 = vmatmul.bf16.gmra.mxu0 %v3469
      %v4249 = vpop.f32.mrf.mxu0
      %v4250 = vadd.f32 0.0, %v4249
      %v4251 = vpop.f32.mrf.mxu0
      %v4252 = vadd.f32 0.0, %v4251
      %4253 = vmatmul.bf16.gmra.mxu0 %v3471
      %v4254 = vpop.f32.mrf.mxu0
      %v4255 = vadd.f32 0.0, %v4254
      %v4256 = vpop.f32.mrf.mxu0
      %v4257 = vadd.f32 0.0, %v4256
      %4258 = vmatmul.bf16.gmra.mxu0 %v3473
      %v4259 = vpop.f32.mrf.mxu0
      %v4260 = vadd.f32 0.0, %v4259
      %v4261 = vpop.f32.mrf.mxu0
      %v4262 = vadd.f32 0.0, %v4261
      %4263 = vmatmul.bf16.gmra.mxu0 %v4141
      %v4264 = vpop.f32.mrf.mxu0
      %v4265 = vadd.f32 0.0, %v4264
      %v4266 = vpop.f32.mrf.mxu0
      %v4267 = vadd.f32 0.0, %v4266
      %4268 = vmatmul.bf16.gmra.mxu0 %v4143
      %v4269 = vpop.f32.mrf.mxu0
      %v4270 = vadd.f32 0.0, %v4269
      %v4271 = vpop.f32.mrf.mxu0
      %v4272 = vadd.f32 0.0, %v4271
      %4273 = vmatmul.bf16.gmra.mxu0 %v4145
      %v4274 = vpop.f32.mrf.mxu0
      %v4275 = vadd.f32 0.0, %v4274
      %v4276 = vpop.f32.mrf.mxu0
      %v4277 = vadd.f32 0.0, %v4276
      %4278 = vdwg.mxu0
      %v4279 = vadd.f32 %v4085, %v4160
      %v4280 = vadd.f32 %v4086, %v4162
      %v4281 = vadd.f32 %v4087, %v4165
      %v4282 = vadd.f32 %v4088, %v4167
      %v4283 = vadd.f32 %v4089, %v4170
      %v4284 = vadd.f32 %v4090, %v4172
      %v4285 = vadd.f32 %v4091, %v4175
      %v4286 = vadd.f32 %v4092, %v4177
      %v4287 = vadd.f32 %v4093, %v4180
      %v4288 = vadd.f32 %v4094, %v4182
      %v4289 = vadd.f32 %v4095, %v4185
      %v4290 = vadd.f32 %v4096, %v4187
      %v4291 = vadd.f32 %v4097, %v4190
      %v4292 = vadd.f32 %v4098, %v4192
      %v4293 = vadd.f32 %v4099, %v4195
      %v4294 = vadd.f32 %v4100, %v4197
      %v4295 = vadd.f32 %v4101, %v4200
      %v4296 = vadd.f32 %v4102, %v4202
      %v4297 = vadd.f32 %v4103, %v4205
      %v4298 = vadd.f32 %v4104, %v4207
      %v4299 = vadd.f32 %v4105, %v4210
      %v4300 = vadd.f32 %v4106, %v4212
      %v4301 = vadd.f32 %v4107, %v4215
      %v4302 = vadd.f32 %v4108, %v4217
      %v4303 = vadd.f32 %v4109, %v4220
      %v4304 = vadd.f32 %v4110, %v4222
      %v4305 = vadd.f32 %v4111, %v4225
      %v4306 = vadd.f32 %v4112, %v4227
      %v4307 = vadd.f32 %v4113, %v4230
      %v4308 = vadd.f32 %v4114, %v4232
      %v4309 = vadd.f32 %v4115, %v4235
      %v4310 = vadd.f32 %v4116, %v4237
      %v4311 = vadd.f32 %v4117, %v4240
      %v4312 = vadd.f32 %v4118, %v4242
      %v4313 = vadd.f32 %v4119, %v4245
      %v4314 = vadd.f32 %v4120, %v4247
      %v4315 = vadd.f32 %v4121, %v4250
      %v4316 = vadd.f32 %v4122, %v4252
      %v4317 = vadd.f32 %v4123, %v4255
      %v4318 = vadd.f32 %v4124, %v4257
      %v4319 = vadd.f32 %v4125, %v4260
      %v4320 = vadd.f32 %v4126, %v4262
      %v4321 = vadd.f32 %v4127, %v4265
      %v4322 = vadd.f32 %v4128, %v4267
      %v4323 = vadd.f32 %v4129, %v4270
      %v4324 = vadd.f32 %v4130, %v4272
      %v4325 = vadd.f32 %v4131, %v4275
      %v4326 = vadd.f32 %v4132, %v4277
      %4327 = vst.msk [vmem:[#allocation2] sm:$0xff] %vm804, %v4279
      %4328 = vst.msk [vmem:[#allocation2 + $0x8] sm:$0xff] %vm804, %v4280
      %4329 = vst.msk [vmem:[#allocation2 + $0x10] sm:$0xff] %vm804, %v4281
      %4330 = vst.msk [vmem:[#allocation2 + $0x18] sm:$0xff] %vm804, %v4282
      %4331 = vst.msk [vmem:[#allocation2 + $0x20] sm:$0xff] %vm804, %v4283
      %4332 = vst.msk [vmem:[#allocation2 + $0x28] sm:$0xff] %vm804, %v4284
      %4333 = vst.msk [vmem:[#allocation2 + $0x30] sm:$0xff] %vm804, %v4285
      %4334 = vst.msk [vmem:[#allocation2 + $0x38] sm:$0xff] %vm804, %v4286
      %4335 = vst.msk [vmem:[#allocation2 + $0x40] sm:$0xff] %vm804, %v4287
      %4336 = vst.msk [vmem:[#allocation2 + $0x48] sm:$0xff] %vm804, %v4288
      %4337 = vst.msk [vmem:[#allocation2 + $0x50] sm:$0xff] %vm804, %v4289
      %4338 = vst.msk [vmem:[#allocation2 + $0x58] sm:$0xff] %vm804, %v4290
      %4339 = vst.msk [vmem:[#allocation2 + $0x60] sm:$0xff] %vm804, %v4291
      %4340 = vst.msk [vmem:[#allocation2 + $0x68] sm:$0xff] %vm804, %v4292
      %4341 = vst.msk [vmem:[#allocation2 + $0x70] sm:$0xff] %vm804, %v4293
      %4342 = vst.msk [vmem:[#allocation2 + $0x78] sm:$0xff] %vm804, %v4294
      %4343 = vst.msk [vmem:[#allocation2 + $0x80] sm:$0xff] %vm804, %v4295
      %4344 = vst.msk [vmem:[#allocation2 + $0x88] sm:$0xff] %vm804, %v4296
      %4345 = vst.msk [vmem:[#allocation2 + $0x90] sm:$0xff] %vm804, %v4297
      %4346 = vst.msk [vmem:[#allocation2 + $0x98] sm:$0xff] %vm804, %v4298
      %4347 = vst.msk [vmem:[#allocation2 + $0xa0] sm:$0xff] %vm804, %v4299
      %4348 = vst.msk [vmem:[#allocation2 + $0xa8] sm:$0xff] %vm804, %v4300
      %4349 = vst.msk [vmem:[#allocation2 + $0xb0] sm:$0xff] %vm804, %v4301
      %4350 = vst.msk [vmem:[#allocation2 + $0xb8] sm:$0xff] %vm804, %v4302
      %4351 = vst.msk [vmem:[#allocation2 + $0xc0] sm:$0xff] %vm804, %v4303
      %4352 = vst.msk [vmem:[#allocation2 + $0xc8] sm:$0xff] %vm804, %v4304
      %4353 = vst.msk [vmem:[#allocation2 + $0xd0] sm:$0xff] %vm804, %v4305
      %4354 = vst.msk [vmem:[#allocation2 + $0xd8] sm:$0xff] %vm804, %v4306
      %4355 = vst.msk [vmem:[#allocation2 + $0xe0] sm:$0xff] %vm804, %v4307
      %4356 = vst.msk [vmem:[#allocation2 + $0xe8] sm:$0xff] %vm804, %v4308
      %4357 = vst.msk [vmem:[#allocation2 + $0xf0] sm:$0xff] %vm804, %v4309
      %4358 = vst.msk [vmem:[#allocation2 + $0xf8] sm:$0xff] %vm804, %v4310
      %4359 = vst.msk [vmem:[#allocation2 + $0x100] sm:$0xff] %vm804, %v4311
      %4360 = vst.msk [vmem:[#allocation2 + $0x108] sm:$0xff] %vm804, %v4312
      %4361 = vst.msk [vmem:[#allocation2 + $0x110] sm:$0xff] %vm804, %v4313
      %4362 = vst.msk [vmem:[#allocation2 + $0x118] sm:$0xff] %vm804, %v4314
      %4363 = vst.msk [vmem:[#allocation2 + $0x120] sm:$0xff] %vm804, %v4315
      %4364 = vst.msk [vmem:[#allocation2 + $0x128] sm:$0xff] %vm804, %v4316
      %4365 = vst.msk [vmem:[#allocation2 + $0x130] sm:$0xff] %vm804, %v4317
      %4366 = vst.msk [vmem:[#allocation2 + $0x138] sm:$0xff] %vm804, %v4318
      %4367 = vst.msk [vmem:[#allocation2 + $0x140] sm:$0xff] %vm804, %v4319
      %4368 = vst.msk [vmem:[#allocation2 + $0x148] sm:$0xff] %vm804, %v4320
      %4369 = vst.msk [vmem:[#allocation2 + $0x150] sm:$0xff] %vm804, %v4321
      %4370 = vst.msk [vmem:[#allocation2 + $0x158] sm:$0xff] %vm804, %v4322
      %4371 = vst.msk [vmem:[#allocation2 + $0x160] sm:$0xff] %vm804, %v4323
      %4372 = vst.msk [vmem:[#allocation2 + $0x168] sm:$0xff] %vm804, %v4324
      %4373 = vst.msk [vmem:[#allocation2 + $0x170] sm:$0xff] %vm804, %v4325
      %4374 = vst.msk [vmem:[#allocation2 + $0x178] sm:$0xff] %vm804, %v4326
      %v4375 = vld [vmem:[#allocation2] sm:$0xff]
      %v4376 = vld [vmem:[#allocation2 + $0x8] sm:$0xff]
      %v4377 = vld [vmem:[#allocation2 + $0x10] sm:$0xff]
      %v4378 = vld [vmem:[#allocation2 + $0x18] sm:$0xff]
      %v4379 = vld [vmem:[#allocation2 + $0x20] sm:$0xff]
      %v4380 = vld [vmem:[#allocation2 + $0x28] sm:$0xff]
      %v4381 = vld [vmem:[#allocation2 + $0x30] sm:$0xff]
      %v4382 = vld [vmem:[#allocation2 + $0x38] sm:$0xff]
      %v4383 = vld [vmem:[#allocation2 + $0x40] sm:$0xff]
      %v4384 = vld [vmem:[#allocation2 + $0x48] sm:$0xff]
      %v4385 = vld [vmem:[#allocation2 + $0x50] sm:$0xff]
      %v4386 = vld [vmem:[#allocation2 + $0x58] sm:$0xff]
      %v4387 = vld [vmem:[#allocation2 + $0x60] sm:$0xff]
      %v4388 = vld [vmem:[#allocation2 + $0x68] sm:$0xff]
      %v4389 = vld [vmem:[#allocation2 + $0x70] sm:$0xff]
      %v4390 = vld [vmem:[#allocation2 + $0x78] sm:$0xff]
      %v4391 = vld [vmem:[#allocation2 + $0x80] sm:$0xff]
      %v4392 = vld [vmem:[#allocation2 + $0x88] sm:$0xff]
      %v4393 = vld [vmem:[#allocation2 + $0x90] sm:$0xff]
      %v4394 = vld [vmem:[#allocation2 + $0x98] sm:$0xff]
      %v4395 = vld [vmem:[#allocation2 + $0xa0] sm:$0xff]
      %v4396 = vld [vmem:[#allocation2 + $0xa8] sm:$0xff]
      %v4397 = vld [vmem:[#allocation2 + $0xb0] sm:$0xff]
      %v4398 = vld [vmem:[#allocation2 + $0xb8] sm:$0xff]
      %v4399 = vld [vmem:[#allocation2 + $0xc0] sm:$0xff]
      %v4400 = vld [vmem:[#allocation2 + $0xc8] sm:$0xff]
      %v4401 = vld [vmem:[#allocation2 + $0xd0] sm:$0xff]
      %v4402 = vld [vmem:[#allocation2 + $0xd8] sm:$0xff]
      %v4403 = vld [vmem:[#allocation2 + $0xe0] sm:$0xff]
      %v4404 = vld [vmem:[#allocation2 + $0xe8] sm:$0xff]
      %v4405 = vld [vmem:[#allocation2 + $0xf0] sm:$0xff]
      %v4406 = vld [vmem:[#allocation2 + $0xf8] sm:$0xff]
      %v4407 = vld [vmem:[#allocation2 + $0x100] sm:$0xff]
      %v4408 = vld [vmem:[#allocation2 + $0x108] sm:$0xff]
      %v4409 = vld [vmem:[#allocation2 + $0x110] sm:$0xff]
      %v4410 = vld [vmem:[#allocation2 + $0x118] sm:$0xff]
      %v4411 = vld [vmem:[#allocation2 + $0x120] sm:$0xff]
      %v4412 = vld [vmem:[#allocation2 + $0x128] sm:$0xff]
      %v4413 = vld [vmem:[#allocation2 + $0x130] sm:$0xff]
      %v4414 = vld [vmem:[#allocation2 + $0x138] sm:$0xff]
      %v4415 = vld [vmem:[#allocation2 + $0x140] sm:$0xff]
      %v4416 = vld [vmem:[#allocation2 + $0x148] sm:$0xff]
      %v4417 = vld [vmem:[#allocation2 + $0x150] sm:$0xff]
      %v4418 = vld [vmem:[#allocation2 + $0x158] sm:$0xff]
      %v4419 = vld [vmem:[#allocation2 + $0x160] sm:$0xff]
      %v4420 = vld [vmem:[#allocation2 + $0x168] sm:$0xff]
      %v4421 = vld [vmem:[#allocation2 + $0x170] sm:$0xff]
      %v4422 = vld [vmem:[#allocation2 + $0x178] sm:$0xff]
      %v4423 = vsel %vm1923, %v4375, 0.0
      %v4424 = vsel %vm1924, %v4376, 0.0
      %v4425 = vsel %vm1925, %v4377, 0.0
      %v4426 = vsel %vm1923, %v4378, 0.0
      %v4427 = vsel %vm1924, %v4379, 0.0
      %v4428 = vsel %vm1925, %v4380, 0.0
      %v4429 = vsel %vm1923, %v4381, 0.0
      %v4430 = vsel %vm1924, %v4382, 0.0
      %v4431 = vsel %vm1925, %v4383, 0.0
      %v4432 = vsel %vm1923, %v4384, 0.0
      %v4433 = vsel %vm1924, %v4385, 0.0
      %v4434 = vsel %vm1925, %v4386, 0.0
      %v4435 = vsel %vm1923, %v4387, 0.0
      %v4436 = vsel %vm1924, %v4388, 0.0
      %v4437 = vsel %vm1925, %v4389, 0.0
      %v4438 = vsel %vm1923, %v4390, 0.0
      %v4439 = vsel %vm1924, %v4391, 0.0
      %v4440 = vsel %vm1925, %v4392, 0.0
      %v4441 = vsel %vm1923, %v4393, 0.0
      %v4442 = vsel %vm1924, %v4394, 0.0
      %v4443 = vsel %vm1925, %v4395, 0.0
      %v4444 = vsel %vm1923, %v4396, 0.0
      %v4445 = vsel %vm1924, %v4397, 0.0
      %v4446 = vsel %vm1925, %v4398, 0.0
      %v4447 = vsel %vm1923, %v4399, 0.0
      %v4448 = vsel %vm1924, %v4400, 0.0
      %v4449 = vsel %vm1925, %v4401, 0.0
      %v4450 = vsel %vm1923, %v4402, 0.0
      %v4451 = vsel %vm1924, %v4403, 0.0
      %v4452 = vsel %vm1925, %v4404, 0.0
      %v4453 = vsel %vm1923, %v4405, 0.0
      %v4454 = vsel %vm1924, %v4406, 0.0
      %v4455 = vsel %vm1925, %v4407, 0.0
      %v4456 = vsel %vm1923, %v4408, 0.0
      %v4457 = vsel %vm1924, %v4409, 0.0
      %v4458 = vsel %vm1925, %v4410, 0.0
      %v4459 = vsel %vm1923, %v4411, 0.0
      %v4460 = vsel %vm1924, %v4412, 0.0
      %v4461 = vsel %vm1925, %v4413, 0.0
      %v4462 = vsel %vm1923, %v4414, 0.0
      %v4463 = vsel %vm1924, %v4415, 0.0
      %v4464 = vsel %vm1925, %v4416, 0.0
      %v4465 = vsel %vm1923, %v4417, 0.0
      %v4466 = vsel %vm1924, %v4418, 0.0
      %v4467 = vsel %vm1925, %v4419, 0.0
      %v4468 = vsel %vm1923, %v4420, 0.0
      %v4469 = vsel %vm1924, %v4421, 0.0
      %v4470 = vsel %vm1925, %v4422, 0.0
      %v4471 = vsel %vm804, %v4423, 0.0
      %v4472 = vsel %vm804, %v4424, 0.0
      %v4473 = vadd.f32 %v4471, %v4472
      %v4474 = vsel %vm804, %v4425, 0.0
      %v4475 = vadd.f32 %v4473, %v4474
      %v4476 = vsel %vm804, %v4426, 0.0
      %v4477 = vadd.f32 %v4475, %v4476
      %v4478 = vsel %vm804, %v4427, 0.0
      %v4479 = vadd.f32 %v4477, %v4478
      %v4480 = vsel %vm804, %v4428, 0.0
      %v4481 = vadd.f32 %v4479, %v4480
      %v4482 = vsel %vm804, %v4429, 0.0
      %v4483 = vadd.f32 %v4481, %v4482
      %v4484 = vsel %vm804, %v4430, 0.0
      %v4485 = vadd.f32 %v4483, %v4484
      %v4486 = vsel %vm804, %v4431, 0.0
      %v4487 = vadd.f32 %v4485, %v4486
      %v4488 = vsel %vm804, %v4432, 0.0
      %v4489 = vadd.f32 %v4487, %v4488
      %v4490 = vsel %vm804, %v4433, 0.0
      %v4491 = vadd.f32 %v4489, %v4490
      %v4492 = vsel %vm804, %v4434, 0.0
      %v4493 = vadd.f32 %v4491, %v4492
      %v4494 = vsel %vm804, %v4435, 0.0
      %v4495 = vadd.f32 %v4493, %v4494
      %v4496 = vsel %vm804, %v4436, 0.0
      %v4497 = vadd.f32 %v4495, %v4496
      %v4498 = vsel %vm804, %v4437, 0.0
      %v4499 = vadd.f32 %v4497, %v4498
      %v4500 = vsel %vm804, %v4438, 0.0
      %v4501 = vadd.f32 %v4499, %v4500
      %v4502 = vsel %vm804, %v4439, 0.0
      %v4503 = vadd.f32 %v4501, %v4502
      %v4504 = vsel %vm804, %v4440, 0.0
      %v4505 = vadd.f32 %v4503, %v4504
      %v4506 = vsel %vm804, %v4441, 0.0
      %v4507 = vadd.f32 %v4505, %v4506
      %v4508 = vsel %vm804, %v4442, 0.0
      %v4509 = vadd.f32 %v4507, %v4508
      %v4510 = vsel %vm804, %v4443, 0.0
      %v4511 = vadd.f32 %v4509, %v4510
      %v4512 = vsel %vm804, %v4444, 0.0
      %v4513 = vadd.f32 %v4511, %v4512
      %v4514 = vsel %vm804, %v4445, 0.0
      %v4515 = vadd.f32 %v4513, %v4514
      %v4516 = vsel %vm804, %v4446, 0.0
      %v4517 = vadd.f32 %v4515, %v4516
      %v4518 = vsel %vm804, %v4447, 0.0
      %v4519 = vadd.f32 %v4517, %v4518
      %v4520 = vsel %vm804, %v4448, 0.0
      %v4521 = vadd.f32 %v4519, %v4520
      %v4522 = vsel %vm804, %v4449, 0.0
      %v4523 = vadd.f32 %v4521, %v4522
      %v4524 = vsel %vm804, %v4450, 0.0
      %v4525 = vadd.f32 %v4523, %v4524
      %v4526 = vsel %vm804, %v4451, 0.0
      %v4527 = vadd.f32 %v4525, %v4526
      %v4528 = vsel %vm804, %v4452, 0.0
      %v4529 = vadd.f32 %v4527, %v4528
      %v4530 = vsel %vm804, %v4453, 0.0
      %v4531 = vadd.f32 %v4529, %v4530
      %v4532 = vsel %vm804, %v4454, 0.0
      %v4533 = vadd.f32 %v4531, %v4532
      %v4534 = vsel %vm804, %v4455, 0.0
      %v4535 = vadd.f32 %v4533, %v4534
      %v4536 = vsel %vm804, %v4456, 0.0
      %v4537 = vadd.f32 %v4535, %v4536
      %v4538 = vsel %vm804, %v4457, 0.0
      %v4539 = vadd.f32 %v4537, %v4538
      %v4540 = vsel %vm804, %v4458, 0.0
      %v4541 = vadd.f32 %v4539, %v4540
      %v4542 = vsel %vm804, %v4459, 0.0
      %v4543 = vadd.f32 %v4541, %v4542
      %v4544 = vsel %vm804, %v4460, 0.0
      %v4545 = vadd.f32 %v4543, %v4544
      %v4546 = vsel %vm804, %v4461, 0.0
      %v4547 = vadd.f32 %v4545, %v4546
      %v4548 = vsel %vm804, %v4462, 0.0
      %v4549 = vadd.f32 %v4547, %v4548
      %v4550 = vsel %vm804, %v4463, 0.0
      %v4551 = vadd.f32 %v4549, %v4550
      %v4552 = vsel %vm804, %v4464, 0.0
      %v4553 = vadd.f32 %v4551, %v4552
      %v4554 = vsel %vm804, %v4465, 0.0
      %v4555 = vadd.f32 %v4553, %v4554
      %v4556 = vsel %vm804, %v4466, 0.0
      %v4557 = vadd.f32 %v4555, %v4556
      %v4558 = vsel %vm804, %v4467, 0.0
      %v4559 = vadd.f32 %v4557, %v4558
      %v4560 = vsel %vm804, %v4468, 0.0
      %v4561 = vadd.f32 %v4559, %v4560
      %v4562 = vsel %vm804, %v4469, 0.0
      %v4563 = vadd.f32 %v4561, %v4562
      %v4564 = vsel %vm804, %v4470, 0.0
      %v4565 = vadd.f32 %v4563, %v4564
      %v4566 = vrot.slane %v4565, 4
      %v4567 = vadd.f32 %v4565, %v4566
      %v4568 = vrot.slane %v4567, 2
      %v4569 = vadd.f32 %v4567, %v4568
      %v4570 = vrot.slane %v4569, 1
      %v4571 = vadd.f32 %v4569, %v4570
      %v4572 = vmul.f32 %v4423, %v4375
      %v4573 = vmul.f32 %v4424, %v4376
      %v4574 = vmul.f32 %v4425, %v4377
      %v4575 = vmul.f32 %v4426, %v4378
      %v4576 = vmul.f32 %v4427, %v4379
      %v4577 = vmul.f32 %v4428, %v4380
      %v4578 = vmul.f32 %v4429, %v4381
      %v4579 = vmul.f32 %v4430, %v4382
      %v4580 = vmul.f32 %v4431, %v4383
      %v4581 = vmul.f32 %v4432, %v4384
      %v4582 = vmul.f32 %v4433, %v4385
      %v4583 = vmul.f32 %v4434, %v4386
      %v4584 = vmul.f32 %v4435, %v4387
      %v4585 = vmul.f32 %v4436, %v4388
      %v4586 = vmul.f32 %v4437, %v4389
      %v4587 = vmul.f32 %v4438, %v4390
      %v4588 = vmul.f32 %v4439, %v4391
      %v4589 = vmul.f32 %v4440, %v4392
      %v4590 = vmul.f32 %v4441, %v4393
      %v4591 = vmul.f32 %v4442, %v4394
      %v4592 = vmul.f32 %v4443, %v4395
      %v4593 = vmul.f32 %v4444, %v4396
      %v4594 = vmul.f32 %v4445, %v4397
      %v4595 = vmul.f32 %v4446, %v4398
      %v4596 = vmul.f32 %v4447, %v4399
      %v4597 = vmul.f32 %v4448, %v4400
      %v4598 = vmul.f32 %v4449, %v4401
      %v4599 = vmul.f32 %v4450, %v4402
      %v4600 = vmul.f32 %v4451, %v4403
      %v4601 = vmul.f32 %v4452, %v4404
      %v4602 = vmul.f32 %v4453, %v4405
      %v4603 = vmul.f32 %v4454, %v4406
      %v4604 = vmul.f32 %v4455, %v4407
      %v4605 = vmul.f32 %v4456, %v4408
      %v4606 = vmul.f32 %v4457, %v4409
      %v4607 = vmul.f32 %v4458, %v4410
      %v4608 = vmul.f32 %v4459, %v4411
      %v4609 = vmul.f32 %v4460, %v4412
      %v4610 = vmul.f32 %v4461, %v4413
      %v4611 = vmul.f32 %v4462, %v4414
      %v4612 = vmul.f32 %v4463, %v4415
      %v4613 = vmul.f32 %v4464, %v4416
      %v4614 = vmul.f32 %v4465, %v4417
      %v4615 = vmul.f32 %v4466, %v4418
      %v4616 = vmul.f32 %v4467, %v4419
      %v4617 = vmul.f32 %v4468, %v4420
      %v4618 = vmul.f32 %v4469, %v4421
      %v4619 = vmul.f32 %v4470, %v4422
      %v4620 = vsel %vm804, %v4572, 0.0
      %v4621 = vsel %vm804, %v4573, 0.0
      %v4622 = vadd.f32 %v4620, %v4621
      %v4623 = vsel %vm804, %v4574, 0.0
      %v4624 = vadd.f32 %v4622, %v4623
      %v4625 = vsel %vm804, %v4575, 0.0
      %v4626 = vadd.f32 %v4624, %v4625
      %v4627 = vsel %vm804, %v4576, 0.0
      %v4628 = vadd.f32 %v4626, %v4627
      %v4629 = vsel %vm804, %v4577, 0.0
      %v4630 = vadd.f32 %v4628, %v4629
      %v4631 = vsel %vm804, %v4578, 0.0
      %v4632 = vadd.f32 %v4630, %v4631
      %v4633 = vsel %vm804, %v4579, 0.0
      %v4634 = vadd.f32 %v4632, %v4633
      %v4635 = vsel %vm804, %v4580, 0.0
      %v4636 = vadd.f32 %v4634, %v4635
      %v4637 = vsel %vm804, %v4581, 0.0
      %v4638 = vadd.f32 %v4636, %v4637
      %v4639 = vsel %vm804, %v4582, 0.0
      %v4640 = vadd.f32 %v4638, %v4639
      %v4641 = vsel %vm804, %v4583, 0.0
      %v4642 = vadd.f32 %v4640, %v4641
      %v4643 = vsel %vm804, %v4584, 0.0
      %v4644 = vadd.f32 %v4642, %v4643
      %v4645 = vsel %vm804, %v4585, 0.0
      %v4646 = vadd.f32 %v4644, %v4645
      %v4647 = vsel %vm804, %v4586, 0.0
      %v4648 = vadd.f32 %v4646, %v4647
      %v4649 = vsel %vm804, %v4587, 0.0
      %v4650 = vadd.f32 %v4648, %v4649
      %v4651 = vsel %vm804, %v4588, 0.0
      %v4652 = vadd.f32 %v4650, %v4651
      %v4653 = vsel %vm804, %v4589, 0.0
      %v4654 = vadd.f32 %v4652, %v4653
      %v4655 = vsel %vm804, %v4590, 0.0
      %v4656 = vadd.f32 %v4654, %v4655
      %v4657 = vsel %vm804, %v4591, 0.0
      %v4658 = vadd.f32 %v4656, %v4657
      %v4659 = vsel %vm804, %v4592, 0.0
      %v4660 = vadd.f32 %v4658, %v4659
      %v4661 = vsel %vm804, %v4593, 0.0
      %v4662 = vadd.f32 %v4660, %v4661
      %v4663 = vsel %vm804, %v4594, 0.0
      %v4664 = vadd.f32 %v4662, %v4663
      %v4665 = vsel %vm804, %v4595, 0.0
      %v4666 = vadd.f32 %v4664, %v4665
      %v4667 = vsel %vm804, %v4596, 0.0
      %v4668 = vadd.f32 %v4666, %v4667
      %v4669 = vsel %vm804, %v4597, 0.0
      %v4670 = vadd.f32 %v4668, %v4669
      %v4671 = vsel %vm804, %v4598, 0.0
      %v4672 = vadd.f32 %v4670, %v4671
      %v4673 = vsel %vm804, %v4599, 0.0
      %v4674 = vadd.f32 %v4672, %v4673
      %v4675 = vsel %vm804, %v4600, 0.0
      %v4676 = vadd.f32 %v4674, %v4675
      %v4677 = vsel %vm804, %v4601, 0.0
      %v4678 = vadd.f32 %v4676, %v4677
      %v4679 = vsel %vm804, %v4602, 0.0
      %v4680 = vadd.f32 %v4678, %v4679
      %v4681 = vsel %vm804, %v4603, 0.0
      %v4682 = vadd.f32 %v4680, %v4681
      %v4683 = vsel %vm804, %v4604, 0.0
      %v4684 = vadd.f32 %v4682, %v4683
      %v4685 = vsel %vm804, %v4605, 0.0
      %v4686 = vadd.f32 %v4684, %v4685
      %v4687 = vsel %vm804, %v4606, 0.0
      %v4688 = vadd.f32 %v4686, %v4687
      %v4689 = vsel %vm804, %v4607, 0.0
      %v4690 = vadd.f32 %v4688, %v4689
      %v4691 = vsel %vm804, %v4608, 0.0
      %v4692 = vadd.f32 %v4690, %v4691
      %v4693 = vsel %vm804, %v4609, 0.0
      %v4694 = vadd.f32 %v4692, %v4693
      %v4695 = vsel %vm804, %v4610, 0.0
      %v4696 = vadd.f32 %v4694, %v4695
      %v4697 = vsel %vm804, %v4611, 0.0
      %v4698 = vadd.f32 %v4696, %v4697
      %v4699 = vsel %vm804, %v4612, 0.0
      %v4700 = vadd.f32 %v4698, %v4699
      %v4701 = vsel %vm804, %v4613, 0.0
      %v4702 = vadd.f32 %v4700, %v4701
      %v4703 = vsel %vm804, %v4614, 0.0
      %v4704 = vadd.f32 %v4702, %v4703
      %v4705 = vsel %vm804, %v4615, 0.0
      %v4706 = vadd.f32 %v4704, %v4705
      %v4707 = vsel %vm804, %v4616, 0.0
      %v4708 = vadd.f32 %v4706, %v4707
      %v4709 = vsel %vm804, %v4617, 0.0
      %v4710 = vadd.f32 %v4708, %v4709
      %v4711 = vsel %vm804, %v4618, 0.0
      %v4712 = vadd.f32 %v4710, %v4711
      %v4713 = vsel %vm804, %v4619, 0.0
      %v4714 = vadd.f32 %v4712, %v4713
      %v4715 = vrot.slane %v4714, 4
      %v4716 = vadd.f32 %v4714, %v4715
      %v4717 = vrot.slane %v4716, 2
      %v4718 = vadd.f32 %v4716, %v4717
      %v4719 = vrot.slane %v4718, 1
      %v4720 = vadd.f32 %v4718, %v4719
      %v4721 = vmul.f32 %v4571, 0.00390625
      %v4722 = vmul.f32 %v4720, 0.00390625
      %v4723 = vmul.f32 %v4721, %v4721
      %v4724 = vsub.f32 %v4722, %v4723
      %v4725 = vmax.f32 %v4724, 0.0
      %v4726 = vsub.f32 %v4375, %v4721
      %v4727 = vsub.f32 %v4376, %v4721
      %v4728 = vsub.f32 %v4378, %v4721
      %v4729 = vsub.f32 %v4379, %v4721
      %v4730 = vsub.f32 %v4381, %v4721
      %v4731 = vsub.f32 %v4382, %v4721
      %v4732 = vsub.f32 %v4384, %v4721
      %v4733 = vsub.f32 %v4385, %v4721
      %v4734 = vsub.f32 %v4387, %v4721
      %v4735 = vsub.f32 %v4388, %v4721
      %v4736 = vsub.f32 %v4390, %v4721
      %v4737 = vsub.f32 %v4391, %v4721
      %v4738 = vsub.f32 %v4393, %v4721
      %v4739 = vsub.f32 %v4394, %v4721
      %v4740 = vsub.f32 %v4396, %v4721
      %v4741 = vsub.f32 %v4397, %v4721
      %v4742 = vsub.f32 %v4399, %v4721
      %v4743 = vsub.f32 %v4400, %v4721
      %v4744 = vsub.f32 %v4402, %v4721
      %v4745 = vsub.f32 %v4403, %v4721
      %v4746 = vsub.f32 %v4405, %v4721
      %v4747 = vsub.f32 %v4406, %v4721
      %v4748 = vsub.f32 %v4408, %v4721
      %v4749 = vsub.f32 %v4409, %v4721
      %v4750 = vsub.f32 %v4411, %v4721
      %v4751 = vsub.f32 %v4412, %v4721
      %v4752 = vsub.f32 %v4414, %v4721
      %v4753 = vsub.f32 %v4415, %v4721
      %v4754 = vsub.f32 %v4417, %v4721
      %v4755 = vsub.f32 %v4418, %v4721
      %v4756 = vsub.f32 %v4420, %v4721
      %v4757 = vsub.f32 %v4421, %v4721
      %v4758 = vadd.f32 %v4725, 1e-05
      %v4759 = vrsqrt.pop %v4758
      %v4760 = vmul.f32 %v4759, %v4758
      %v4761 = vmul.f32 %v4760, %v4759
      %v4762 = vmul.f32 0.5, %v4761
      %v4763 = vsub.f32 1.5, %v4762
      %v4764 = vmul.f32 %v4759, %v4763
      %vm4765 = vweird.f32 %v4758
      %vm4766 = vweird.f32 %v4759
      %vm4767 = vmor %vm4765, %vm4766
      %v4768 = vsel %vm4767, %v4759, %v4764
      %v4769 = vmul.f32 %v4726, %v4768
      %v4770 = vmul.f32 %v4727, %v4768
      %v4771 = vmul.f32 %v4728, %v4768
      %v4772 = vmul.f32 %v4729, %v4768
      %v4773 = vmul.f32 %v4730, %v4768
      %v4774 = vmul.f32 %v4731, %v4768
      %v4775 = vmul.f32 %v4732, %v4768
      %v4776 = vmul.f32 %v4733, %v4768
      %v4777 = vmul.f32 %v4734, %v4768
      %v4778 = vmul.f32 %v4735, %v4768
      %v4779 = vmul.f32 %v4736, %v4768
      %v4780 = vmul.f32 %v4737, %v4768
      %v4781 = vmul.f32 %v4738, %v4768
      %v4782 = vmul.f32 %v4739, %v4768
      %v4783 = vmul.f32 %v4740, %v4768
      %v4784 = vmul.f32 %v4741, %v4768
      %v4785 = vmul.f32 %v4742, %v4768
      %v4786 = vmul.f32 %v4743, %v4768
      %v4787 = vmul.f32 %v4744, %v4768
      %v4788 = vmul.f32 %v4745, %v4768
      %v4789 = vmul.f32 %v4746, %v4768
      %v4790 = vmul.f32 %v4747, %v4768
      %v4791 = vmul.f32 %v4748, %v4768
      %v4792 = vmul.f32 %v4749, %v4768
      %v4793 = vmul.f32 %v4750, %v4768
      %v4794 = vmul.f32 %v4751, %v4768
      %v4795 = vmul.f32 %v4752, %v4768
      %v4796 = vmul.f32 %v4753, %v4768
      %v4797 = vmul.f32 %v4754, %v4768
      %v4798 = vmul.f32 %v4755, %v4768
      %v4799 = vmul.f32 %v4756, %v4768
      %v4800 = vmul.f32 %v4757, %v4768
      %v4801 = vld [vmem:[%s212] sm:$0xff]
      %v4802 = vld [vmem:[%s212 + $0x8] sm:$0xff]
      %v4803 = vld [vmem:[%s212 + $0x10] sm:$0xff]
      %v4804 = vld [vmem:[%s212 + $0x18] sm:$0xff]
      %v4805 = vld [vmem:[%s212 + $0x20] sm:$0xff]
      %v4806 = vld [vmem:[%s212 + $0x28] sm:$0xff]
      %v4807 = vld [vmem:[%s212 + $0x30] sm:$0xff]
      %v4808 = vld [vmem:[%s212 + $0x38] sm:$0xff]
      %v4809 = vld [vmem:[%s212 + $0x40] sm:$0xff]
      %v4810 = vld [vmem:[%s212 + $0x48] sm:$0xff]
      %v4811 = vld [vmem:[%s212 + $0x50] sm:$0xff]
      %v4812 = vld [vmem:[%s212 + $0x58] sm:$0xff]
      %v4813 = vld [vmem:[%s212 + $0x60] sm:$0xff]
      %v4814 = vld [vmem:[%s212 + $0x68] sm:$0xff]
      %v4815 = vld [vmem:[%s212 + $0x70] sm:$0xff]
      %v4816 = vld [vmem:[%s212 + $0x78] sm:$0xff]
      %v4817 = vld [vmem:[%s212 + $0x80] sm:$0xff]
      %v4818 = vld [vmem:[%s212 + $0x88] sm:$0xff]
      %v4819 = vld [vmem:[%s212 + $0x90] sm:$0xff]
      %v4820 = vld [vmem:[%s212 + $0x98] sm:$0xff]
      %v4821 = vld [vmem:[%s212 + $0xa0] sm:$0xff]
      %v4822 = vld [vmem:[%s212 + $0xa8] sm:$0xff]
      %v4823 = vld [vmem:[%s212 + $0xb0] sm:$0xff]
      %v4824 = vld [vmem:[%s212 + $0xb8] sm:$0xff]
      %v4825 = vld [vmem:[%s212 + $0xc0] sm:$0xff]
      %v4826 = vld [vmem:[%s212 + $0xc8] sm:$0xff]
      %v4827 = vld [vmem:[%s212 + $0xd0] sm:$0xff]
      %v4828 = vld [vmem:[%s212 + $0xd8] sm:$0xff]
      %v4829 = vld [vmem:[%s212 + $0xe0] sm:$0xff]
      %v4830 = vld [vmem:[%s212 + $0xe8] sm:$0xff]
      %v4831 = vld [vmem:[%s212 + $0xf0] sm:$0xff]
      %v4832 = vld [vmem:[%s212 + $0xf8] sm:$0xff]
      %v4833 = vadd.f32 %v4801, %v4769
      %v4834 = vadd.f32 %v4802, %v4770
      %v4835 = vadd.f32 %v4803, %v4771
      %v4836 = vadd.f32 %v4804, %v4772
      %v4837 = vadd.f32 %v4805, %v4773
      %v4838 = vadd.f32 %v4806, %v4774
      %v4839 = vadd.f32 %v4807, %v4775
      %v4840 = vadd.f32 %v4808, %v4776
      %v4841 = vadd.f32 %v4809, %v4777
      %v4842 = vadd.f32 %v4810, %v4778
      %v4843 = vadd.f32 %v4811, %v4779
      %v4844 = vadd.f32 %v4812, %v4780
      %v4845 = vadd.f32 %v4813, %v4781
      %v4846 = vadd.f32 %v4814, %v4782
      %v4847 = vadd.f32 %v4815, %v4783
      %v4848 = vadd.f32 %v4816, %v4784
      %v4849 = vadd.f32 %v4817, %v4785
      %v4850 = vadd.f32 %v4818, %v4786
      %v4851 = vadd.f32 %v4819, %v4787
      %v4852 = vadd.f32 %v4820, %v4788
      %v4853 = vadd.f32 %v4821, %v4789
      %v4854 = vadd.f32 %v4822, %v4790
      %v4855 = vadd.f32 %v4823, %v4791
      %v4856 = vadd.f32 %v4824, %v4792
      %v4857 = vadd.f32 %v4825, %v4793
      %v4858 = vadd.f32 %v4826, %v4794
      %v4859 = vadd.f32 %v4827, %v4795
      %v4860 = vadd.f32 %v4828, %v4796
      %v4861 = vadd.f32 %v4829, %v4797
      %v4862 = vadd.f32 %v4830, %v4798
      %v4863 = vadd.f32 %v4831, %v4799
      %v4864 = vadd.f32 %v4832, %v4800
      %4865 = vst.msk [vmem:[%s217] sm:$0xff] %vm804, %v4833
      %4866 = vst.msk [vmem:[%s217 + $0x8] sm:$0xff] %vm804, %v4834
      %4867 = vst.msk [vmem:[%s217 + $0x10] sm:$0xff] %vm804, %v4835
      %4868 = vst.msk [vmem:[%s217 + $0x18] sm:$0xff] %vm804, %v4836
      %4869 = vst.msk [vmem:[%s217 + $0x20] sm:$0xff] %vm804, %v4837
      %4870 = vst.msk [vmem:[%s217 + $0x28] sm:$0xff] %vm804, %v4838
      %4871 = vst.msk [vmem:[%s217 + $0x30] sm:$0xff] %vm804, %v4839
      %4872 = vst.msk [vmem:[%s217 + $0x38] sm:$0xff] %vm804, %v4840
      %4873 = vst.msk [vmem:[%s217 + $0x40] sm:$0xff] %vm804, %v4841
      %4874 = vst.msk [vmem:[%s217 + $0x48] sm:$0xff] %vm804, %v4842
      %4875 = vst.msk [vmem:[%s217 + $0x50] sm:$0xff] %vm804, %v4843
      %4876 = vst.msk [vmem:[%s217 + $0x58] sm:$0xff] %vm804, %v4844
      %4877 = vst.msk [vmem:[%s217 + $0x60] sm:$0xff] %vm804, %v4845
      %4878 = vst.msk [vmem:[%s217 + $0x68] sm:$0xff] %vm804, %v4846
      %4879 = vst.msk [vmem:[%s217 + $0x70] sm:$0xff] %vm804, %v4847
      %4880 = vst.msk [vmem:[%s217 + $0x78] sm:$0xff] %vm804, %v4848
      %4881 = vst.msk [vmem:[%s217 + $0x80] sm:$0xff] %vm804, %v4849
      %4882 = vst.msk [vmem:[%s217 + $0x88] sm:$0xff] %vm804, %v4850
      %4883 = vst.msk [vmem:[%s217 + $0x90] sm:$0xff] %vm804, %v4851
      %4884 = vst.msk [vmem:[%s217 + $0x98] sm:$0xff] %vm804, %v4852
      %4885 = vst.msk [vmem:[%s217 + $0xa0] sm:$0xff] %vm804, %v4853
      %4886 = vst.msk [vmem:[%s217 + $0xa8] sm:$0xff] %vm804, %v4854
      %4887 = vst.msk [vmem:[%s217 + $0xb0] sm:$0xff] %vm804, %v4855
      %4888 = vst.msk [vmem:[%s217 + $0xb8] sm:$0xff] %vm804, %v4856
      %4889 = vst.msk [vmem:[%s217 + $0xc0] sm:$0xff] %vm804, %v4857
      %4890 = vst.msk [vmem:[%s217 + $0xc8] sm:$0xff] %vm804, %v4858
      %4891 = vst.msk [vmem:[%s217 + $0xd0] sm:$0xff] %vm804, %v4859
      %4892 = vst.msk [vmem:[%s217 + $0xd8] sm:$0xff] %vm804, %v4860
      %4893 = vst.msk [vmem:[%s217 + $0xe0] sm:$0xff] %vm804, %v4861
      %4894 = vst.msk [vmem:[%s217 + $0xe8] sm:$0xff] %vm804, %v4862
      %4895 = vst.msk [vmem:[%s217 + $0xf0] sm:$0xff] %vm804, %v4863
      %4896 = vst.msk [vmem:[%s217 + $0xf8] sm:$0xff] %vm804, %v4864
      %p4897 = scmp.lt.s32.totalorder %s15, 1
      %s4898 = scalar_select %p4897, %s15, 1
      %s4899 = smul.addr %s4898, 32
      %s4900 = smul.addr %s4899, 8
      %s4901 = scalar_lea.vmem %s4, %s4900
      // Predicated region
      $region37: #{tpu_custom_call.1} parent=35 // pred_check
        %p4902 = pneg %p127
      $region38: #{tpu_custom_call.1} parent=35 // pred_check_branch
        %4904 = sbr.rel (%p4902) target = $region40
      $region39: #{tpu_custom_call.1} parent=35 // pred_region
        _
      $region40: #{tpu_custom_call.1} parent=35 // pred_fallthru
        _
    $region36: #{tpu_custom_call.1} parent=5 // pred_fallthru
      _
    %p4905 = scmp.le.s32.totalorder 2, %s10
    // Predicated region
    $region41: #{tpu_custom_call.1} parent=5 // pred_check
      %p4906 = pneg %p4905
    $region42: #{tpu_custom_call.1} parent=5 // pred_check_branch
      %4908 = sbr.rel (%p4906) target = $region44
    $region43: #{tpu_custom_call.1} parent=5 // pred_region
      %s4909 = ssub.s32 %s10, 2
      // Predicated region
      $region45: #{tpu_custom_call.1} parent=43 // pred_check
        %p4910 = pneg %p133
      $region46: #{tpu_custom_call.1} parent=43 // pred_check_branch
        %4912 = sbr.rel (%p4910) target = $region48
      $region47: #{tpu_custom_call.1} parent=43 // pred_region
        %p4913 = scmp.lt.s32.totalorder %s16, 1
        %s4914 = scalar_select %p4913, %s16, 1
        %s4915 = smul.addr %s4914, 32
        %s4916 = smul.addr %s4915, 8
        %s4917 = scalar_lea.vmem %s4, %s4916
      $region48: #{tpu_custom_call.1} parent=43 // pred_fallthru
        _
    $region44: #{tpu_custom_call.1} parent=5 // pred_fallthru
      _
  $region6: #{tpu_custom_call.1} parent=0 // loop_footer
    %s14 = sadd.s32 1, %s10
  $region7: #{tpu_custom_call.1} parent=0 // loop_footer_branch
    %9 = sbr.rel target = $region3
  $region8: #{tpu_custom_call.1} parent=0 // loop_exit
    _

</llo_original>
